<compile_context>
chip_gen: v7x
topology: tpu7x:2x2x1
jax: 0.10.0
libtpu: 0.0.40
codegen_flags: <defaults>
</compile_context>

<pallas_src>
import jax
import jax.numpy as jnp
from jax import lax
from jax.experimental import pallas as pl
from jax.experimental.pallas import tpu as pltpu


def _make_kernel(T, B, H):
    H2 = 2 * H           # fused (fwd|bwd) state width
    G2 = 8 * H           # both directions' gates, gate-major interleaved

    def kernel(x_ref, m_ref,
               w_ih1_ref, w_hh1_ref, b1_ref,
               w_ih2_ref, w_hh2_ref, b2_ref,
               wl_ref, bl_ref,
               o_ref,
               f1_scr, f2_scr):
        # lane l is a forward-direction column iff (l mod 2H) < H
        lane = lax.broadcasted_iota(jnp.int32, (1, G2), 1)
        fwd_lane = (lane % H2) < H                            # (1, 8H) bool

        # pad mask (pack_padded_sequence emulation), hoisted once and reused
        # by both layers.  Row block s already holds the fused per-step mask
        # [mask(t=s) | mask(t=T-1-s)] broadcast to lane width by the wrapper.
        mval = m_ref[...]                                     # (T*B, 2H) f32
        live = [mval[s * B:(s + 1) * B, :] > 0.0 for s in range(T)]

        def run_layer(x_flat, w_ih_ref, w_hh_ref, b_ref, out_scr):
            # Hoisted input projection: ONE MXU matmul covers both directions
            # (bias b_ih+b_hh already folded into b_ref).
            pall = jnp.dot(x_flat, w_ih_ref[...],
                           preferred_element_type=jnp.float32) + b_ref[...]
            w_hh = w_hh_ref[...]          # block-diagonal (2H,8H), loop-invariant
            h = jnp.zeros((B, H2), jnp.float32)
            c = jnp.zeros((B, H2), jnp.float32)
            for s in range(T):            # fully unrolled, static indices
                r = T - 1 - s
                # gates-in: fwd lanes from time s, bwd lanes from time T-1-s.
                # Depends only on pall -> off the serial recurrence chain.
                g_in = jnp.where(fwd_lane,
                                 pall[s * B:(s + 1) * B, :],
                                 pall[r * B:(r + 1) * B, :])
                gates = g_in + jnp.dot(h.astype(w_hh.dtype), w_hh,
                                       preferred_element_type=jnp.float32)
                # One EUP pass: sigmoid(x) = 0.5*(tanh(x/2)+1); the g-gate
                # columns of W/b were pre-scaled by 2 so t is already tanh(g).
                t = jnp.tanh(0.5 * gates)
                sg = 0.5 * t + 0.5
                i_g = sg[:, 0 * H2:1 * H2]
                f_g = sg[:, 1 * H2:2 * H2]
                g_g = t[:, 2 * H2:3 * H2]
                o_g = sg[:, 3 * H2:4 * H2]
                c_new = f_g * c + i_g * g_g
                h_new = o_g * jnp.tanh(c_new)
                # packed-sequence semantics: freeze state / zero output at pads
                live_s = live[s]                              # (B, 2H) bool
                h_out = jnp.where(live_s, h_new, 0.0)
                h = jnp.where(live_s, h_new, h)
                c = jnp.where(live_s, c_new, c)
                # features stored once, natural time order:
                #   fwd half -> row block s, bwd half -> row block T-1-s
                out_scr[pl.ds(s * B, B), pl.ds(0, H)] = h_out[:, 0:H]
                out_scr[pl.ds(r * B, B), pl.ds(H, H)] = h_out[:, H:H2]

        # ---- layer 1 (bidirectional, fused) ---------------------------------
        run_layer(x_ref[...], w_ih1_ref, w_hh1_ref, b1_ref, f1_scr)
        # ---- layer 2 (bidirectional, fused); input = layer-1 features -------
        run_layer(f1_scr[...].astype(w_ih2_ref.dtype),
                  w_ih2_ref, w_hh2_ref, b2_ref, f2_scr)
        # ---- final linear: one MXU matmul, lane-dense padded-class output ---
        o_ref[...] = (jnp.dot(f2_scr[...].astype(wl_ref.dtype), wl_ref[...],
                              preferred_element_type=jnp.float32)
                      + bl_ref[...])

    return kernel


def lstm_crf_forward(input_data, input_len, params):
    """Equivalent of LstmCrf.forward(input_data, input_len) -> (B, T, n_class)."""
    emb = params['embedding']                       # (V, D)
    x = emb[input_data]                             # (B, T, D) embedding gather (glue)
    B, T, D = x.shape
    H = params['w_hh1'].shape[0] // 2
    Cp = params['w_linear'].shape[1]                # class dim padded to 128
    C = params['n_class']

    # time-major, flat input for the hoisted projections (no fwd/bwd duplication)
    x_flat = jnp.transpose(x, (1, 0, 2)).reshape(T * B, D).astype(jnp.bfloat16)

    # validity mask (pads trail), pre-broadcast to lane width and fused per
    # recurrence step as [mask(t=s) | mask(t=T-1-s)] over lanes [0:H | H:2H].
    mask_tm = (jnp.arange(T)[:, None] < input_len[None, :]).astype(jnp.float32)  # (T, B)
    m_fused = jnp.concatenate(
        [jnp.broadcast_to(mask_tm[:, :, None], (T, B, H)),
         jnp.broadcast_to(mask_tm[::-1, :, None], (T, B, H))],
        axis=-1).reshape(T * B, 2 * H)

    vmem = pl.BlockSpec(memory_space=pltpu.MemorySpace.VMEM)
    out_flat = pl.pallas_call(
        _make_kernel(T, B, H),
        out_shape=jax.ShapeDtypeStruct((T * B, Cp), jnp.float32),
        in_specs=[vmem] * 10,
        out_specs=vmem,
        scratch_shapes=[
            pltpu.VMEM((T * B, 2 * H), jnp.float32),    # layer-1 features
            pltpu.VMEM((T * B, 2 * H), jnp.float32),    # layer-2 features
        ],
    )(x_flat, m_fused,
      params['w_ih1'], params['w_hh1'], params['b1'],
      params['w_ih2'], params['w_hh2'], params['b2'],
      params['w_linear'], params['b_linear'])

    # torch: pad_packed_sequence -> (T, B, 2H) -> linear -> transpose(0, 1)
    out = out_flat[:, :C].reshape(T, B, C)
    return jnp.transpose(out, (1, 0, 2))            # (B, T, C)


def init_params(key, n_voc, input_dim, hidden_dim, n_class, class_pad=128):
    D, H, C = input_dim, hidden_dim, n_class
    s = 1.0 / (H ** 0.5)
    ks = jax.random.split(key, 12)

    def u(k, shape):
        return jax.random.uniform(k, shape, jnp.float32, -s, s)

    def gate_major(w_f, w_b):
        # (in, 4H) per direction, PyTorch gate order [i|f|g|o]  ->  (in, 8H)
        # laid out [i_f i_b | f_f f_b | g_f g_b | o_f o_b]; g columns are
        # pre-scaled by 2 so the kernel's single tanh(0.5*gates) pass yields
        # tanh(g) there and sigmoid = 0.5*(t+1) elsewhere.
        blocks = []
        for k in range(4):
            sc = 2.0 if k == 2 else 1.0
            blocks.append(w_f[:, k * H:(k + 1) * H] * sc)
            blocks.append(w_b[:, k * H:(k + 1) * H] * sc)
        return jnp.concatenate(blocks, axis=1)

    def pack_ih(k, in_dim):
        kk = jax.random.split(k, 2)
        return gate_major(u(kk[0], (in_dim, 4 * H)), u(kk[1], (in_dim, 4 * H)))

    def pack_hh(k):
        kk = jax.random.split(k, 2)
        w_f, w_b = u(kk[0], (H, 4 * H)), u(kk[1], (H, 4 * H))
        z = jnp.zeros_like(w_f)
        # block-diagonal: rows [0:H] (h_fwd) feed only fwd columns,
        # rows [H:2H] (h_bwd) feed only bwd columns.
        return jnp.concatenate([gate_major(w_f, z), gate_major(z, w_b)], axis=0)

    def pack_b(k):
        kk = jax.random.split(k, 4)
        b_f = u(kk[0], (1, 4 * H)) + u(kk[1], (1, 4 * H))   # b_ih + b_hh
        b_b = u(kk[2], (1, 4 * H)) + u(kk[3], (1, 4 * H))
        return gate_major(b_f, b_b)                          # (1, 8H)

    emb = jax.random.normal(ks[0], (n_voc, D), jnp.float32)
    emb = emb.at[0].set(0.0)        # nn.Embedding(padding_idx=0)

    w_lin = u(ks[9], (2 * H, C))
    b_lin = u(ks[10], (1, C))
    w_lin_p = jnp.zeros((2 * H, class_pad), jnp.float32).at[:, :C].set(w_lin)
    b_lin_p = jnp.zeros((1, class_pad), jnp.float32).at[:, :C].set(b_lin)

    params = dict(
        embedding=emb,
        w_ih1=pack_ih(ks[1], D).astype(jnp.bfloat16),        # (D, 8H)
        w_hh1=pack_hh(ks[2]).astype(jnp.bfloat16),           # (2H, 8H) block-diag
        b1=pack_b(ks[3]),                                    # (1, 8H) f32
        w_ih2=pack_ih(ks[5], 2 * H).astype(jnp.bfloat16),    # (2H, 8H)
        w_hh2=pack_hh(ks[6]).astype(jnp.bfloat16),           # (2H, 8H) block-diag
        b2=pack_b(ks[7]),                                    # (1, 8H) f32
        w_linear=w_lin_p.astype(jnp.bfloat16),               # (2H, 128) zero-padded
        b_linear=b_lin_p,                                    # (1, 128) f32
        n_class=C,
    )
    # TODO(synk): transition_matrix (n_class, n_class) exists in the torch
    # module but is unused by forward(); CRF scoring/decoding methods
    # (forward_alpha / get_loss / get_best_path) are not part of forward().
    return params


if __name__ == "__main__":
    key = jax.random.PRNGKey(0)
    B, T, D, H = 2, 8, 32, 32
    C = 9    # len(label_dict)
    V = 50   # vocab size (n_voc)

    pkey, dkey = jax.random.split(key)
    params = init_params(pkey, V, D, H, C)

    input_data = jax.random.randint(dkey, (B, T), 1, V, dtype=jnp.int32)
    input_len = jnp.array([T, 5], dtype=jnp.int32)   # max length == T
    valid = jnp.arange(T)[None, :] < input_len[:, None]
    input_data = jnp.where(valid, input_data, 0)     # pad token id = 0

    out = lstm_crf_forward(input_data, input_len, params)
    out = jax.block_until_ready(out)

    assert out.shape == (B, T, C), out.shape
    assert bool(jnp.all(jnp.isfinite(out)))
    print("KERNEL_OK")
</pallas_src>

<mosaic_0001>
module attributes {stable_mosaic.version = 11 : i64} {
  func.func @kernel(%arg0: memref<16x32xbf16, #tpu.memory_space<vmem>>, %arg1: memref<16x64xf32, #tpu.memory_space<vmem>>, %arg2: memref<32x256xbf16, #tpu.memory_space<vmem>>, %arg3: memref<64x256xbf16, #tpu.memory_space<vmem>>, %arg4: memref<1x256xf32, #tpu.memory_space<vmem>>, %arg5: memref<64x256xbf16, #tpu.memory_space<vmem>>, %arg6: memref<64x256xbf16, #tpu.memory_space<vmem>>, %arg7: memref<1x256xf32, #tpu.memory_space<vmem>>, %arg8: memref<64x128xbf16, #tpu.memory_space<vmem>>, %arg9: memref<1x128xf32, #tpu.memory_space<vmem>>, %arg10: memref<16x128xf32, #tpu.memory_space<vmem>>, %arg11: memref<16x64xf32, #tpu.memory_space<vmem>>, %arg12: memref<16x64xf32, #tpu.memory_space<vmem>>) attributes {dimension_semantics = [], scalar_prefetch = 0 : i64, scratch_operands = 2 : i64, tpu.core_type = #tpu.core_type<tc>} {
    %0 = tpu.iota {dimensions = array<i32: 1>} : vector<1x256xi32>
    %c64_i32 = arith.constant 64 : i32
    %c0_i32 = arith.constant 0 : i32
    %1 = arith.cmpi eq, %c64_i32, %c0_i32 : i32
    %c1_i32 = arith.constant 1 : i32
    %2 = arith.select %1, %c1_i32, %c64_i32 : i32
    %3 = vector.broadcast %2 : i32 to vector<1x256xi32>
    %4 = arith.remsi %0, %3 : vector<1x256xi32>
    %c0_i32_0 = arith.constant 0 : i32
    %5 = vector.broadcast %c0_i32_0 : i32 to vector<1x256xi32>
    %6 = arith.cmpi ne, %4, %5 : vector<1x256xi32>
    %c0_i32_1 = arith.constant 0 : i32
    %7 = vector.broadcast %c0_i32_1 : i32 to vector<1x256xi32>
    %8 = arith.cmpi slt, %4, %7 : vector<1x256xi32>
    %c0_i32_2 = arith.constant 0 : i32
    %9 = arith.cmpi slt, %2, %c0_i32_2 : i32
    %10 = vector.broadcast %9 : i1 to vector<1x256xi1>
    %11 = vector.broadcast %10 : vector<1x256xi1> to vector<1x256xi1>
    %12 = arith.xori %8, %11 : vector<1x256xi1>
    %13 = arith.andi %12, %6 : vector<1x256xi1>
    %14 = vector.broadcast %2 : i32 to vector<1x256xi32>
    %15 = arith.addi %4, %14 : vector<1x256xi32>
    %16 = arith.select %13, %15, %4 : vector<1x256xi1>, vector<1x256xi32>
    %c32_i32 = arith.constant 32 : i32
    %17 = vector.broadcast %c32_i32 : i32 to vector<1x256xi32>
    %18 = arith.cmpi slt, %16, %17 : vector<1x256xi32>
    %c0 = arith.constant 0 : index
    %c0_3 = arith.constant 0 : index
    %19 = vector.load %arg1[%c0, %c0_3] : memref<16x64xf32, #tpu.memory_space<vmem>>, vector<16x64xf32>
    %20 = vector.extract_strided_slice %19 {offsets = [0, 0], sizes = [2, 64], strides = [1, 1]} : vector<16x64xf32> to vector<2x64xf32>
    %cst = arith.constant 0.000000e+00 : f32
    %21 = vector.broadcast %cst : f32 to vector<2x64xf32>
    %22 = arith.cmpf ogt, %20, %21 : vector<2x64xf32>
    %23 = vector.extract_strided_slice %19 {offsets = [2, 0], sizes = [2, 64], strides = [1, 1]} : vector<16x64xf32> to vector<2x64xf32>
    %cst_4 = arith.constant 0.000000e+00 : f32
    %24 = vector.broadcast %cst_4 : f32 to vector<2x64xf32>
    %25 = arith.cmpf ogt, %23, %24 : vector<2x64xf32>
    %26 = vector.extract_strided_slice %19 {offsets = [4, 0], sizes = [2, 64], strides = [1, 1]} : vector<16x64xf32> to vector<2x64xf32>
    %cst_5 = arith.constant 0.000000e+00 : f32
    %27 = vector.broadcast %cst_5 : f32 to vector<2x64xf32>
    %28 = arith.cmpf ogt, %26, %27 : vector<2x64xf32>
    %29 = vector.extract_strided_slice %19 {offsets = [6, 0], sizes = [2, 64], strides = [1, 1]} : vector<16x64xf32> to vector<2x64xf32>
    %cst_6 = arith.constant 0.000000e+00 : f32
    %30 = vector.broadcast %cst_6 : f32 to vector<2x64xf32>
    %31 = arith.cmpf ogt, %29, %30 : vector<2x64xf32>
    %32 = vector.extract_strided_slice %19 {offsets = [8, 0], sizes = [2, 64], strides = [1, 1]} : vector<16x64xf32> to vector<2x64xf32>
    %cst_7 = arith.constant 0.000000e+00 : f32
    %33 = vector.broadcast %cst_7 : f32 to vector<2x64xf32>
    %34 = arith.cmpf ogt, %32, %33 : vector<2x64xf32>
    %35 = vector.extract_strided_slice %19 {offsets = [10, 0], sizes = [2, 64], strides = [1, 1]} : vector<16x64xf32> to vector<2x64xf32>
    %cst_8 = arith.constant 0.000000e+00 : f32
    %36 = vector.broadcast %cst_8 : f32 to vector<2x64xf32>
    %37 = arith.cmpf ogt, %35, %36 : vector<2x64xf32>
    %38 = vector.extract_strided_slice %19 {offsets = [12, 0], sizes = [2, 64], strides = [1, 1]} : vector<16x64xf32> to vector<2x64xf32>
    %cst_9 = arith.constant 0.000000e+00 : f32
    %39 = vector.broadcast %cst_9 : f32 to vector<2x64xf32>
    %40 = arith.cmpf ogt, %38, %39 : vector<2x64xf32>
    %41 = vector.extract_strided_slice %19 {offsets = [14, 0], sizes = [2, 64], strides = [1, 1]} : vector<16x64xf32> to vector<2x64xf32>
    %cst_10 = arith.constant 0.000000e+00 : f32
    %42 = vector.broadcast %cst_10 : f32 to vector<2x64xf32>
    %43 = arith.cmpf ogt, %41, %42 : vector<2x64xf32>
    %c0_11 = arith.constant 0 : index
    %c0_12 = arith.constant 0 : index
    %44 = vector.load %arg0[%c0_11, %c0_12] : memref<16x32xbf16, #tpu.memory_space<vmem>>, vector<16x32xbf16>
    %c0_13 = arith.constant 0 : index
    %c0_14 = arith.constant 0 : index
    %45 = vector.load %arg2[%c0_13, %c0_14] : memref<32x256xbf16, #tpu.memory_space<vmem>>, vector<32x256xbf16>
    %cst_15 = arith.constant dense<0.000000e+00> : vector<16x256xf32>
    %46 = tpu.matmul %44, %45, %cst_15 {dimension_numbers = #tpu.dot_dimension_numbers<[1], [0], [0], [1], [0, 0, 1, 1], [], []>} : vector<16x32xbf16>, vector<32x256xbf16>, vector<16x256xf32> -> vector<16x256xf32>
    %c0_16 = arith.constant 0 : index
    %c0_17 = arith.constant 0 : index
    %47 = vector.load %arg4[%c0_16, %c0_17] : memref<1x256xf32, #tpu.memory_space<vmem>>, vector<1x256xf32>
    %48 = vector.broadcast %47 : vector<1x256xf32> to vector<16x256xf32>
    %49 = arith.addf %46, %48 : vector<16x256xf32>
    %c0_18 = arith.constant 0 : index
    %c0_19 = arith.constant 0 : index
    %50 = vector.load %arg3[%c0_18, %c0_19] : memref<64x256xbf16, #tpu.memory_space<vmem>>, vector<64x256xbf16>
    %cst_20 = arith.constant 0.000000e+00 : f32
    %51 = vector.broadcast %cst_20 : f32 to vector<2x64xf32>
    %cst_21 = arith.constant 0.000000e+00 : f32
    %52 = vector.broadcast %cst_21 : f32 to vector<2x64xf32>
    %53 = vector.extract_strided_slice %49 {offsets = [0, 0], sizes = [2, 256], strides = [1, 1]} : vector<16x256xf32> to vector<2x256xf32>
    %54 = vector.extract_strided_slice %49 {offsets = [14, 0], sizes = [2, 256], strides = [1, 1]} : vector<16x256xf32> to vector<2x256xf32>
    %55 = vector.shape_cast %18 : vector<1x256xi1> to vector<1x256xi1>
    %56 = vector.broadcast %55 : vector<1x256xi1> to vector<2x256xi1>
    %57 = arith.select %56, %53, %54 : vector<2x256xi1>, vector<2x256xf32>
    %58 = arith.truncf %51 : vector<2x64xf32> to vector<2x64xbf16>
    %cst_22 = arith.constant dense<0.000000e+00> : vector<2x256xf32>
    %59 = tpu.matmul %58, %50, %cst_22 {dimension_numbers = #tpu.dot_dimension_numbers<[1], [0], [0], [1], [0, 0, 1, 1], [], []>} : vector<2x64xbf16>, vector<64x256xbf16>, vector<2x256xf32> -> vector<2x256xf32>
    %60 = arith.addf %57, %59 : vector<2x256xf32>
    %cst_23 = arith.constant 5.000000e-01 : f32
    %61 = vector.broadcast %cst_23 : f32 to vector<2x256xf32>
    %62 = arith.mulf %61, %60 : vector<2x256xf32>
    %63 = math.tanh %62 : vector<2x256xf32>
    %cst_24 = arith.constant 5.000000e-01 : f32
    %64 = vector.broadcast %cst_24 : f32 to vector<2x256xf32>
    %65 = arith.mulf %64, %63 : vector<2x256xf32>
    %cst_25 = arith.constant 5.000000e-01 : f32
    %66 = vector.broadcast %cst_25 : f32 to vector<2x256xf32>
    %67 = arith.addf %65, %66 : vector<2x256xf32>
    %68 = vector.extract_strided_slice %67 {offsets = [0, 0], sizes = [2, 64], strides = [1, 1]} : vector<2x256xf32> to vector<2x64xf32>
    %69 = vector.extract_strided_slice %67 {offsets = [0, 64], sizes = [2, 64], strides = [1, 1]} : vector<2x256xf32> to vector<2x64xf32>
    %70 = vector.extract_strided_slice %63 {offsets = [0, 128], sizes = [2, 64], strides = [1, 1]} : vector<2x256xf32> to vector<2x64xf32>
    %71 = vector.extract_strided_slice %67 {offsets = [0, 192], sizes = [2, 64], strides = [1, 1]} : vector<2x256xf32> to vector<2x64xf32>
    %72 = arith.mulf %69, %52 : vector<2x64xf32>
    %73 = arith.mulf %68, %70 : vector<2x64xf32>
    %74 = arith.addf %72, %73 : vector<2x64xf32>
    %75 = math.tanh %74 : vector<2x64xf32>
    %76 = arith.mulf %71, %75 : vector<2x64xf32>
    %cst_26 = arith.constant 0.000000e+00 : f32
    %77 = vector.broadcast %cst_26 : f32 to vector<2x64xf32>
    %78 = arith.select %22, %76, %77 : vector<2x64xi1>, vector<2x64xf32>
    %79 = arith.select %22, %76, %51 : vector<2x64xi1>, vector<2x64xf32>
    %80 = arith.select %22, %74, %52 : vector<2x64xi1>, vector<2x64xf32>
    %81 = vector.extract_strided_slice %78 {offsets = [0, 0], sizes = [2, 32], strides = [1, 1]} : vector<2x64xf32> to vector<2x32xf32>
    %c0_27 = arith.constant 0 : index
    %c0_28 = arith.constant 0 : index
    %82 = vector.load %arg11[%c0_27, %c0_28] : memref<16x64xf32, #tpu.memory_space<vmem>>, vector<2x32xf32>
    tpu.vector_store %arg11[%c0_27, %c0_28], %81 {strides = array<i32>} : memref<16x64xf32, #tpu.memory_space<vmem>>, vector<2x32xf32>,
    %83 = vector.extract_strided_slice %78 {offsets = [0, 32], sizes = [2, 32], strides = [1, 1]} : vector<2x64xf32> to vector<2x32xf32>
    %c14 = arith.constant 14 : index
    %c32 = arith.constant 32 : index
    %84 = vector.load %arg11[%c14, %c32] : memref<16x64xf32, #tpu.memory_space<vmem>>, vector<2x32xf32>
    tpu.vector_store %arg11[%c14, %c32], %83 {strides = array<i32>} : memref<16x64xf32, #tpu.memory_space<vmem>>, vector<2x32xf32>,
    %85 = vector.extract_strided_slice %49 {offsets = [2, 0], sizes = [2, 256], strides = [1, 1]} : vector<16x256xf32> to vector<2x256xf32>
    %86 = vector.extract_strided_slice %49 {offsets = [12, 0], sizes = [2, 256], strides = [1, 1]} : vector<16x256xf32> to vector<2x256xf32>
    %87 = vector.shape_cast %18 : vector<1x256xi1> to vector<1x256xi1>
    %88 = vector.broadcast %87 : vector<1x256xi1> to vector<2x256xi1>
    %89 = arith.select %88, %85, %86 : vector<2x256xi1>, vector<2x256xf32>
    %90 = arith.truncf %79 : vector<2x64xf32> to vector<2x64xbf16>
    %cst_29 = arith.constant dense<0.000000e+00> : vector<2x256xf32>
    %91 = tpu.matmul %90, %50, %cst_29 {dimension_numbers = #tpu.dot_dimension_numbers<[1], [0], [0], [1], [0, 0, 1, 1], [], []>} : vector<2x64xbf16>, vector<64x256xbf16>, vector<2x256xf32> -> vector<2x256xf32>
    %92 = arith.addf %89, %91 : vector<2x256xf32>
    %cst_30 = arith.constant 5.000000e-01 : f32
    %93 = vector.broadcast %cst_30 : f32 to vector<2x256xf32>
    %94 = arith.mulf %93, %92 : vector<2x256xf32>
    %95 = math.tanh %94 : vector<2x256xf32>
    %cst_31 = arith.constant 5.000000e-01 : f32
    %96 = vector.broadcast %cst_31 : f32 to vector<2x256xf32>
    %97 = arith.mulf %96, %95 : vector<2x256xf32>
    %cst_32 = arith.constant 5.000000e-01 : f32
    %98 = vector.broadcast %cst_32 : f32 to vector<2x256xf32>
    %99 = arith.addf %97, %98 : vector<2x256xf32>
    %100 = vector.extract_strided_slice %99 {offsets = [0, 0], sizes = [2, 64], strides = [1, 1]} : vector<2x256xf32> to vector<2x64xf32>
    %101 = vector.extract_strided_slice %99 {offsets = [0, 64], sizes = [2, 64], strides = [1, 1]} : vector<2x256xf32> to vector<2x64xf32>
    %102 = vector.extract_strided_slice %95 {offsets = [0, 128], sizes = [2, 64], strides = [1, 1]} : vector<2x256xf32> to vector<2x64xf32>
    %103 = vector.extract_strided_slice %99 {offsets = [0, 192], sizes = [2, 64], strides = [1, 1]} : vector<2x256xf32> to vector<2x64xf32>
    %104 = arith.mulf %101, %80 : vector<2x64xf32>
    %105 = arith.mulf %100, %102 : vector<2x64xf32>
    %106 = arith.addf %104, %105 : vector<2x64xf32>
    %107 = math.tanh %106 : vector<2x64xf32>
    %108 = arith.mulf %103, %107 : vector<2x64xf32>
    %cst_33 = arith.constant 0.000000e+00 : f32
    %109 = vector.broadcast %cst_33 : f32 to vector<2x64xf32>
    %110 = arith.select %25, %108, %109 : vector<2x64xi1>, vector<2x64xf32>
    %111 = arith.select %25, %108, %79 : vector<2x64xi1>, vector<2x64xf32>
    %112 = arith.select %25, %106, %80 : vector<2x64xi1>, vector<2x64xf32>
    %113 = vector.extract_strided_slice %110 {offsets = [0, 0], sizes = [2, 32], strides = [1, 1]} : vector<2x64xf32> to vector<2x32xf32>
    %c2 = arith.constant 2 : index
    %c0_34 = arith.constant 0 : index
    %114 = vector.load %arg11[%c2, %c0_34] : memref<16x64xf32, #tpu.memory_space<vmem>>, vector<2x32xf32>
    tpu.vector_store %arg11[%c2, %c0_34], %113 {strides = array<i32>} : memref<16x64xf32, #tpu.memory_space<vmem>>, vector<2x32xf32>,
    %115 = vector.extract_strided_slice %110 {offsets = [0, 32], sizes = [2, 32], strides = [1, 1]} : vector<2x64xf32> to vector<2x32xf32>
    %c12 = arith.constant 12 : index
    %c32_35 = arith.constant 32 : index
    %116 = vector.load %arg11[%c12, %c32_35] : memref<16x64xf32, #tpu.memory_space<vmem>>, vector<2x32xf32>
    tpu.vector_store %arg11[%c12, %c32_35], %115 {strides = array<i32>} : memref<16x64xf32, #tpu.memory_space<vmem>>, vector<2x32xf32>,
    %117 = vector.extract_strided_slice %49 {offsets = [4, 0], sizes = [2, 256], strides = [1, 1]} : vector<16x256xf32> to vector<2x256xf32>
    %118 = vector.extract_strided_slice %49 {offsets = [10, 0], sizes = [2, 256], strides = [1, 1]} : vector<16x256xf32> to vector<2x256xf32>
    %119 = vector.shape_cast %18 : vector<1x256xi1> to vector<1x256xi1>
    %120 = vector.broadcast %119 : vector<1x256xi1> to vector<2x256xi1>
    %121 = arith.select %120, %117, %118 : vector<2x256xi1>, vector<2x256xf32>
    %122 = arith.truncf %111 : vector<2x64xf32> to vector<2x64xbf16>
    %cst_36 = arith.constant dense<0.000000e+00> : vector<2x256xf32>
    %123 = tpu.matmul %122, %50, %cst_36 {dimension_numbers = #tpu.dot_dimension_numbers<[1], [0], [0], [1], [0, 0, 1, 1], [], []>} : vector<2x64xbf16>, vector<64x256xbf16>, vector<2x256xf32> -> vector<2x256xf32>
    %124 = arith.addf %121, %123 : vector<2x256xf32>
    %cst_37 = arith.constant 5.000000e-01 : f32
    %125 = vector.broadcast %cst_37 : f32 to vector<2x256xf32>
    %126 = arith.mulf %125, %124 : vector<2x256xf32>
    %127 = math.tanh %126 : vector<2x256xf32>
    %cst_38 = arith.constant 5.000000e-01 : f32
    %128 = vector.broadcast %cst_38 : f32 to vector<2x256xf32>
    %129 = arith.mulf %128, %127 : vector<2x256xf32>
    %cst_39 = arith.constant 5.000000e-01 : f32
    %130 = vector.broadcast %cst_39 : f32 to vector<2x256xf32>
    %131 = arith.addf %129, %130 : vector<2x256xf32>
    %132 = vector.extract_strided_slice %131 {offsets = [0, 0], sizes = [2, 64], strides = [1, 1]} : vector<2x256xf32> to vector<2x64xf32>
    %133 = vector.extract_strided_slice %131 {offsets = [0, 64], sizes = [2, 64], strides = [1, 1]} : vector<2x256xf32> to vector<2x64xf32>
    %134 = vector.extract_strided_slice %127 {offsets = [0, 128], sizes = [2, 64], strides = [1, 1]} : vector<2x256xf32> to vector<2x64xf32>
    %135 = vector.extract_strided_slice %131 {offsets = [0, 192], sizes = [2, 64], strides = [1, 1]} : vector<2x256xf32> to vector<2x64xf32>
    %136 = arith.mulf %133, %112 : vector<2x64xf32>
    %137 = arith.mulf %132, %134 : vector<2x64xf32>
    %138 = arith.addf %136, %137 : vector<2x64xf32>
    %139 = math.tanh %138 : vector<2x64xf32>
    %140 = arith.mulf %135, %139 : vector<2x64xf32>
    %cst_40 = arith.constant 0.000000e+00 : f32
    %141 = vector.broadcast %cst_40 : f32 to vector<2x64xf32>
    %142 = arith.select %28, %140, %141 : vector<2x64xi1>, vector<2x64xf32>
    %143 = arith.select %28, %140, %111 : vector<2x64xi1>, vector<2x64xf32>
    %144 = arith.select %28, %138, %112 : vector<2x64xi1>, vector<2x64xf32>
    %145 = vector.extract_strided_slice %142 {offsets = [0, 0], sizes = [2, 32], strides = [1, 1]} : vector<2x64xf32> to vector<2x32xf32>
    %c4 = arith.constant 4 : index
    %c0_41 = arith.constant 0 : index
    %146 = vector.load %arg11[%c4, %c0_41] : memref<16x64xf32, #tpu.memory_space<vmem>>, vector<2x32xf32>
    tpu.vector_store %arg11[%c4, %c0_41], %145 {strides = array<i32>} : memref<16x64xf32, #tpu.memory_space<vmem>>, vector<2x32xf32>,
    %147 = vector.extract_strided_slice %142 {offsets = [0, 32], sizes = [2, 32], strides = [1, 1]} : vector<2x64xf32> to vector<2x32xf32>
    %c10 = arith.constant 10 : index
    %c32_42 = arith.constant 32 : index
    %148 = vector.load %arg11[%c10, %c32_42] : memref<16x64xf32, #tpu.memory_space<vmem>>, vector<2x32xf32>
    tpu.vector_store %arg11[%c10, %c32_42], %147 {strides = array<i32>} : memref<16x64xf32, #tpu.memory_space<vmem>>, vector<2x32xf32>,
    %149 = vector.extract_strided_slice %49 {offsets = [6, 0], sizes = [2, 256], strides = [1, 1]} : vector<16x256xf32> to vector<2x256xf32>
    %150 = vector.extract_strided_slice %49 {offsets = [8, 0], sizes = [2, 256], strides = [1, 1]} : vector<16x256xf32> to vector<2x256xf32>
    %151 = vector.shape_cast %18 : vector<1x256xi1> to vector<1x256xi1>
    %152 = vector.broadcast %151 : vector<1x256xi1> to vector<2x256xi1>
    %153 = arith.select %152, %149, %150 : vector<2x256xi1>, vector<2x256xf32>
    %154 = arith.truncf %143 : vector<2x64xf32> to vector<2x64xbf16>
    %cst_43 = arith.constant dense<0.000000e+00> : vector<2x256xf32>
    %155 = tpu.matmul %154, %50, %cst_43 {dimension_numbers = #tpu.dot_dimension_numbers<[1], [0], [0], [1], [0, 0, 1, 1], [], []>} : vector<2x64xbf16>, vector<64x256xbf16>, vector<2x256xf32> -> vector<2x256xf32>
    %156 = arith.addf %153, %155 : vector<2x256xf32>
    %cst_44 = arith.constant 5.000000e-01 : f32
    %157 = vector.broadcast %cst_44 : f32 to vector<2x256xf32>
    %158 = arith.mulf %157, %156 : vector<2x256xf32>
    %159 = math.tanh %158 : vector<2x256xf32>
    %cst_45 = arith.constant 5.000000e-01 : f32
    %160 = vector.broadcast %cst_45 : f32 to vector<2x256xf32>
    %161 = arith.mulf %160, %159 : vector<2x256xf32>
    %cst_46 = arith.constant 5.000000e-01 : f32
    %162 = vector.broadcast %cst_46 : f32 to vector<2x256xf32>
    %163 = arith.addf %161, %162 : vector<2x256xf32>
    %164 = vector.extract_strided_slice %163 {offsets = [0, 0], sizes = [2, 64], strides = [1, 1]} : vector<2x256xf32> to vector<2x64xf32>
    %165 = vector.extract_strided_slice %163 {offsets = [0, 64], sizes = [2, 64], strides = [1, 1]} : vector<2x256xf32> to vector<2x64xf32>
    %166 = vector.extract_strided_slice %159 {offsets = [0, 128], sizes = [2, 64], strides = [1, 1]} : vector<2x256xf32> to vector<2x64xf32>
    %167 = vector.extract_strided_slice %163 {offsets = [0, 192], sizes = [2, 64], strides = [1, 1]} : vector<2x256xf32> to vector<2x64xf32>
    %168 = arith.mulf %165, %144 : vector<2x64xf32>
    %169 = arith.mulf %164, %166 : vector<2x64xf32>
    %170 = arith.addf %168, %169 : vector<2x64xf32>
    %171 = math.tanh %170 : vector<2x64xf32>
    %172 = arith.mulf %167, %171 : vector<2x64xf32>
    %cst_47 = arith.constant 0.000000e+00 : f32
    %173 = vector.broadcast %cst_47 : f32 to vector<2x64xf32>
    %174 = arith.select %31, %172, %173 : vector<2x64xi1>, vector<2x64xf32>
    %175 = arith.select %31, %172, %143 : vector<2x64xi1>, vector<2x64xf32>
    %176 = arith.select %31, %170, %144 : vector<2x64xi1>, vector<2x64xf32>
    %177 = vector.extract_strided_slice %174 {offsets = [0, 0], sizes = [2, 32], strides = [1, 1]} : vector<2x64xf32> to vector<2x32xf32>
    %c6 = arith.constant 6 : index
    %c0_48 = arith.constant 0 : index
    %178 = vector.load %arg11[%c6, %c0_48] : memref<16x64xf32, #tpu.memory_space<vmem>>, vector<2x32xf32>
    tpu.vector_store %arg11[%c6, %c0_48], %177 {strides = array<i32>} : memref<16x64xf32, #tpu.memory_space<vmem>>, vector<2x32xf32>,
    %179 = vector.extract_strided_slice %174 {offsets = [0, 32], sizes = [2, 32], strides = [1, 1]} : vector<2x64xf32> to vector<2x32xf32>
    %c8 = arith.constant 8 : index
    %c32_49 = arith.constant 32 : index
    %180 = vector.load %arg11[%c8, %c32_49] : memref<16x64xf32, #tpu.memory_space<vmem>>, vector<2x32xf32>
    tpu.vector_store %arg11[%c8, %c32_49], %179 {strides = array<i32>} : memref<16x64xf32, #tpu.memory_space<vmem>>, vector<2x32xf32>,
    %181 = vector.extract_strided_slice %49 {offsets = [8, 0], sizes = [2, 256], strides = [1, 1]} : vector<16x256xf32> to vector<2x256xf32>
    %182 = vector.extract_strided_slice %49 {offsets = [6, 0], sizes = [2, 256], strides = [1, 1]} : vector<16x256xf32> to vector<2x256xf32>
    %183 = vector.shape_cast %18 : vector<1x256xi1> to vector<1x256xi1>
    %184 = vector.broadcast %183 : vector<1x256xi1> to vector<2x256xi1>
    %185 = arith.select %184, %181, %182 : vector<2x256xi1>, vector<2x256xf32>
    %186 = arith.truncf %175 : vector<2x64xf32> to vector<2x64xbf16>
    %cst_50 = arith.constant dense<0.000000e+00> : vector<2x256xf32>
    %187 = tpu.matmul %186, %50, %cst_50 {dimension_numbers = #tpu.dot_dimension_numbers<[1], [0], [0], [1], [0, 0, 1, 1], [], []>} : vector<2x64xbf16>, vector<64x256xbf16>, vector<2x256xf32> -> vector<2x256xf32>
    %188 = arith.addf %185, %187 : vector<2x256xf32>
    %cst_51 = arith.constant 5.000000e-01 : f32
    %189 = vector.broadcast %cst_51 : f32 to vector<2x256xf32>
    %190 = arith.mulf %189, %188 : vector<2x256xf32>
    %191 = math.tanh %190 : vector<2x256xf32>
    %cst_52 = arith.constant 5.000000e-01 : f32
    %192 = vector.broadcast %cst_52 : f32 to vector<2x256xf32>
    %193 = arith.mulf %192, %191 : vector<2x256xf32>
    %cst_53 = arith.constant 5.000000e-01 : f32
    %194 = vector.broadcast %cst_53 : f32 to vector<2x256xf32>
    %195 = arith.addf %193, %194 : vector<2x256xf32>
    %196 = vector.extract_strided_slice %195 {offsets = [0, 0], sizes = [2, 64], strides = [1, 1]} : vector<2x256xf32> to vector<2x64xf32>
    %197 = vector.extract_strided_slice %195 {offsets = [0, 64], sizes = [2, 64], strides = [1, 1]} : vector<2x256xf32> to vector<2x64xf32>
    %198 = vector.extract_strided_slice %191 {offsets = [0, 128], sizes = [2, 64], strides = [1, 1]} : vector<2x256xf32> to vector<2x64xf32>
    %199 = vector.extract_strided_slice %195 {offsets = [0, 192], sizes = [2, 64], strides = [1, 1]} : vector<2x256xf32> to vector<2x64xf32>
    %200 = arith.mulf %197, %176 : vector<2x64xf32>
    %201 = arith.mulf %196, %198 : vector<2x64xf32>
    %202 = arith.addf %200, %201 : vector<2x64xf32>
    %203 = math.tanh %202 : vector<2x64xf32>
    %204 = arith.mulf %199, %203 : vector<2x64xf32>
    %cst_54 = arith.constant 0.000000e+00 : f32
    %205 = vector.broadcast %cst_54 : f32 to vector<2x64xf32>
    %206 = arith.select %34, %204, %205 : vector<2x64xi1>, vector<2x64xf32>
    %207 = arith.select %34, %204, %175 : vector<2x64xi1>, vector<2x64xf32>
    %208 = arith.select %34, %202, %176 : vector<2x64xi1>, vector<2x64xf32>
    %209 = vector.extract_strided_slice %206 {offsets = [0, 0], sizes = [2, 32], strides = [1, 1]} : vector<2x64xf32> to vector<2x32xf32>
    %c8_55 = arith.constant 8 : index
    %c0_56 = arith.constant 0 : index
    %210 = vector.load %arg11[%c8_55, %c0_56] : memref<16x64xf32, #tpu.memory_space<vmem>>, vector<2x32xf32>
    tpu.vector_store %arg11[%c8_55, %c0_56], %209 {strides = array<i32>} : memref<16x64xf32, #tpu.memory_space<vmem>>, vector<2x32xf32>,
    %211 = vector.extract_strided_slice %206 {offsets = [0, 32], sizes = [2, 32], strides = [1, 1]} : vector<2x64xf32> to vector<2x32xf32>
    %c6_57 = arith.constant 6 : index
    %c32_58 = arith.constant 32 : index
    %212 = vector.load %arg11[%c6_57, %c32_58] : memref<16x64xf32, #tpu.memory_space<vmem>>, vector<2x32xf32>
    tpu.vector_store %arg11[%c6_57, %c32_58], %211 {strides = array<i32>} : memref<16x64xf32, #tpu.memory_space<vmem>>, vector<2x32xf32>,
    %213 = vector.extract_strided_slice %49 {offsets = [10, 0], sizes = [2, 256], strides = [1, 1]} : vector<16x256xf32> to vector<2x256xf32>
    %214 = vector.extract_strided_slice %49 {offsets = [4, 0], sizes = [2, 256], strides = [1, 1]} : vector<16x256xf32> to vector<2x256xf32>
    %215 = vector.shape_cast %18 : vector<1x256xi1> to vector<1x256xi1>
    %216 = vector.broadcast %215 : vector<1x256xi1> to vector<2x256xi1>
    %217 = arith.select %216, %213, %214 : vector<2x256xi1>, vector<2x256xf32>
    %218 = arith.truncf %207 : vector<2x64xf32> to vector<2x64xbf16>
    %cst_59 = arith.constant dense<0.000000e+00> : vector<2x256xf32>
    %219 = tpu.matmul %218, %50, %cst_59 {dimension_numbers = #tpu.dot_dimension_numbers<[1], [0], [0], [1], [0, 0, 1, 1], [], []>} : vector<2x64xbf16>, vector<64x256xbf16>, vector<2x256xf32> -> vector<2x256xf32>
    %220 = arith.addf %217, %219 : vector<2x256xf32>
    %cst_60 = arith.constant 5.000000e-01 : f32
    %221 = vector.broadcast %cst_60 : f32 to vector<2x256xf32>
    %222 = arith.mulf %221, %220 : vector<2x256xf32>
    %223 = math.tanh %222 : vector<2x256xf32>
    %cst_61 = arith.constant 5.000000e-01 : f32
    %224 = vector.broadcast %cst_61 : f32 to vector<2x256xf32>
    %225 = arith.mulf %224, %223 : vector<2x256xf32>
    %cst_62 = arith.constant 5.000000e-01 : f32
    %226 = vector.broadcast %cst_62 : f32 to vector<2x256xf32>
    %227 = arith.addf %225, %226 : vector<2x256xf32>
    %228 = vector.extract_strided_slice %227 {offsets = [0, 0], sizes = [2, 64], strides = [1, 1]} : vector<2x256xf32> to vector<2x64xf32>
    %229 = vector.extract_strided_slice %227 {offsets = [0, 64], sizes = [2, 64], strides = [1, 1]} : vector<2x256xf32> to vector<2x64xf32>
    %230 = vector.extract_strided_slice %223 {offsets = [0, 128], sizes = [2, 64], strides = [1, 1]} : vector<2x256xf32> to vector<2x64xf32>
    %231 = vector.extract_strided_slice %227 {offsets = [0, 192], sizes = [2, 64], strides = [1, 1]} : vector<2x256xf32> to vector<2x64xf32>
    %232 = arith.mulf %229, %208 : vector<2x64xf32>
    %233 = arith.mulf %228, %230 : vector<2x64xf32>
    %234 = arith.addf %232, %233 : vector<2x64xf32>
    %235 = math.tanh %234 : vector<2x64xf32>
    %236 = arith.mulf %231, %235 : vector<2x64xf32>
    %cst_63 = arith.constant 0.000000e+00 : f32
    %237 = vector.broadcast %cst_63 : f32 to vector<2x64xf32>
    %238 = arith.select %37, %236, %237 : vector<2x64xi1>, vector<2x64xf32>
    %239 = arith.select %37, %236, %207 : vector<2x64xi1>, vector<2x64xf32>
    %240 = arith.select %37, %234, %208 : vector<2x64xi1>, vector<2x64xf32>
    %241 = vector.extract_strided_slice %238 {offsets = [0, 0], sizes = [2, 32], strides = [1, 1]} : vector<2x64xf32> to vector<2x32xf32>
    %c10_64 = arith.constant 10 : index
    %c0_65 = arith.constant 0 : index
    %242 = vector.load %arg11[%c10_64, %c0_65] : memref<16x64xf32, #tpu.memory_space<vmem>>, vector<2x32xf32>
    tpu.vector_store %arg11[%c10_64, %c0_65], %241 {strides = array<i32>} : memref<16x64xf32, #tpu.memory_space<vmem>>, vector<2x32xf32>,
    %243 = vector.extract_strided_slice %238 {offsets = [0, 32], sizes = [2, 32], strides = [1, 1]} : vector<2x64xf32> to vector<2x32xf32>
    %c4_66 = arith.constant 4 : index
    %c32_67 = arith.constant 32 : index
    %244 = vector.load %arg11[%c4_66, %c32_67] : memref<16x64xf32, #tpu.memory_space<vmem>>, vector<2x32xf32>
    tpu.vector_store %arg11[%c4_66, %c32_67], %243 {strides = array<i32>} : memref<16x64xf32, #tpu.memory_space<vmem>>, vector<2x32xf32>,
    %245 = vector.extract_strided_slice %49 {offsets = [12, 0], sizes = [2, 256], strides = [1, 1]} : vector<16x256xf32> to vector<2x256xf32>
    %246 = vector.extract_strided_slice %49 {offsets = [2, 0], sizes = [2, 256], strides = [1, 1]} : vector<16x256xf32> to vector<2x256xf32>
    %247 = vector.shape_cast %18 : vector<1x256xi1> to vector<1x256xi1>
    %248 = vector.broadcast %247 : vector<1x256xi1> to vector<2x256xi1>
    %249 = arith.select %248, %245, %246 : vector<2x256xi1>, vector<2x256xf32>
    %250 = arith.truncf %239 : vector<2x64xf32> to vector<2x64xbf16>
    %cst_68 = arith.constant dense<0.000000e+00> : vector<2x256xf32>
    %251 = tpu.matmul %250, %50, %cst_68 {dimension_numbers = #tpu.dot_dimension_numbers<[1], [0], [0], [1], [0, 0, 1, 1], [], []>} : vector<2x64xbf16>, vector<64x256xbf16>, vector<2x256xf32> -> vector<2x256xf32>
    %252 = arith.addf %249, %251 : vector<2x256xf32>
    %cst_69 = arith.constant 5.000000e-01 : f32
    %253 = vector.broadcast %cst_69 : f32 to vector<2x256xf32>
    %254 = arith.mulf %253, %252 : vector<2x256xf32>
    %255 = math.tanh %254 : vector<2x256xf32>
    %cst_70 = arith.constant 5.000000e-01 : f32
    %256 = vector.broadcast %cst_70 : f32 to vector<2x256xf32>
    %257 = arith.mulf %256, %255 : vector<2x256xf32>
    %cst_71 = arith.constant 5.000000e-01 : f32
    %258 = vector.broadcast %cst_71 : f32 to vector<2x256xf32>
    %259 = arith.addf %257, %258 : vector<2x256xf32>
    %260 = vector.extract_strided_slice %259 {offsets = [0, 0], sizes = [2, 64], strides = [1, 1]} : vector<2x256xf32> to vector<2x64xf32>
    %261 = vector.extract_strided_slice %259 {offsets = [0, 64], sizes = [2, 64], strides = [1, 1]} : vector<2x256xf32> to vector<2x64xf32>
    %262 = vector.extract_strided_slice %255 {offsets = [0, 128], sizes = [2, 64], strides = [1, 1]} : vector<2x256xf32> to vector<2x64xf32>
    %263 = vector.extract_strided_slice %259 {offsets = [0, 192], sizes = [2, 64], strides = [1, 1]} : vector<2x256xf32> to vector<2x64xf32>
    %264 = arith.mulf %261, %240 : vector<2x64xf32>
    %265 = arith.mulf %260, %262 : vector<2x64xf32>
    %266 = arith.addf %264, %265 : vector<2x64xf32>
    %267 = math.tanh %266 : vector<2x64xf32>
    %268 = arith.mulf %263, %267 : vector<2x64xf32>
    %cst_72 = arith.constant 0.000000e+00 : f32
    %269 = vector.broadcast %cst_72 : f32 to vector<2x64xf32>
    %270 = arith.select %40, %268, %269 : vector<2x64xi1>, vector<2x64xf32>
    %271 = arith.select %40, %268, %239 : vector<2x64xi1>, vector<2x64xf32>
    %272 = arith.select %40, %266, %240 : vector<2x64xi1>, vector<2x64xf32>
    %273 = vector.extract_strided_slice %270 {offsets = [0, 0], sizes = [2, 32], strides = [1, 1]} : vector<2x64xf32> to vector<2x32xf32>
    %c12_73 = arith.constant 12 : index
    %c0_74 = arith.constant 0 : index
    %274 = vector.load %arg11[%c12_73, %c0_74] : memref<16x64xf32, #tpu.memory_space<vmem>>, vector<2x32xf32>
    tpu.vector_store %arg11[%c12_73, %c0_74], %273 {strides = array<i32>} : memref<16x64xf32, #tpu.memory_space<vmem>>, vector<2x32xf32>,
    %275 = vector.extract_strided_slice %270 {offsets = [0, 32], sizes = [2, 32], strides = [1, 1]} : vector<2x64xf32> to vector<2x32xf32>
    %c2_75 = arith.constant 2 : index
    %c32_76 = arith.constant 32 : index
    %276 = vector.load %arg11[%c2_75, %c32_76] : memref<16x64xf32, #tpu.memory_space<vmem>>, vector<2x32xf32>
    tpu.vector_store %arg11[%c2_75, %c32_76], %275 {strides = array<i32>} : memref<16x64xf32, #tpu.memory_space<vmem>>, vector<2x32xf32>,
    %277 = vector.extract_strided_slice %49 {offsets = [14, 0], sizes = [2, 256], strides = [1, 1]} : vector<16x256xf32> to vector<2x256xf32>
    %278 = vector.extract_strided_slice %49 {offsets = [0, 0], sizes = [2, 256], strides = [1, 1]} : vector<16x256xf32> to vector<2x256xf32>
    %279 = vector.shape_cast %18 : vector<1x256xi1> to vector<1x256xi1>
    %280 = vector.broadcast %279 : vector<1x256xi1> to vector<2x256xi1>
    %281 = arith.select %280, %277, %278 : vector<2x256xi1>, vector<2x256xf32>
    %282 = arith.truncf %271 : vector<2x64xf32> to vector<2x64xbf16>
    %cst_77 = arith.constant dense<0.000000e+00> : vector<2x256xf32>
    %283 = tpu.matmul %282, %50, %cst_77 {dimension_numbers = #tpu.dot_dimension_numbers<[1], [0], [0], [1], [0, 0, 1, 1], [], []>} : vector<2x64xbf16>, vector<64x256xbf16>, vector<2x256xf32> -> vector<2x256xf32>
    %284 = arith.addf %281, %283 : vector<2x256xf32>
    %cst_78 = arith.constant 5.000000e-01 : f32
    %285 = vector.broadcast %cst_78 : f32 to vector<2x256xf32>
    %286 = arith.mulf %285, %284 : vector<2x256xf32>
    %287 = math.tanh %286 : vector<2x256xf32>
    %cst_79 = arith.constant 5.000000e-01 : f32
    %288 = vector.broadcast %cst_79 : f32 to vector<2x256xf32>
    %289 = arith.mulf %288, %287 : vector<2x256xf32>
    %cst_80 = arith.constant 5.000000e-01 : f32
    %290 = vector.broadcast %cst_80 : f32 to vector<2x256xf32>
    %291 = arith.addf %289, %290 : vector<2x256xf32>
    %292 = vector.extract_strided_slice %291 {offsets = [0, 0], sizes = [2, 64], strides = [1, 1]} : vector<2x256xf32> to vector<2x64xf32>
    %293 = vector.extract_strided_slice %291 {offsets = [0, 64], sizes = [2, 64], strides = [1, 1]} : vector<2x256xf32> to vector<2x64xf32>
    %294 = vector.extract_strided_slice %287 {offsets = [0, 128], sizes = [2, 64], strides = [1, 1]} : vector<2x256xf32> to vector<2x64xf32>
    %295 = vector.extract_strided_slice %291 {offsets = [0, 192], sizes = [2, 64], strides = [1, 1]} : vector<2x256xf32> to vector<2x64xf32>
    %296 = arith.mulf %293, %272 : vector<2x64xf32>
    %297 = arith.mulf %292, %294 : vector<2x64xf32>
    %298 = arith.addf %296, %297 : vector<2x64xf32>
    %299 = math.tanh %298 : vector<2x64xf32>
    %300 = arith.mulf %295, %299 : vector<2x64xf32>
    %cst_81 = arith.constant 0.000000e+00 : f32
    %301 = vector.broadcast %cst_81 : f32 to vector<2x64xf32>
    %302 = arith.select %43, %300, %301 : vector<2x64xi1>, vector<2x64xf32>
    %303 = vector.extract_strided_slice %302 {offsets = [0, 0], sizes = [2, 32], strides = [1, 1]} : vector<2x64xf32> to vector<2x32xf32>
    %c14_82 = arith.constant 14 : index
    %c0_83 = arith.constant 0 : index
    %304 = vector.load %arg11[%c14_82, %c0_83] : memref<16x64xf32, #tpu.memory_space<vmem>>, vector<2x32xf32>
    tpu.vector_store %arg11[%c14_82, %c0_83], %303 {strides = array<i32>} : memref<16x64xf32, #tpu.memory_space<vmem>>, vector<2x32xf32>,
    %305 = vector.extract_strided_slice %302 {offsets = [0, 32], sizes = [2, 32], strides = [1, 1]} : vector<2x64xf32> to vector<2x32xf32>
    %c0_84 = arith.constant 0 : index
    %c32_85 = arith.constant 32 : index
    %306 = vector.load %arg11[%c0_84, %c32_85] : memref<16x64xf32, #tpu.memory_space<vmem>>, vector<2x32xf32>
    tpu.vector_store %arg11[%c0_84, %c32_85], %305 {strides = array<i32>} : memref<16x64xf32, #tpu.memory_space<vmem>>, vector<2x32xf32>,
    %c0_86 = arith.constant 0 : index
    %c0_87 = arith.constant 0 : index
    %307 = vector.load %arg11[%c0_86, %c0_87] : memref<16x64xf32, #tpu.memory_space<vmem>>, vector<16x64xf32>
    %308 = arith.truncf %307 : vector<16x64xf32> to vector<16x64xbf16>
    %c0_88 = arith.constant 0 : index
    %c0_89 = arith.constant 0 : index
    %309 = vector.load %arg5[%c0_88, %c0_89] : memref<64x256xbf16, #tpu.memory_space<vmem>>, vector<64x256xbf16>
    %cst_90 = arith.constant dense<0.000000e+00> : vector<16x256xf32>
    %310 = tpu.matmul %308, %309, %cst_90 {dimension_numbers = #tpu.dot_dimension_numbers<[1], [0], [0], [1], [0, 0, 1, 1], [], []>} : vector<16x64xbf16>, vector<64x256xbf16>, vector<16x256xf32> -> vector<16x256xf32>
    %c0_91 = arith.constant 0 : index
    %c0_92 = arith.constant 0 : index
    %311 = vector.load %arg7[%c0_91, %c0_92] : memref<1x256xf32, #tpu.memory_space<vmem>>, vector<1x256xf32>
    %312 = vector.broadcast %311 : vector<1x256xf32> to vector<16x256xf32>
    %313 = arith.addf %310, %312 : vector<16x256xf32>
    %c0_93 = arith.constant 0 : index
    %c0_94 = arith.constant 0 : index
    %314 = vector.load %arg6[%c0_93, %c0_94] : memref<64x256xbf16, #tpu.memory_space<vmem>>, vector<64x256xbf16>
    %cst_95 = arith.constant 0.000000e+00 : f32
    %315 = vector.broadcast %cst_95 : f32 to vector<2x64xf32>
    %cst_96 = arith.constant 0.000000e+00 : f32
    %316 = vector.broadcast %cst_96 : f32 to vector<2x64xf32>
    %317 = vector.extract_strided_slice %313 {offsets = [0, 0], sizes = [2, 256], strides = [1, 1]} : vector<16x256xf32> to vector<2x256xf32>
    %318 = vector.extract_strided_slice %313 {offsets = [14, 0], sizes = [2, 256], strides = [1, 1]} : vector<16x256xf32> to vector<2x256xf32>
    %319 = vector.shape_cast %18 : vector<1x256xi1> to vector<1x256xi1>
    %320 = vector.broadcast %319 : vector<1x256xi1> to vector<2x256xi1>
    %321 = arith.select %320, %317, %318 : vector<2x256xi1>, vector<2x256xf32>
    %322 = arith.truncf %315 : vector<2x64xf32> to vector<2x64xbf16>
    %cst_97 = arith.constant dense<0.000000e+00> : vector<2x256xf32>
    %323 = tpu.matmul %322, %314, %cst_97 {dimension_numbers = #tpu.dot_dimension_numbers<[1], [0], [0], [1], [0, 0, 1, 1], [], []>} : vector<2x64xbf16>, vector<64x256xbf16>, vector<2x256xf32> -> vector<2x256xf32>
    %324 = arith.addf %321, %323 : vector<2x256xf32>
    %cst_98 = arith.constant 5.000000e-01 : f32
    %325 = vector.broadcast %cst_98 : f32 to vector<2x256xf32>
    %326 = arith.mulf %325, %324 : vector<2x256xf32>
    %327 = math.tanh %326 : vector<2x256xf32>
    %cst_99 = arith.constant 5.000000e-01 : f32
    %328 = vector.broadcast %cst_99 : f32 to vector<2x256xf32>
    %329 = arith.mulf %328, %327 : vector<2x256xf32>
    %cst_100 = arith.constant 5.000000e-01 : f32
    %330 = vector.broadcast %cst_100 : f32 to vector<2x256xf32>
    %331 = arith.addf %329, %330 : vector<2x256xf32>
    %332 = vector.extract_strided_slice %331 {offsets = [0, 0], sizes = [2, 64], strides = [1, 1]} : vector<2x256xf32> to vector<2x64xf32>
    %333 = vector.extract_strided_slice %331 {offsets = [0, 64], sizes = [2, 64], strides = [1, 1]} : vector<2x256xf32> to vector<2x64xf32>
    %334 = vector.extract_strided_slice %327 {offsets = [0, 128], sizes = [2, 64], strides = [1, 1]} : vector<2x256xf32> to vector<2x64xf32>
    %335 = vector.extract_strided_slice %331 {offsets = [0, 192], sizes = [2, 64], strides = [1, 1]} : vector<2x256xf32> to vector<2x64xf32>
    %336 = arith.mulf %333, %316 : vector<2x64xf32>
    %337 = arith.mulf %332, %334 : vector<2x64xf32>
    %338 = arith.addf %336, %337 : vector<2x64xf32>
    %339 = math.tanh %338 : vector<2x64xf32>
    %340 = arith.mulf %335, %339 : vector<2x64xf32>
    %cst_101 = arith.constant 0.000000e+00 : f32
    %341 = vector.broadcast %cst_101 : f32 to vector<2x64xf32>
    %342 = arith.select %22, %340, %341 : vector<2x64xi1>, vector<2x64xf32>
    %343 = arith.select %22, %340, %315 : vector<2x64xi1>, vector<2x64xf32>
    %344 = arith.select %22, %338, %316 : vector<2x64xi1>, vector<2x64xf32>
    %345 = vector.extract_strided_slice %342 {offsets = [0, 0], sizes = [2, 32], strides = [1, 1]} : vector<2x64xf32> to vector<2x32xf32>
    %c0_102 = arith.constant 0 : index
    %c0_103 = arith.constant 0 : index
    %346 = vector.load %arg12[%c0_102, %c0_103] : memref<16x64xf32, #tpu.memory_space<vmem>>, vector<2x32xf32>
    tpu.vector_store %arg12[%c0_102, %c0_103], %345 {strides = array<i32>} : memref<16x64xf32, #tpu.memory_space<vmem>>, vector<2x32xf32>,
    %347 = vector.extract_strided_slice %342 {offsets = [0, 32], sizes = [2, 32], strides = [1, 1]} : vector<2x64xf32> to vector<2x32xf32>
    %c14_104 = arith.constant 14 : index
    %c32_105 = arith.constant 32 : index
    %348 = vector.load %arg12[%c14_104, %c32_105] : memref<16x64xf32, #tpu.memory_space<vmem>>, vector<2x32xf32>
    tpu.vector_store %arg12[%c14_104, %c32_105], %347 {strides = array<i32>} : memref<16x64xf32, #tpu.memory_space<vmem>>, vector<2x32xf32>,
    %349 = vector.extract_strided_slice %313 {offsets = [2, 0], sizes = [2, 256], strides = [1, 1]} : vector<16x256xf32> to vector<2x256xf32>
    %350 = vector.extract_strided_slice %313 {offsets = [12, 0], sizes = [2, 256], strides = [1, 1]} : vector<16x256xf32> to vector<2x256xf32>
    %351 = vector.shape_cast %18 : vector<1x256xi1> to vector<1x256xi1>
    %352 = vector.broadcast %351 : vector<1x256xi1> to vector<2x256xi1>
    %353 = arith.select %352, %349, %350 : vector<2x256xi1>, vector<2x256xf32>
    %354 = arith.truncf %343 : vector<2x64xf32> to vector<2x64xbf16>
    %cst_106 = arith.constant dense<0.000000e+00> : vector<2x256xf32>
    %355 = tpu.matmul %354, %314, %cst_106 {dimension_numbers = #tpu.dot_dimension_numbers<[1], [0], [0], [1], [0, 0, 1, 1], [], []>} : vector<2x64xbf16>, vector<64x256xbf16>, vector<2x256xf32> -> vector<2x256xf32>
    %356 = arith.addf %353, %355 : vector<2x256xf32>
    %cst_107 = arith.constant 5.000000e-01 : f32
    %357 = vector.broadcast %cst_107 : f32 to vector<2x256xf32>
    %358 = arith.mulf %357, %356 : vector<2x256xf32>
    %359 = math.tanh %358 : vector<2x256xf32>
    %cst_108 = arith.constant 5.000000e-01 : f32
    %360 = vector.broadcast %cst_108 : f32 to vector<2x256xf32>
    %361 = arith.mulf %360, %359 : vector<2x256xf32>
    %cst_109 = arith.constant 5.000000e-01 : f32
    %362 = vector.broadcast %cst_109 : f32 to vector<2x256xf32>
    %363 = arith.addf %361, %362 : vector<2x256xf32>
    %364 = vector.extract_strided_slice %363 {offsets = [0, 0], sizes = [2, 64], strides = [1, 1]} : vector<2x256xf32> to vector<2x64xf32>
    %365 = vector.extract_strided_slice %363 {offsets = [0, 64], sizes = [2, 64], strides = [1, 1]} : vector<2x256xf32> to vector<2x64xf32>
    %366 = vector.extract_strided_slice %359 {offsets = [0, 128], sizes = [2, 64], strides = [1, 1]} : vector<2x256xf32> to vector<2x64xf32>
    %367 = vector.extract_strided_slice %363 {offsets = [0, 192], sizes = [2, 64], strides = [1, 1]} : vector<2x256xf32> to vector<2x64xf32>
    %368 = arith.mulf %365, %344 : vector<2x64xf32>
    %369 = arith.mulf %364, %366 : vector<2x64xf32>
    %370 = arith.addf %368, %369 : vector<2x64xf32>
    %371 = math.tanh %370 : vector<2x64xf32>
    %372 = arith.mulf %367, %371 : vector<2x64xf32>
    %cst_110 = arith.constant 0.000000e+00 : f32
    %373 = vector.broadcast %cst_110 : f32 to vector<2x64xf32>
    %374 = arith.select %25, %372, %373 : vector<2x64xi1>, vector<2x64xf32>
    %375 = arith.select %25, %372, %343 : vector<2x64xi1>, vector<2x64xf32>
    %376 = arith.select %25, %370, %344 : vector<2x64xi1>, vector<2x64xf32>
    %377 = vector.extract_strided_slice %374 {offsets = [0, 0], sizes = [2, 32], strides = [1, 1]} : vector<2x64xf32> to vector<2x32xf32>
    %c2_111 = arith.constant 2 : index
    %c0_112 = arith.constant 0 : index
    %378 = vector.load %arg12[%c2_111, %c0_112] : memref<16x64xf32, #tpu.memory_space<vmem>>, vector<2x32xf32>
    tpu.vector_store %arg12[%c2_111, %c0_112], %377 {strides = array<i32>} : memref<16x64xf32, #tpu.memory_space<vmem>>, vector<2x32xf32>,
    %379 = vector.extract_strided_slice %374 {offsets = [0, 32], sizes = [2, 32], strides = [1, 1]} : vector<2x64xf32> to vector<2x32xf32>
    %c12_113 = arith.constant 12 : index
    %c32_114 = arith.constant 32 : index
    %380 = vector.load %arg12[%c12_113, %c32_114] : memref<16x64xf32, #tpu.memory_space<vmem>>, vector<2x32xf32>
    tpu.vector_store %arg12[%c12_113, %c32_114], %379 {strides = array<i32>} : memref<16x64xf32, #tpu.memory_space<vmem>>, vector<2x32xf32>,
    %381 = vector.extract_strided_slice %313 {offsets = [4, 0], sizes = [2, 256], strides = [1, 1]} : vector<16x256xf32> to vector<2x256xf32>
    %382 = vector.extract_strided_slice %313 {offsets = [10, 0], sizes = [2, 256], strides = [1, 1]} : vector<16x256xf32> to vector<2x256xf32>
    %383 = vector.shape_cast %18 : vector<1x256xi1> to vector<1x256xi1>
    %384 = vector.broadcast %383 : vector<1x256xi1> to vector<2x256xi1>
    %385 = arith.select %384, %381, %382 : vector<2x256xi1>, vector<2x256xf32>
    %386 = arith.truncf %375 : vector<2x64xf32> to vector<2x64xbf16>
    %cst_115 = arith.constant dense<0.000000e+00> : vector<2x256xf32>
    %387 = tpu.matmul %386, %314, %cst_115 {dimension_numbers = #tpu.dot_dimension_numbers<[1], [0], [0], [1], [0, 0, 1, 1], [], []>} : vector<2x64xbf16>, vector<64x256xbf16>, vector<2x256xf32> -> vector<2x256xf32>
    %388 = arith.addf %385, %387 : vector<2x256xf32>
    %cst_116 = arith.constant 5.000000e-01 : f32
    %389 = vector.broadcast %cst_116 : f32 to vector<2x256xf32>
    %390 = arith.mulf %389, %388 : vector<2x256xf32>
    %391 = math.tanh %390 : vector<2x256xf32>
    %cst_117 = arith.constant 5.000000e-01 : f32
    %392 = vector.broadcast %cst_117 : f32 to vector<2x256xf32>
    %393 = arith.mulf %392, %391 : vector<2x256xf32>
    %cst_118 = arith.constant 5.000000e-01 : f32
    %394 = vector.broadcast %cst_118 : f32 to vector<2x256xf32>
    %395 = arith.addf %393, %394 : vector<2x256xf32>
    %396 = vector.extract_strided_slice %395 {offsets = [0, 0], sizes = [2, 64], strides = [1, 1]} : vector<2x256xf32> to vector<2x64xf32>
    %397 = vector.extract_strided_slice %395 {offsets = [0, 64], sizes = [2, 64], strides = [1, 1]} : vector<2x256xf32> to vector<2x64xf32>
    %398 = vector.extract_strided_slice %391 {offsets = [0, 128], sizes = [2, 64], strides = [1, 1]} : vector<2x256xf32> to vector<2x64xf32>
    %399 = vector.extract_strided_slice %395 {offsets = [0, 192], sizes = [2, 64], strides = [1, 1]} : vector<2x256xf32> to vector<2x64xf32>
    %400 = arith.mulf %397, %376 : vector<2x64xf32>
    %401 = arith.mulf %396, %398 : vector<2x64xf32>
    %402 = arith.addf %400, %401 : vector<2x64xf32>
    %403 = math.tanh %402 : vector<2x64xf32>
    %404 = arith.mulf %399, %403 : vector<2x64xf32>
    %cst_119 = arith.constant 0.000000e+00 : f32
    %405 = vector.broadcast %cst_119 : f32 to vector<2x64xf32>
    %406 = arith.select %28, %404, %405 : vector<2x64xi1>, vector<2x64xf32>
    %407 = arith.select %28, %404, %375 : vector<2x64xi1>, vector<2x64xf32>
    %408 = arith.select %28, %402, %376 : vector<2x64xi1>, vector<2x64xf32>
    %409 = vector.extract_strided_slice %406 {offsets = [0, 0], sizes = [2, 32], strides = [1, 1]} : vector<2x64xf32> to vector<2x32xf32>
    %c4_120 = arith.constant 4 : index
    %c0_121 = arith.constant 0 : index
    %410 = vector.load %arg12[%c4_120, %c0_121] : memref<16x64xf32, #tpu.memory_space<vmem>>, vector<2x32xf32>
    tpu.vector_store %arg12[%c4_120, %c0_121], %409 {strides = array<i32>} : memref<16x64xf32, #tpu.memory_space<vmem>>, vector<2x32xf32>,
    %411 = vector.extract_strided_slice %406 {offsets = [0, 32], sizes = [2, 32], strides = [1, 1]} : vector<2x64xf32> to vector<2x32xf32>
    %c10_122 = arith.constant 10 : index
    %c32_123 = arith.constant 32 : index
    %412 = vector.load %arg12[%c10_122, %c32_123] : memref<16x64xf32, #tpu.memory_space<vmem>>, vector<2x32xf32>
    tpu.vector_store %arg12[%c10_122, %c32_123], %411 {strides = array<i32>} : memref<16x64xf32, #tpu.memory_space<vmem>>, vector<2x32xf32>,
    %413 = vector.extract_strided_slice %313 {offsets = [6, 0], sizes = [2, 256], strides = [1, 1]} : vector<16x256xf32> to vector<2x256xf32>
    %414 = vector.extract_strided_slice %313 {offsets = [8, 0], sizes = [2, 256], strides = [1, 1]} : vector<16x256xf32> to vector<2x256xf32>
    %415 = vector.shape_cast %18 : vector<1x256xi1> to vector<1x256xi1>
    %416 = vector.broadcast %415 : vector<1x256xi1> to vector<2x256xi1>
    %417 = arith.select %416, %413, %414 : vector<2x256xi1>, vector<2x256xf32>
    %418 = arith.truncf %407 : vector<2x64xf32> to vector<2x64xbf16>
    %cst_124 = arith.constant dense<0.000000e+00> : vector<2x256xf32>
    %419 = tpu.matmul %418, %314, %cst_124 {dimension_numbers = #tpu.dot_dimension_numbers<[1], [0], [0], [1], [0, 0, 1, 1], [], []>} : vector<2x64xbf16>, vector<64x256xbf16>, vector<2x256xf32> -> vector<2x256xf32>
    %420 = arith.addf %417, %419 : vector<2x256xf32>
    %cst_125 = arith.constant 5.000000e-01 : f32
    %421 = vector.broadcast %cst_125 : f32 to vector<2x256xf32>
    %422 = arith.mulf %421, %420 : vector<2x256xf32>
    %423 = math.tanh %422 : vector<2x256xf32>
    %cst_126 = arith.constant 5.000000e-01 : f32
    %424 = vector.broadcast %cst_126 : f32 to vector<2x256xf32>
    %425 = arith.mulf %424, %423 : vector<2x256xf32>
    %cst_127 = arith.constant 5.000000e-01 : f32
    %426 = vector.broadcast %cst_127 : f32 to vector<2x256xf32>
    %427 = arith.addf %425, %426 : vector<2x256xf32>
    %428 = vector.extract_strided_slice %427 {offsets = [0, 0], sizes = [2, 64], strides = [1, 1]} : vector<2x256xf32> to vector<2x64xf32>
    %429 = vector.extract_strided_slice %427 {offsets = [0, 64], sizes = [2, 64], strides = [1, 1]} : vector<2x256xf32> to vector<2x64xf32>
    %430 = vector.extract_strided_slice %423 {offsets = [0, 128], sizes = [2, 64], strides = [1, 1]} : vector<2x256xf32> to vector<2x64xf32>
    %431 = vector.extract_strided_slice %427 {offsets = [0, 192], sizes = [2, 64], strides = [1, 1]} : vector<2x256xf32> to vector<2x64xf32>
    %432 = arith.mulf %429, %408 : vector<2x64xf32>
    %433 = arith.mulf %428, %430 : vector<2x64xf32>
    %434 = arith.addf %432, %433 : vector<2x64xf32>
    %435 = math.tanh %434 : vector<2x64xf32>
    %436 = arith.mulf %431, %435 : vector<2x64xf32>
    %cst_128 = arith.constant 0.000000e+00 : f32
    %437 = vector.broadcast %cst_128 : f32 to vector<2x64xf32>
    %438 = arith.select %31, %436, %437 : vector<2x64xi1>, vector<2x64xf32>
    %439 = arith.select %31, %436, %407 : vector<2x64xi1>, vector<2x64xf32>
    %440 = arith.select %31, %434, %408 : vector<2x64xi1>, vector<2x64xf32>
    %441 = vector.extract_strided_slice %438 {offsets = [0, 0], sizes = [2, 32], strides = [1, 1]} : vector<2x64xf32> to vector<2x32xf32>
    %c6_129 = arith.constant 6 : index
    %c0_130 = arith.constant 0 : index
    %442 = vector.load %arg12[%c6_129, %c0_130] : memref<16x64xf32, #tpu.memory_space<vmem>>, vector<2x32xf32>
    tpu.vector_store %arg12[%c6_129, %c0_130], %441 {strides = array<i32>} : memref<16x64xf32, #tpu.memory_space<vmem>>, vector<2x32xf32>,
    %443 = vector.extract_strided_slice %438 {offsets = [0, 32], sizes = [2, 32], strides = [1, 1]} : vector<2x64xf32> to vector<2x32xf32>
    %c8_131 = arith.constant 8 : index
    %c32_132 = arith.constant 32 : index
    %444 = vector.load %arg12[%c8_131, %c32_132] : memref<16x64xf32, #tpu.memory_space<vmem>>, vector<2x32xf32>
    tpu.vector_store %arg12[%c8_131, %c32_132], %443 {strides = array<i32>} : memref<16x64xf32, #tpu.memory_space<vmem>>, vector<2x32xf32>,
    %445 = vector.extract_strided_slice %313 {offsets = [8, 0], sizes = [2, 256], strides = [1, 1]} : vector<16x256xf32> to vector<2x256xf32>
    %446 = vector.extract_strided_slice %313 {offsets = [6, 0], sizes = [2, 256], strides = [1, 1]} : vector<16x256xf32> to vector<2x256xf32>
    %447 = vector.shape_cast %18 : vector<1x256xi1> to vector<1x256xi1>
    %448 = vector.broadcast %447 : vector<1x256xi1> to vector<2x256xi1>
    %449 = arith.select %448, %445, %446 : vector<2x256xi1>, vector<2x256xf32>
    %450 = arith.truncf %439 : vector<2x64xf32> to vector<2x64xbf16>
    %cst_133 = arith.constant dense<0.000000e+00> : vector<2x256xf32>
    %451 = tpu.matmul %450, %314, %cst_133 {dimension_numbers = #tpu.dot_dimension_numbers<[1], [0], [0], [1], [0, 0, 1, 1], [], []>} : vector<2x64xbf16>, vector<64x256xbf16>, vector<2x256xf32> -> vector<2x256xf32>
    %452 = arith.addf %449, %451 : vector<2x256xf32>
    %cst_134 = arith.constant 5.000000e-01 : f32
    %453 = vector.broadcast %cst_134 : f32 to vector<2x256xf32>
    %454 = arith.mulf %453, %452 : vector<2x256xf32>
    %455 = math.tanh %454 : vector<2x256xf32>
    %cst_135 = arith.constant 5.000000e-01 : f32
    %456 = vector.broadcast %cst_135 : f32 to vector<2x256xf32>
    %457 = arith.mulf %456, %455 : vector<2x256xf32>
    %cst_136 = arith.constant 5.000000e-01 : f32
    %458 = vector.broadcast %cst_136 : f32 to vector<2x256xf32>
    %459 = arith.addf %457, %458 : vector<2x256xf32>
    %460 = vector.extract_strided_slice %459 {offsets = [0, 0], sizes = [2, 64], strides = [1, 1]} : vector<2x256xf32> to vector<2x64xf32>
    %461 = vector.extract_strided_slice %459 {offsets = [0, 64], sizes = [2, 64], strides = [1, 1]} : vector<2x256xf32> to vector<2x64xf32>
    %462 = vector.extract_strided_slice %455 {offsets = [0, 128], sizes = [2, 64], strides = [1, 1]} : vector<2x256xf32> to vector<2x64xf32>
    %463 = vector.extract_strided_slice %459 {offsets = [0, 192], sizes = [2, 64], strides = [1, 1]} : vector<2x256xf32> to vector<2x64xf32>
    %464 = arith.mulf %461, %440 : vector<2x64xf32>
    %465 = arith.mulf %460, %462 : vector<2x64xf32>
    %466 = arith.addf %464, %465 : vector<2x64xf32>
    %467 = math.tanh %466 : vector<2x64xf32>
    %468 = arith.mulf %463, %467 : vector<2x64xf32>
    %cst_137 = arith.constant 0.000000e+00 : f32
    %469 = vector.broadcast %cst_137 : f32 to vector<2x64xf32>
    %470 = arith.select %34, %468, %469 : vector<2x64xi1>, vector<2x64xf32>
    %471 = arith.select %34, %468, %439 : vector<2x64xi1>, vector<2x64xf32>
    %472 = arith.select %34, %466, %440 : vector<2x64xi1>, vector<2x64xf32>
    %473 = vector.extract_strided_slice %470 {offsets = [0, 0], sizes = [2, 32], strides = [1, 1]} : vector<2x64xf32> to vector<2x32xf32>
    %c8_138 = arith.constant 8 : index
    %c0_139 = arith.constant 0 : index
    %474 = vector.load %arg12[%c8_138, %c0_139] : memref<16x64xf32, #tpu.memory_space<vmem>>, vector<2x32xf32>
    tpu.vector_store %arg12[%c8_138, %c0_139], %473 {strides = array<i32>} : memref<16x64xf32, #tpu.memory_space<vmem>>, vector<2x32xf32>,
    %475 = vector.extract_strided_slice %470 {offsets = [0, 32], sizes = [2, 32], strides = [1, 1]} : vector<2x64xf32> to vector<2x32xf32>
    %c6_140 = arith.constant 6 : index
    %c32_141 = arith.constant 32 : index
    %476 = vector.load %arg12[%c6_140, %c32_141] : memref<16x64xf32, #tpu.memory_space<vmem>>, vector<2x32xf32>
    tpu.vector_store %arg12[%c6_140, %c32_141], %475 {strides = array<i32>} : memref<16x64xf32, #tpu.memory_space<vmem>>, vector<2x32xf32>,
    %477 = vector.extract_strided_slice %313 {offsets = [10, 0], sizes = [2, 256], strides = [1, 1]} : vector<16x256xf32> to vector<2x256xf32>
    %478 = vector.extract_strided_slice %313 {offsets = [4, 0], sizes = [2, 256], strides = [1, 1]} : vector<16x256xf32> to vector<2x256xf32>
    %479 = vector.shape_cast %18 : vector<1x256xi1> to vector<1x256xi1>
    %480 = vector.broadcast %479 : vector<1x256xi1> to vector<2x256xi1>
    %481 = arith.select %480, %477, %478 : vector<2x256xi1>, vector<2x256xf32>
    %482 = arith.truncf %471 : vector<2x64xf32> to vector<2x64xbf16>
    %cst_142 = arith.constant dense<0.000000e+00> : vector<2x256xf32>
    %483 = tpu.matmul %482, %314, %cst_142 {dimension_numbers = #tpu.dot_dimension_numbers<[1], [0], [0], [1], [0, 0, 1, 1], [], []>} : vector<2x64xbf16>, vector<64x256xbf16>, vector<2x256xf32> -> vector<2x256xf32>
    %484 = arith.addf %481, %483 : vector<2x256xf32>
    %cst_143 = arith.constant 5.000000e-01 : f32
    %485 = vector.broadcast %cst_143 : f32 to vector<2x256xf32>
    %486 = arith.mulf %485, %484 : vector<2x256xf32>
    %487 = math.tanh %486 : vector<2x256xf32>
    %cst_144 = arith.constant 5.000000e-01 : f32
    %488 = vector.broadcast %cst_144 : f32 to vector<2x256xf32>
    %489 = arith.mulf %488, %487 : vector<2x256xf32>
    %cst_145 = arith.constant 5.000000e-01 : f32
    %490 = vector.broadcast %cst_145 : f32 to vector<2x256xf32>
    %491 = arith.addf %489, %490 : vector<2x256xf32>
    %492 = vector.extract_strided_slice %491 {offsets = [0, 0], sizes = [2, 64], strides = [1, 1]} : vector<2x256xf32> to vector<2x64xf32>
    %493 = vector.extract_strided_slice %491 {offsets = [0, 64], sizes = [2, 64], strides = [1, 1]} : vector<2x256xf32> to vector<2x64xf32>
    %494 = vector.extract_strided_slice %487 {offsets = [0, 128], sizes = [2, 64], strides = [1, 1]} : vector<2x256xf32> to vector<2x64xf32>
    %495 = vector.extract_strided_slice %491 {offsets = [0, 192], sizes = [2, 64], strides = [1, 1]} : vector<2x256xf32> to vector<2x64xf32>
    %496 = arith.mulf %493, %472 : vector<2x64xf32>
    %497 = arith.mulf %492, %494 : vector<2x64xf32>
    %498 = arith.addf %496, %497 : vector<2x64xf32>
    %499 = math.tanh %498 : vector<2x64xf32>
    %500 = arith.mulf %495, %499 : vector<2x64xf32>
    %cst_146 = arith.constant 0.000000e+00 : f32
    %501 = vector.broadcast %cst_146 : f32 to vector<2x64xf32>
    %502 = arith.select %37, %500, %501 : vector<2x64xi1>, vector<2x64xf32>
    %503 = arith.select %37, %500, %471 : vector<2x64xi1>, vector<2x64xf32>
    %504 = arith.select %37, %498, %472 : vector<2x64xi1>, vector<2x64xf32>
    %505 = vector.extract_strided_slice %502 {offsets = [0, 0], sizes = [2, 32], strides = [1, 1]} : vector<2x64xf32> to vector<2x32xf32>
    %c10_147 = arith.constant 10 : index
    %c0_148 = arith.constant 0 : index
    %506 = vector.load %arg12[%c10_147, %c0_148] : memref<16x64xf32, #tpu.memory_space<vmem>>, vector<2x32xf32>
    tpu.vector_store %arg12[%c10_147, %c0_148], %505 {strides = array<i32>} : memref<16x64xf32, #tpu.memory_space<vmem>>, vector<2x32xf32>,
    %507 = vector.extract_strided_slice %502 {offsets = [0, 32], sizes = [2, 32], strides = [1, 1]} : vector<2x64xf32> to vector<2x32xf32>
    %c4_149 = arith.constant 4 : index
    %c32_150 = arith.constant 32 : index
    %508 = vector.load %arg12[%c4_149, %c32_150] : memref<16x64xf32, #tpu.memory_space<vmem>>, vector<2x32xf32>
    tpu.vector_store %arg12[%c4_149, %c32_150], %507 {strides = array<i32>} : memref<16x64xf32, #tpu.memory_space<vmem>>, vector<2x32xf32>,
    %509 = vector.extract_strided_slice %313 {offsets = [12, 0], sizes = [2, 256], strides = [1, 1]} : vector<16x256xf32> to vector<2x256xf32>
    %510 = vector.extract_strided_slice %313 {offsets = [2, 0], sizes = [2, 256], strides = [1, 1]} : vector<16x256xf32> to vector<2x256xf32>
    %511 = vector.shape_cast %18 : vector<1x256xi1> to vector<1x256xi1>
    %512 = vector.broadcast %511 : vector<1x256xi1> to vector<2x256xi1>
    %513 = arith.select %512, %509, %510 : vector<2x256xi1>, vector<2x256xf32>
    %514 = arith.truncf %503 : vector<2x64xf32> to vector<2x64xbf16>
    %cst_151 = arith.constant dense<0.000000e+00> : vector<2x256xf32>
    %515 = tpu.matmul %514, %314, %cst_151 {dimension_numbers = #tpu.dot_dimension_numbers<[1], [0], [0], [1], [0, 0, 1, 1], [], []>} : vector<2x64xbf16>, vector<64x256xbf16>, vector<2x256xf32> -> vector<2x256xf32>
    %516 = arith.addf %513, %515 : vector<2x256xf32>
    %cst_152 = arith.constant 5.000000e-01 : f32
    %517 = vector.broadcast %cst_152 : f32 to vector<2x256xf32>
    %518 = arith.mulf %517, %516 : vector<2x256xf32>
    %519 = math.tanh %518 : vector<2x256xf32>
    %cst_153 = arith.constant 5.000000e-01 : f32
    %520 = vector.broadcast %cst_153 : f32 to vector<2x256xf32>
    %521 = arith.mulf %520, %519 : vector<2x256xf32>
    %cst_154 = arith.constant 5.000000e-01 : f32
    %522 = vector.broadcast %cst_154 : f32 to vector<2x256xf32>
    %523 = arith.addf %521, %522 : vector<2x256xf32>
    %524 = vector.extract_strided_slice %523 {offsets = [0, 0], sizes = [2, 64], strides = [1, 1]} : vector<2x256xf32> to vector<2x64xf32>
    %525 = vector.extract_strided_slice %523 {offsets = [0, 64], sizes = [2, 64], strides = [1, 1]} : vector<2x256xf32> to vector<2x64xf32>
    %526 = vector.extract_strided_slice %519 {offsets = [0, 128], sizes = [2, 64], strides = [1, 1]} : vector<2x256xf32> to vector<2x64xf32>
    %527 = vector.extract_strided_slice %523 {offsets = [0, 192], sizes = [2, 64], strides = [1, 1]} : vector<2x256xf32> to vector<2x64xf32>
    %528 = arith.mulf %525, %504 : vector<2x64xf32>
    %529 = arith.mulf %524, %526 : vector<2x64xf32>
    %530 = arith.addf %528, %529 : vector<2x64xf32>
    %531 = math.tanh %530 : vector<2x64xf32>
    %532 = arith.mulf %527, %531 : vector<2x64xf32>
    %cst_155 = arith.constant 0.000000e+00 : f32
    %533 = vector.broadcast %cst_155 : f32 to vector<2x64xf32>
    %534 = arith.select %40, %532, %533 : vector<2x64xi1>, vector<2x64xf32>
    %535 = arith.select %40, %532, %503 : vector<2x64xi1>, vector<2x64xf32>
    %536 = arith.select %40, %530, %504 : vector<2x64xi1>, vector<2x64xf32>
    %537 = vector.extract_strided_slice %534 {offsets = [0, 0], sizes = [2, 32], strides = [1, 1]} : vector<2x64xf32> to vector<2x32xf32>
    %c12_156 = arith.constant 12 : index
    %c0_157 = arith.constant 0 : index
    %538 = vector.load %arg12[%c12_156, %c0_157] : memref<16x64xf32, #tpu.memory_space<vmem>>, vector<2x32xf32>
    tpu.vector_store %arg12[%c12_156, %c0_157], %537 {strides = array<i32>} : memref<16x64xf32, #tpu.memory_space<vmem>>, vector<2x32xf32>,
    %539 = vector.extract_strided_slice %534 {offsets = [0, 32], sizes = [2, 32], strides = [1, 1]} : vector<2x64xf32> to vector<2x32xf32>
    %c2_158 = arith.constant 2 : index
    %c32_159 = arith.constant 32 : index
    %540 = vector.load %arg12[%c2_158, %c32_159] : memref<16x64xf32, #tpu.memory_space<vmem>>, vector<2x32xf32>
    tpu.vector_store %arg12[%c2_158, %c32_159], %539 {strides = array<i32>} : memref<16x64xf32, #tpu.memory_space<vmem>>, vector<2x32xf32>,
    %541 = vector.extract_strided_slice %313 {offsets = [14, 0], sizes = [2, 256], strides = [1, 1]} : vector<16x256xf32> to vector<2x256xf32>
    %542 = vector.extract_strided_slice %313 {offsets = [0, 0], sizes = [2, 256], strides = [1, 1]} : vector<16x256xf32> to vector<2x256xf32>
    %543 = vector.shape_cast %18 : vector<1x256xi1> to vector<1x256xi1>
    %544 = vector.broadcast %543 : vector<1x256xi1> to vector<2x256xi1>
    %545 = arith.select %544, %541, %542 : vector<2x256xi1>, vector<2x256xf32>
    %546 = arith.truncf %535 : vector<2x64xf32> to vector<2x64xbf16>
    %cst_160 = arith.constant dense<0.000000e+00> : vector<2x256xf32>
    %547 = tpu.matmul %546, %314, %cst_160 {dimension_numbers = #tpu.dot_dimension_numbers<[1], [0], [0], [1], [0, 0, 1, 1], [], []>} : vector<2x64xbf16>, vector<64x256xbf16>, vector<2x256xf32> -> vector<2x256xf32>
    %548 = arith.addf %545, %547 : vector<2x256xf32>
    %cst_161 = arith.constant 5.000000e-01 : f32
    %549 = vector.broadcast %cst_161 : f32 to vector<2x256xf32>
    %550 = arith.mulf %549, %548 : vector<2x256xf32>
    %551 = math.tanh %550 : vector<2x256xf32>
    %cst_162 = arith.constant 5.000000e-01 : f32
    %552 = vector.broadcast %cst_162 : f32 to vector<2x256xf32>
    %553 = arith.mulf %552, %551 : vector<2x256xf32>
    %cst_163 = arith.constant 5.000000e-01 : f32
    %554 = vector.broadcast %cst_163 : f32 to vector<2x256xf32>
    %555 = arith.addf %553, %554 : vector<2x256xf32>
    %556 = vector.extract_strided_slice %555 {offsets = [0, 0], sizes = [2, 64], strides = [1, 1]} : vector<2x256xf32> to vector<2x64xf32>
    %557 = vector.extract_strided_slice %555 {offsets = [0, 64], sizes = [2, 64], strides = [1, 1]} : vector<2x256xf32> to vector<2x64xf32>
    %558 = vector.extract_strided_slice %551 {offsets = [0, 128], sizes = [2, 64], strides = [1, 1]} : vector<2x256xf32> to vector<2x64xf32>
    %559 = vector.extract_strided_slice %555 {offsets = [0, 192], sizes = [2, 64], strides = [1, 1]} : vector<2x256xf32> to vector<2x64xf32>
    %560 = arith.mulf %557, %536 : vector<2x64xf32>
    %561 = arith.mulf %556, %558 : vector<2x64xf32>
    %562 = arith.addf %560, %561 : vector<2x64xf32>
    %563 = math.tanh %562 : vector<2x64xf32>
    %564 = arith.mulf %559, %563 : vector<2x64xf32>
    %cst_164 = arith.constant 0.000000e+00 : f32
    %565 = vector.broadcast %cst_164 : f32 to vector<2x64xf32>
    %566 = arith.select %43, %564, %565 : vector<2x64xi1>, vector<2x64xf32>
    %567 = vector.extract_strided_slice %566 {offsets = [0, 0], sizes = [2, 32], strides = [1, 1]} : vector<2x64xf32> to vector<2x32xf32>
    %c14_165 = arith.constant 14 : index
    %c0_166 = arith.constant 0 : index
    %568 = vector.load %arg12[%c14_165, %c0_166] : memref<16x64xf32, #tpu.memory_space<vmem>>, vector<2x32xf32>
    tpu.vector_store %arg12[%c14_165, %c0_166], %567 {strides = array<i32>} : memref<16x64xf32, #tpu.memory_space<vmem>>, vector<2x32xf32>,
    %569 = vector.extract_strided_slice %566 {offsets = [0, 32], sizes = [2, 32], strides = [1, 1]} : vector<2x64xf32> to vector<2x32xf32>
    %c0_167 = arith.constant 0 : index
    %c32_168 = arith.constant 32 : index
    %570 = vector.load %arg12[%c0_167, %c32_168] : memref<16x64xf32, #tpu.memory_space<vmem>>, vector<2x32xf32>
    tpu.vector_store %arg12[%c0_167, %c32_168], %569 {strides = array<i32>} : memref<16x64xf32, #tpu.memory_space<vmem>>, vector<2x32xf32>,
    %c0_169 = arith.constant 0 : index
    %c0_170 = arith.constant 0 : index
    %571 = vector.load %arg12[%c0_169, %c0_170] : memref<16x64xf32, #tpu.memory_space<vmem>>, vector<16x64xf32>
    %572 = arith.truncf %571 : vector<16x64xf32> to vector<16x64xbf16>
    %c0_171 = arith.constant 0 : index
    %c0_172 = arith.constant 0 : index
    %573 = vector.load %arg8[%c0_171, %c0_172] : memref<64x128xbf16, #tpu.memory_space<vmem>>, vector<64x128xbf16>
    %cst_173 = arith.constant dense<0.000000e+00> : vector<16x128xf32>
    %574 = tpu.matmul %572, %573, %cst_173 {dimension_numbers = #tpu.dot_dimension_numbers<[1], [0], [0], [1], [0, 0, 1, 1], [], []>} : vector<16x64xbf16>, vector<64x128xbf16>, vector<16x128xf32> -> vector<16x128xf32>
    %c0_174 = arith.constant 0 : index
    %c0_175 = arith.constant 0 : index
    %575 = vector.load %arg9[%c0_174, %c0_175] : memref<1x128xf32, #tpu.memory_space<vmem>>, vector<1x128xf32>
    %576 = vector.broadcast %575 : vector<1x128xf32> to vector<16x128xf32>
    %577 = arith.addf %574, %576 : vector<16x128xf32>
    %c0_176 = arith.constant 0 : index
    %c0_177 = arith.constant 0 : index
    %578 = vector.load %arg10[%c0_176, %c0_177] : memref<16x128xf32, #tpu.memory_space<vmem>>, vector<16x128xf32>
    tpu.vector_store %arg10[%c0_176, %c0_177], %577 {strides = array<i32>} : memref<16x128xf32, #tpu.memory_space<vmem>>, vector<16x128xf32>,
    return
  }
}

</mosaic_0001>

<llo_original>
// kernel: tpu_custom_call.1
$region0: #{tpu_custom_call.1}
  #allocation0 [shape = 'u32[]', space=smem, size = 0x4, offset = 0x4, fixed_abs, tag = 'smem constant byte address 0x4 - core index']
  #allocation1 [shape = 'u32[144,128]{1,0:T(1,128)}', space=vmem, size = 0x12000, scoped, tag = 'internal scratch']
  #allocation2 [shape = 'f32[16,64]{1,0:T(8,128)}', space=vmem, size = 0x2000, scoped, tag = 'scratch operand']
  #allocation3 [shape = 'f32[16,64]{1,0:T(8,128)}', space=vmem, size = 0x2000, scoped, tag = 'scratch operand']
  %s0 = inlined_call_operand.hbm [shape: bf16[16,32], index: 0, kind: input, shape index: {}]
  %s1 = inlined_call_operand.hbm [shape: f32[16,64], index: 1, kind: input, shape index: {}]
  %s2 = inlined_call_operand.hbm [shape: bf16[32,256], index: 2, kind: input, shape index: {}]
  %s3 = inlined_call_operand.hbm [shape: bf16[64,256], index: 3, kind: input, shape index: {}]
  %s4 = inlined_call_operand.vmem [shape: f32[1,256], index: 4, kind: input, shape index: {}]
  %s5 = inlined_call_operand.hbm [shape: bf16[64,256], index: 5, kind: input, shape index: {}]
  %s6 = inlined_call_operand.hbm [shape: bf16[64,256], index: 6, kind: input, shape index: {}]
  %s7 = inlined_call_operand.vmem [shape: f32[1,256], index: 7, kind: input, shape index: {}]
  %s8 = inlined_call_operand.hbm [shape: bf16[64,128], index: 8, kind: input, shape index: {}]
  %s9 = inlined_call_operand.vmem [shape: f32[1,128], index: 9, kind: input, shape index: {}]
  %s10 = inlined_call_operand.hbm [shape: f32[16,128], index: 10, kind: output, shape index: {}]
  %s11 = sld [smem:[#allocation0]]
  $region78: #{tpu_custom_call.1} parent=0
    _
  %s13 = ssub.s32 1, %s11
  %s14 = scalar_select 0, %s13, %s11
  $region1: #{tpu_custom_call.1} parent=0
    #allocation4 [shape = 'u8[4096]{0}', space=vmem, size = 0x1000, scoped, tag = 'input window, operand 0, single buffered']
    #allocation5 [shape = 's32[1]{0}', space=sflag, size = 0x4, scoped, tag = 'scoped memory for tpu_custom_call.1']
    #allocation6 [shape = 's32[1]{0}', space=sflag, size = 0x4, scoped, tag = 'scoped memory for tpu_custom_call.1']
    #allocation7 [shape = 'u8[8192]{0}', space=vmem, size = 0x2000, scoped, tag = 'input window, operand 1, single buffered']
    #allocation8 [shape = 's32[1]{0}', space=sflag, size = 0x4, scoped, tag = 'scoped memory for tpu_custom_call.1']
    #allocation9 [shape = 'u8[16384]{0}', space=vmem, size = 0x4000, scoped, tag = 'input window, operand 2, single buffered']
    #allocation10 [shape = 'u8[32768]{0}', space=vmem, size = 0x8000, scoped, tag = 'input window, operand 3, single buffered']
    #allocation11 [shape = 's32[1]{0}', space=sflag, size = 0x4, scoped, tag = 'scoped memory for tpu_custom_call.1']
    #allocation12 [shape = 'u8[32768]{0}', space=vmem, size = 0x8000, scoped, tag = 'input window, operand 5, single buffered']
    #allocation13 [shape = 'u8[32768]{0}', space=vmem, size = 0x8000, scoped, tag = 'input window, operand 6, single buffered']
    #allocation14 [shape = 's32[1]{0}', space=sflag, size = 0x4, scoped, tag = 'scoped memory for tpu_custom_call.1']
    #allocation15 [shape = 'u8[16384]{0}', space=vmem, size = 0x4000, scoped, tag = 'input window, operand 8, single buffered']
    #allocation16 [shape = 'u8[8192]{0}', space=vmem, size = 0x2000, scoped, tag = 'output window, operand 0, single buffered']
    %15 = vsyncpa [#allocation5], 0
    %16 = vsyncpa [#allocation8], 0
    %17 = vsyncpa [#allocation11], 0
    %18 = vsyncpa [#allocation14], 0
    %19 = vsyncpa [#allocation6], 0
    // Predicated region
    $region2: #{tpu_custom_call.1} parent=1 // pred_check
      _
    $region3: #{tpu_custom_call.1} parent=1 // pred_check_branch
      %21 = sbr.rel (0) target = $region5
    $region4: #{tpu_custom_call.1} parent=1 // pred_region
      %s23 = ssub.s32 128, 128
      %24 = vsyncadd [#allocation5], %s23
      %s25 = sshll.u32 [#allocation4], 4
      %s26 = int_to_ptr.vmem [resolvable:$true] %s25
      %31 = dma.hbm_to_vmem [thread:$0]  %s0, 128, %s26, [#allocation5], 64, 64, 4
    $region5: #{tpu_custom_call.1} parent=1 // pred_fallthru
      _
    // Predicated region
    $region6: #{tpu_custom_call.1} parent=1 // pred_check
      _
    $region7: #{tpu_custom_call.1} parent=1 // pred_check_branch
      %33 = sbr.rel (0) target = $region9
    $region8: #{tpu_custom_call.1} parent=1 // pred_region
      %s35 = ssub.s32 256, 256
      %36 = vsyncadd [#allocation8], %s35
      %s37 = sshll.u32 [#allocation7], 4
      %s38 = int_to_ptr.vmem [resolvable:$true] %s37
      %43 = dma.hbm_to_vmem [thread:$0]  %s1, 256, %s38, [#allocation8], 128, 128, 8
    $region9: #{tpu_custom_call.1} parent=1 // pred_fallthru
      _
    // Predicated region
    $region10: #{tpu_custom_call.1} parent=1 // pred_check
      _
    $region11: #{tpu_custom_call.1} parent=1 // pred_check_branch
      %45 = sbr.rel (0) target = $region13
    $region12: #{tpu_custom_call.1} parent=1 // pred_region
      %s47 = ssub.s32 512, 512
      %48 = vsyncadd [#allocation8], %s47
      %s49 = sshll.u32 [#allocation9], 4
      %s50 = int_to_ptr.vmem [resolvable:$true] %s49
      %55 = dma.hbm_to_vmem [thread:$0]  %s2, 512, %s50, [#allocation8], 128, 128, 8
    $region13: #{tpu_custom_call.1} parent=1 // pred_fallthru
      _
    // Predicated region
    $region14: #{tpu_custom_call.1} parent=1 // pred_check
      _
    $region15: #{tpu_custom_call.1} parent=1 // pred_check_branch
      %57 = sbr.rel (0) target = $region17
    $region16: #{tpu_custom_call.1} parent=1 // pred_region
      %s59 = ssub.s32 1024, 1024
      %60 = vsyncadd [#allocation11], %s59
      %s61 = sshll.u32 [#allocation10], 4
      %s62 = int_to_ptr.vmem [resolvable:$true] %s61
      %67 = dma.hbm_to_vmem [thread:$0]  %s3, 1024, %s62, [#allocation11], 128, 128, 8
    $region17: #{tpu_custom_call.1} parent=1 // pred_fallthru
      _
    // Predicated region
    $region18: #{tpu_custom_call.1} parent=1 // pred_check
      _
    $region19: #{tpu_custom_call.1} parent=1 // pred_check_branch
      %69 = sbr.rel (0) target = $region21
    $region20: #{tpu_custom_call.1} parent=1 // pred_region
      _
    $region21: #{tpu_custom_call.1} parent=1 // pred_fallthru
      _
    // Predicated region
    $region22: #{tpu_custom_call.1} parent=1 // pred_check
      _
    $region23: #{tpu_custom_call.1} parent=1 // pred_check_branch
      %71 = sbr.rel (0) target = $region25
    $region24: #{tpu_custom_call.1} parent=1 // pred_region
      %s73 = ssub.s32 1024, 1024
      %74 = vsyncadd [#allocation11], %s73
      %s75 = sshll.u32 [#allocation12], 4
      %s76 = int_to_ptr.vmem [resolvable:$true] %s75
      %81 = dma.hbm_to_vmem [thread:$0]  %s5, 1024, %s76, [#allocation11], 128, 128, 8
    $region25: #{tpu_custom_call.1} parent=1 // pred_fallthru
      _
    // Predicated region
    $region26: #{tpu_custom_call.1} parent=1 // pred_check
      _
    $region27: #{tpu_custom_call.1} parent=1 // pred_check_branch
      %83 = sbr.rel (0) target = $region29
    $region28: #{tpu_custom_call.1} parent=1 // pred_region
      %s85 = ssub.s32 1024, 1024
      %86 = vsyncadd [#allocation14], %s85
      %s87 = sshll.u32 [#allocation13], 4
      %s88 = int_to_ptr.vmem [resolvable:$true] %s87
      %93 = dma.hbm_to_vmem [thread:$0]  %s6, 1024, %s88, [#allocation14], 128, 128, 8
    $region29: #{tpu_custom_call.1} parent=1 // pred_fallthru
      _
    // Predicated region
    $region30: #{tpu_custom_call.1} parent=1 // pred_check
      _
    $region31: #{tpu_custom_call.1} parent=1 // pred_check_branch
      %95 = sbr.rel (0) target = $region33
    $region32: #{tpu_custom_call.1} parent=1 // pred_region
      _
    $region33: #{tpu_custom_call.1} parent=1 // pred_fallthru
      _
    // Predicated region
    $region34: #{tpu_custom_call.1} parent=1 // pred_check
      _
    $region35: #{tpu_custom_call.1} parent=1 // pred_check_branch
      %97 = sbr.rel (0) target = $region37
    $region36: #{tpu_custom_call.1} parent=1 // pred_region
      %s99 = ssub.s32 512, 512
      %100 = vsyncadd [#allocation14], %s99
      %s101 = sshll.u32 [#allocation15], 4
      %s102 = int_to_ptr.vmem [resolvable:$true] %s101
      %107 = dma.hbm_to_vmem [thread:$0]  %s8, 512, %s102, [#allocation14], 64, 64, 4
    $region37: #{tpu_custom_call.1} parent=1 // pred_fallthru
      _
    // Predicated region
    $region38: #{tpu_custom_call.1} parent=1 // pred_check
      _
    $region39: #{tpu_custom_call.1} parent=1 // pred_check_branch
      %109 = sbr.rel (0) target = $region41
    $region40: #{tpu_custom_call.1} parent=1 // pred_region
      _
    $region41: #{tpu_custom_call.1} parent=1 // pred_fallthru
      _
    // Predicated region
    $region42: #{tpu_custom_call.1} parent=1 // pred_check
      _
    $region43: #{tpu_custom_call.1} parent=1 // pred_check_branch
      %111 = sbr.rel (0) target = $region45
    $region44: #{tpu_custom_call.1} parent=1 // pred_region
      %112 = dma.done [#allocation5], 128
    $region45: #{tpu_custom_call.1} parent=1 // pred_fallthru
      _
    // Predicated region
    $region46: #{tpu_custom_call.1} parent=1 // pred_check
      _
    $region47: #{tpu_custom_call.1} parent=1 // pred_check_branch
      %114 = sbr.rel (0) target = $region49
    $region48: #{tpu_custom_call.1} parent=1 // pred_region
      %115 = dma.done [#allocation8], 256
    $region49: #{tpu_custom_call.1} parent=1 // pred_fallthru
      _
    // Predicated region
    $region50: #{tpu_custom_call.1} parent=1 // pred_check
      _
    $region51: #{tpu_custom_call.1} parent=1 // pred_check_branch
      %117 = sbr.rel (0) target = $region53
    $region52: #{tpu_custom_call.1} parent=1 // pred_region
      %118 = dma.done [#allocation8], 512
    $region53: #{tpu_custom_call.1} parent=1 // pred_fallthru
      _
    // Predicated region
    $region54: #{tpu_custom_call.1} parent=1 // pred_check
      _
    $region55: #{tpu_custom_call.1} parent=1 // pred_check_branch
      %120 = sbr.rel (0) target = $region57
    $region56: #{tpu_custom_call.1} parent=1 // pred_region
      %121 = dma.done [#allocation11], 1024
    $region57: #{tpu_custom_call.1} parent=1 // pred_fallthru
      _
    // Predicated region
    $region58: #{tpu_custom_call.1} parent=1 // pred_check
      _
    $region59: #{tpu_custom_call.1} parent=1 // pred_check_branch
      %123 = sbr.rel (0) target = $region61
    $region60: #{tpu_custom_call.1} parent=1 // pred_region
      %124 = dma.done [#allocation11], 1024
    $region61: #{tpu_custom_call.1} parent=1 // pred_fallthru
      _
    // Predicated region
    $region62: #{tpu_custom_call.1} parent=1 // pred_check
      _
    $region63: #{tpu_custom_call.1} parent=1 // pred_check_branch
      %126 = sbr.rel (0) target = $region65
    $region64: #{tpu_custom_call.1} parent=1 // pred_region
      %127 = dma.done [#allocation14], 1024
    $region65: #{tpu_custom_call.1} parent=1 // pred_fallthru
      _
    // Predicated region
    $region66: #{tpu_custom_call.1} parent=1 // pred_check
      _
    $region67: #{tpu_custom_call.1} parent=1 // pred_check_branch
      %129 = sbr.rel (0) target = $region69
    $region68: #{tpu_custom_call.1} parent=1 // pred_region
      %130 = dma.done [#allocation14], 512
    $region69: #{tpu_custom_call.1} parent=1 // pred_fallthru
      _
    %v132 = vlaneseq
    %v133 = vand.u32 %v132, 127
    %v134 = vadd.s32 %v133, 128
    %vm135 = vcmp.lt.s32.totalorder %v133, 0
    %v136 = vsub.s32 0, %v133
    %v137 = vsel %vm135, %v136, %v133
    %v138 = vshrl.u32 %v137, 6
    %v139 = vand.u32 %v137, 63
    %v140 = vsub.s32 0, %v139
    %v141 = vsel %vm135, %v140, %v139
    %vm142 = vcmp.lt.s32.totalorder %v134, 0
    %v143 = vsub.s32 0, %v134
    %v144 = vsel %vm142, %v143, %v134
    %v145 = vshrl.u32 %v144, 6
    %v146 = vand.u32 %v144, 63
    %v147 = vsub.s32 0, %v146
    %v148 = vsel %vm142, %v147, %v146
    %vm149 = vcmp.ne.s32.totalorder %v141, 0
    %vm150 = vcmp.ne.s32.totalorder %v148, 0
    %vm151 = vcmp.lt.s32.totalorder %v141, 0
    %vm152 = vcmp.lt.s32.totalorder %v148, 0
    %vm153 = vmand %vm151, %vm149
    %vm154 = vmand %vm152, %vm150
    %v155 = vadd.s32 %v141, 64
    %v156 = vadd.s32 %v148, 64
    %v157 = vsel %vm153, %v155, %v141
    %v158 = vsel %vm154, %v156, %v148
    %vm159 = vcmp.lt.s32.totalorder %v157, 32
    %vm160 = vcmp.lt.s32.totalorder %v158, 32
    %v161 = vld [vmem:[#allocation7] sm:$0xff]
    %v162 = vld [vmem:[#allocation7 + $0x8] sm:$0xff]
    %vm163 = vcmp.gt.f32.partialorder %v161, 0.0
    %vm164 = vcmp.gt.f32.partialorder %v162, 0.0
    %v165 = vld [vmem:[#allocation4] sm:$0xf]
    %v166 = vld [vmem:[#allocation4 + $0x4] sm:$0xf]
    %v167 = vld [vmem:[#allocation9] sm:$0xff]
    %v168 = vld [vmem:[#allocation9 + $0x8] sm:$0xff]
    %v169 = vld [vmem:[#allocation9 + $0x10] sm:$0xff]
    %v170 = vld [vmem:[#allocation9 + $0x18] sm:$0xff]
    %v171 = vld [vmem:[%s4] sm:$0x3]
    %v173 = vlaneseq
    %v174 = vshrl.u32 %v173, 7
    %v175 = vsub.s32 0, %v174
    %v176 = vrot.slane %v171, %v175
    %v177 = vlaneseq
    %v178 = vshrl.u32 %v177, 7
    %v179 = vsub.s32 1, %v178
    %v180 = vrot.slane %v171, %v179
    %v185 = vunpack.c.l.b16 %v165
    %v186 = vunpack.c.l.b16 %v166
    %v187 = vpack.c.b16 %v186, %v185
    %v192 = vunpack.c.l.b16 %v167
    %v193 = vunpack.c.h.b16 %v167
    %v194 = vunpack.c.l.b16 %v168
    %v195 = vunpack.c.h.b16 %v168
    %v196 = vunpack.c.l.b16 %v169
    %v197 = vunpack.c.h.b16 %v169
    %v198 = vunpack.c.l.b16 %v170
    %v199 = vunpack.c.h.b16 %v170
    %v200 = vpack.c.b16 %v194, %v192
    %v201 = vpack.c.b16 %v195, %v193
    %v202 = vpack.c.b16 %v198, %v196
    %v203 = vpack.c.b16 %v199, %v197
    %vm208 = vcmask 261120
    %v210 = vsel %vm208, %v187, 0
    %212 = vmatprep.subr.bf16.mxu0 %v201
    %213 = vmatpush1.bf16.msra.mxu0 %v200
    %214 = vmatprep.subr.bf16.mxu0 %v203
    %215 = vmatpush1.bf16.msra.mxu0 %v202
    %216 = vmatprep.subr.bf16.mxu0 0
    %217 = vmatpush1.bf16.msra.mxu0 0
    %218 = vmatprep.subr.bf16.mxu0 0
    %219 = vmatpush1.bf16.msra.mxu0 0
    %220 = vmatprep.subr.bf16.mxu0 0
    %221 = vmatpush1.bf16.msra.mxu0 0
    %222 = vmatprep.subr.bf16.mxu0 0
    %223 = vmatpush1.bf16.msra.mxu0 0
    %224 = vmatprep.subr.bf16.mxu0 0
    %225 = vmatpush1.bf16.msra.mxu0 0
    %226 = vmatprep.subr.bf16.mxu0 0
    %227 = vmatpush1.bf16.msra.mxu0 0
    %228 = vmatprep.subr.bf16.mxu0 0
    %229 = vmatpush1.bf16.msra.mxu0 0
    %230 = vmatprep.subr.bf16.mxu0 0
    %231 = vmatpush1.bf16.msra.mxu0 0
    %232 = vmatprep.subr.bf16.mxu0 0
    %233 = vmatpush1.bf16.msra.mxu0 0
    %234 = vmatprep.subr.bf16.mxu0 0
    %235 = vmatpush1.bf16.msra.mxu0 0
    %236 = vmatprep.subr.bf16.mxu0 0
    %237 = vmatpush1.bf16.msra.mxu0 0
    %238 = vmatprep.subr.bf16.mxu0 0
    %239 = vmatpush1.bf16.msra.mxu0 0
    %240 = vmatprep.subr.bf16.mxu0 0
    %241 = vmatpush1.bf16.msra.mxu0 0
    %242 = vmatprep.subr.bf16.mxu0 0
    %243 = vmatpush1.bf16.msra.mxu0 0
    %244 = vmatprep.mubr.bf16.mxu0 0
    %245 = vmatmul.mubr.bf16.gmra.mrb[0].mxu0 %v210
    %v246 = vpop.f32.mrb[0].mxu0
    %v247 = vadd.f32 %v176, %v246
    %v248 = vpop.f32.mrb[0].mxu0
    %v249 = vadd.f32 %v180, %v248
    %v250 = vpop.f32.mrb[0].mxu0
    %v251 = vadd.f32 %v176, %v250
    %v252 = vpop.f32.mrb[0].mxu0
    %v253 = vadd.f32 %v180, %v252
    %254 = vdwg.mxu0
    %v255 = vld [vmem:[#allocation10] sm:$0xff]
    %v256 = vld [vmem:[#allocation10 + $0x8] sm:$0xff]
    %v257 = vld [vmem:[#allocation10 + $0x10] sm:$0xff]
    %v258 = vld [vmem:[#allocation10 + $0x18] sm:$0xff]
    %v259 = vld [vmem:[#allocation10 + $0x20] sm:$0xff]
    %v260 = vld [vmem:[#allocation10 + $0x28] sm:$0xff]
    %v261 = vld [vmem:[#allocation10 + $0x30] sm:$0xff]
    %v262 = vld [vmem:[#allocation10 + $0x38] sm:$0xff]
    %v263 = vsel %vm159, 1, 0
    %v264 = vsel %vm160, 1, 0
    %vm265 = vcmp.eq.s32.totalorder %v263, 1
    %vm266 = vcmp.eq.s32.totalorder %v264, 1
    %v269 = vrot.slane %v251, 6
    %v270 = vrot.slane %v253, 6
    %v273 = vsel %vm265, %v247, %v269
    %v274 = vsel %vm266, %v249, %v270
    %v283 = vunpack.c.l.b16 %v255
    %v284 = vunpack.c.h.b16 %v255
    %v285 = vunpack.c.l.b16 %v256
    %v286 = vunpack.c.h.b16 %v256
    %v287 = vunpack.c.l.b16 %v257
    %v288 = vunpack.c.h.b16 %v257
    %v289 = vunpack.c.l.b16 %v258
    %v290 = vunpack.c.h.b16 %v258
    %v291 = vunpack.c.l.b16 %v259
    %v292 = vunpack.c.h.b16 %v259
    %v293 = vunpack.c.l.b16 %v260
    %v294 = vunpack.c.h.b16 %v260
    %v295 = vunpack.c.l.b16 %v261
    %v296 = vunpack.c.h.b16 %v261
    %v297 = vunpack.c.l.b16 %v262
    %v298 = vunpack.c.h.b16 %v262
    %v299 = vpack.c.b16 %v285, %v283
    %v300 = vpack.c.b16 %v286, %v284
    %v301 = vpack.c.b16 %v289, %v287
    %v302 = vpack.c.b16 %v290, %v288
    %v303 = vpack.c.b16 %v293, %v291
    %v304 = vpack.c.b16 %v294, %v292
    %v305 = vpack.c.b16 %v297, %v295
    %v306 = vpack.c.b16 %v298, %v296
    %vm315 = vcmask 523264
    %v317 = vsel %vm315, 0, 0
    %319 = vmatprep.subr.bf16.mxu0 %v300
    %320 = vmatpush1.bf16.msra.mxu0 %v299
    %321 = vmatprep.subr.bf16.mxu0 %v302
    %322 = vmatpush1.bf16.msra.mxu0 %v301
    %323 = vmatprep.subr.bf16.mxu0 %v304
    %324 = vmatpush1.bf16.msra.mxu0 %v303
    %325 = vmatprep.subr.bf16.mxu0 %v306
    %326 = vmatpush1.bf16.msra.mxu0 %v305
    %327 = vmatprep.subr.bf16.mxu0 0
    %328 = vmatpush1.bf16.msra.mxu0 0
    %329 = vmatprep.subr.bf16.mxu0 0
    %330 = vmatpush1.bf16.msra.mxu0 0
    %331 = vmatprep.subr.bf16.mxu0 0
    %332 = vmatpush1.bf16.msra.mxu0 0
    %333 = vmatprep.subr.bf16.mxu0 0
    %334 = vmatpush1.bf16.msra.mxu0 0
    %335 = vmatprep.subr.bf16.mxu0 0
    %336 = vmatpush1.bf16.msra.mxu0 0
    %337 = vmatprep.subr.bf16.mxu0 0
    %338 = vmatpush1.bf16.msra.mxu0 0
    %339 = vmatprep.subr.bf16.mxu0 0
    %340 = vmatpush1.bf16.msra.mxu0 0
    %341 = vmatprep.subr.bf16.mxu0 0
    %342 = vmatpush1.bf16.msra.mxu0 0
    %343 = vmatprep.subr.bf16.mxu0 0
    %344 = vmatpush1.bf16.msra.mxu0 0
    %345 = vmatprep.subr.bf16.mxu0 0
    %346 = vmatpush1.bf16.msra.mxu0 0
    %347 = vmatprep.subr.bf16.mxu0 0
    %348 = vmatpush1.bf16.msra.mxu0 0
    %349 = vmatprep.subr.bf16.mxu0 0
    %350 = vmatpush1.bf16.msra.mxu0 0
    %351 = vmatprep.mubr.bf16.mxu0 0
    %352 = vmatmul.mubr.bf16.gmra.mrb[0].mxu0 %v317
    %v353 = vpop.f32.mrb[0].mxu0
    %v354 = vadd.f32 0.0, %v353
    %v355 = vpop.f32.mrb[0].mxu0
    %v356 = vadd.f32 0.0, %v355
    %v357 = vpop.f32.mrb[0].mxu0
    %v358 = vpop.f32.mrb[0].mxu0
    %359 = vdwg.mxu0
    %v360 = vadd.f32 %v273, %v354
    %v361 = vadd.f32 %v274, %v356
    %v362 = vmul.f32 %v360, 0.5
    %v363 = vmul.f32 %v361, 0.5
    %v364 = vtanh.pop %v362
    %v365 = vtanh.pop %v363
    %v366 = vmul.f32 %v364, 0.5
    %v367 = vmul.f32 %v365, 0.5
    %v368 = vadd.f32 %v366, 0.5
    %v369 = vadd.f32 %v367, 0.5
    %v370 = vmul.f32 %v368, 0.0
    %v371 = vmul.f32 %v368, %v365
    %373 = vrot.lane.b32.xlu0 %v371, 64
    %v374 = vpop.permute.xlu0 %373
    %v376 = vadd.f32 %v370, %v374
    %v377 = vtanh.pop %v376
    %v378 = vmul.f32 %v369, %v377
    %380 = vrot.lane.b32.xlu0 %v378, 64
    %v381 = vpop.permute.xlu0 %380
    %v383 = vsel %vm163, %v381, 0.0
    %385 = vrot.lane.b32.xlu0 %v376, 64
    %v386 = vpop.permute.xlu0 %385
    %v388 = vsel %vm163, %v386, 0.0
    %vm389 = vcmask 254976
    %390 = vst.msk [vmem:[#allocation2] sm:$0x3] %vm389, %v383
    %vm391 = vcmask 517376
    %392 = vst.msk [vmem:[#allocation2 + $0xe] sm:$0x3] %vm391, %v383
    %v393 = vrot.slane %v251, 2
    %v394 = vrot.slane %v253, 2
    %v397 = vsel %vm265, %v247, %v393
    %v398 = vsel %vm266, %v249, %v394
    %v399 = vpack.c.bf16 %v383, %v383
    %v401 = vsel %vm315, %v399, 0
    %403 = vmatprep.subr.bf16.mxu0 %v300
    %404 = vmatpush1.bf16.msra.mxu0 %v299
    %405 = vmatprep.subr.bf16.mxu0 %v302
    %406 = vmatpush1.bf16.msra.mxu0 %v301
    %407 = vmatprep.subr.bf16.mxu0 %v304
    %408 = vmatpush1.bf16.msra.mxu0 %v303
    %409 = vmatprep.subr.bf16.mxu0 %v306
    %410 = vmatpush1.bf16.msra.mxu0 %v305
    %411 = vmatprep.subr.bf16.mxu0 0
    %412 = vmatpush1.bf16.msra.mxu0 0
    %413 = vmatprep.subr.bf16.mxu0 0
    %414 = vmatpush1.bf16.msra.mxu0 0
    %415 = vmatprep.subr.bf16.mxu0 0
    %416 = vmatpush1.bf16.msra.mxu0 0
    %417 = vmatprep.subr.bf16.mxu0 0
    %418 = vmatpush1.bf16.msra.mxu0 0
    %419 = vmatprep.subr.bf16.mxu0 0
    %420 = vmatpush1.bf16.msra.mxu0 0
    %421 = vmatprep.subr.bf16.mxu0 0
    %422 = vmatpush1.bf16.msra.mxu0 0
    %423 = vmatprep.subr.bf16.mxu0 0
    %424 = vmatpush1.bf16.msra.mxu0 0
    %425 = vmatprep.subr.bf16.mxu0 0
    %426 = vmatpush1.bf16.msra.mxu0 0
    %427 = vmatprep.subr.bf16.mxu0 0
    %428 = vmatpush1.bf16.msra.mxu0 0
    %429 = vmatprep.subr.bf16.mxu0 0
    %430 = vmatpush1.bf16.msra.mxu0 0
    %431 = vmatprep.subr.bf16.mxu0 0
    %432 = vmatpush1.bf16.msra.mxu0 0
    %433 = vmatprep.subr.bf16.mxu0 0
    %434 = vmatpush1.bf16.msra.mxu0 0
    %435 = vmatprep.mubr.bf16.mxu0 0
    %436 = vmatmul.mubr.bf16.gmra.mrb[0].mxu0 %v401
    %v437 = vpop.f32.mrb[0].mxu0
    %v438 = vadd.f32 0.0, %v437
    %v439 = vpop.f32.mrb[0].mxu0
    %v440 = vadd.f32 0.0, %v439
    %v441 = vpop.f32.mrb[0].mxu0
    %v442 = vpop.f32.mrb[0].mxu0
    %443 = vdwg.mxu0
    %v446 = vrot.slane %v438, 6
    %v447 = vrot.slane %v440, 6
    %v450 = vadd.f32 %v397, %v446
    %v451 = vadd.f32 %v398, %v447
    %v452 = vmul.f32 %v450, 0.5
    %v453 = vmul.f32 %v451, 0.5
    %v454 = vtanh.pop %v452
    %v455 = vtanh.pop %v453
    %v456 = vmul.f32 %v454, 0.5
    %v457 = vmul.f32 %v455, 0.5
    %v458 = vadd.f32 %v456, 0.5
    %v459 = vadd.f32 %v457, 0.5
    %v461 = vrot.slane %v388, 6
    %462 = vrot.lane.b32.xlu0 %v461, 64
    %v463 = vpop.permute.xlu0 %462
    %v465 = vmul.f32 %v458, %v463
    %v466 = vmul.f32 %v458, %v455
    %468 = vrot.lane.b32.xlu0 %v466, 64
    %v469 = vpop.permute.xlu0 %468
    %v471 = vadd.f32 %v465, %v469
    %v472 = vtanh.pop %v471
    %v473 = vmul.f32 %v459, %v472
    %475 = vrot.lane.b32.xlu0 %v473, 64
    %v476 = vpop.permute.xlu0 %475
    %v478 = vsel %vm163, %v476, 0.0
    %v480 = vrot.slane %v383, 6
    %v482 = vsel %vm163, %v476, %v480
    %484 = vrot.lane.b32.xlu0 %v471, 64
    %v485 = vpop.permute.xlu0 %484
    %v488 = vsel %vm163, %v485, %v461
    %vm489 = vcmask 257026
    %490 = vst.msk [vmem:[#allocation2] sm:$0xc] %vm489, %v478
    %vm491 = vcmask 519426
    %492 = vst.msk [vmem:[#allocation2 + $0xa] sm:$0xc] %vm491, %v478
    %v493 = vpack.c.bf16 %v482, %v482
    %v495 = vrot.slane %v493, 1
    %v497 = vsel %vm315, %v495, 0
    %499 = vmatprep.subr.bf16.mxu0 %v300
    %500 = vmatpush1.bf16.msra.mxu0 %v299
    %501 = vmatprep.subr.bf16.mxu0 %v302
    %502 = vmatpush1.bf16.msra.mxu0 %v301
    %503 = vmatprep.subr.bf16.mxu0 %v304
    %504 = vmatpush1.bf16.msra.mxu0 %v303
    %505 = vmatprep.subr.bf16.mxu0 %v306
    %506 = vmatpush1.bf16.msra.mxu0 %v305
    %507 = vmatprep.subr.bf16.mxu0 0
    %508 = vmatpush1.bf16.msra.mxu0 0
    %509 = vmatprep.subr.bf16.mxu0 0
    %510 = vmatpush1.bf16.msra.mxu0 0
    %511 = vmatprep.subr.bf16.mxu0 0
    %512 = vmatpush1.bf16.msra.mxu0 0
    %513 = vmatprep.subr.bf16.mxu0 0
    %514 = vmatpush1.bf16.msra.mxu0 0
    %515 = vmatprep.subr.bf16.mxu0 0
    %516 = vmatpush1.bf16.msra.mxu0 0
    %517 = vmatprep.subr.bf16.mxu0 0
    %518 = vmatpush1.bf16.msra.mxu0 0
    %519 = vmatprep.subr.bf16.mxu0 0
    %520 = vmatpush1.bf16.msra.mxu0 0
    %521 = vmatprep.subr.bf16.mxu0 0
    %522 = vmatpush1.bf16.msra.mxu0 0
    %523 = vmatprep.subr.bf16.mxu0 0
    %524 = vmatpush1.bf16.msra.mxu0 0
    %525 = vmatprep.subr.bf16.mxu0 0
    %526 = vmatpush1.bf16.msra.mxu0 0
    %527 = vmatprep.subr.bf16.mxu0 0
    %528 = vmatpush1.bf16.msra.mxu0 0
    %529 = vmatprep.subr.bf16.mxu0 0
    %530 = vmatpush1.bf16.msra.mxu0 0
    %531 = vmatprep.mubr.bf16.mxu0 0
    %532 = vmatmul.mubr.bf16.gmra.mrb[0].mxu0 %v497
    %v533 = vpop.f32.mrb[0].mxu0
    %v534 = vadd.f32 0.0, %v533
    %v535 = vpop.f32.mrb[0].mxu0
    %v536 = vadd.f32 0.0, %v535
    %v537 = vpop.f32.mrb[0].mxu0
    %v538 = vpop.f32.mrb[0].mxu0
    %539 = vdwg.mxu0
    %v542 = vrot.slane %v534, 4
    %v543 = vrot.slane %v536, 4
    %v546 = vadd.f32 %v273, %v542
    %v547 = vadd.f32 %v274, %v543
    %v548 = vmul.f32 %v546, 0.5
    %v549 = vmul.f32 %v547, 0.5
    %v550 = vtanh.pop %v548
    %v551 = vtanh.pop %v549
    %v552 = vmul.f32 %v550, 0.5
    %v553 = vmul.f32 %v551, 0.5
    %v554 = vadd.f32 %v552, 0.5
    %v555 = vadd.f32 %v553, 0.5
    %v557 = vrot.slane %v488, 6
    %558 = vrot.lane.b32.xlu0 %v557, 64
    %v559 = vpop.permute.xlu0 %558
    %v561 = vmul.f32 %v554, %v559
    %v562 = vmul.f32 %v554, %v551
    %564 = vrot.lane.b32.xlu0 %v562, 64
    %v565 = vpop.permute.xlu0 %564
    %v567 = vadd.f32 %v561, %v565
    %v568 = vtanh.pop %v567
    %v569 = vmul.f32 %v555, %v568
    %571 = vrot.lane.b32.xlu0 %v569, 64
    %v572 = vpop.permute.xlu0 %571
    %v574 = vsel %vm163, %v572, 0.0
    %v576 = vrot.slane %v482, 6
    %v578 = vsel %vm163, %v572, %v576
    %580 = vrot.lane.b32.xlu0 %v567, 64
    %v581 = vpop.permute.xlu0 %580
    %v584 = vsel %vm163, %v581, %v557
    %vm585 = vcmask 259076
    %586 = vst.msk [vmem:[#allocation2] sm:$0x30] %vm585, %v574
    %vm587 = vcmask 521476
    %588 = vst.msk [vmem:[#allocation2 + $0x6] sm:$0x30] %vm587, %v574
    %v589 = vpack.c.bf16 %v578, %v578
    %v591 = vrot.slane %v589, 2
    %v593 = vsel %vm315, %v591, 0
    %595 = vmatprep.subr.bf16.mxu0 %v300
    %596 = vmatpush1.bf16.msra.mxu0 %v299
    %597 = vmatprep.subr.bf16.mxu0 %v302
    %598 = vmatpush1.bf16.msra.mxu0 %v301
    %599 = vmatprep.subr.bf16.mxu0 %v304
    %600 = vmatpush1.bf16.msra.mxu0 %v303
    %601 = vmatprep.subr.bf16.mxu0 %v306
    %602 = vmatpush1.bf16.msra.mxu0 %v305
    %603 = vmatprep.subr.bf16.mxu0 0
    %604 = vmatpush1.bf16.msra.mxu0 0
    %605 = vmatprep.subr.bf16.mxu0 0
    %606 = vmatpush1.bf16.msra.mxu0 0
    %607 = vmatprep.subr.bf16.mxu0 0
    %608 = vmatpush1.bf16.msra.mxu0 0
    %609 = vmatprep.subr.bf16.mxu0 0
    %610 = vmatpush1.bf16.msra.mxu0 0
    %611 = vmatprep.subr.bf16.mxu0 0
    %612 = vmatpush1.bf16.msra.mxu0 0
    %613 = vmatprep.subr.bf16.mxu0 0
    %614 = vmatpush1.bf16.msra.mxu0 0
    %615 = vmatprep.subr.bf16.mxu0 0
    %616 = vmatpush1.bf16.msra.mxu0 0
    %617 = vmatprep.subr.bf16.mxu0 0
    %618 = vmatpush1.bf16.msra.mxu0 0
    %619 = vmatprep.subr.bf16.mxu0 0
    %620 = vmatpush1.bf16.msra.mxu0 0
    %621 = vmatprep.subr.bf16.mxu0 0
    %622 = vmatpush1.bf16.msra.mxu0 0
    %623 = vmatprep.subr.bf16.mxu0 0
    %624 = vmatpush1.bf16.msra.mxu0 0
    %625 = vmatprep.subr.bf16.mxu0 0
    %626 = vmatpush1.bf16.msra.mxu0 0
    %627 = vmatprep.mubr.bf16.mxu0 0
    %628 = vmatmul.mubr.bf16.gmra.mrb[0].mxu0 %v593
    %v629 = vpop.f32.mrb[0].mxu0
    %v630 = vadd.f32 0.0, %v629
    %v631 = vpop.f32.mrb[0].mxu0
    %v632 = vadd.f32 0.0, %v631
    %v633 = vpop.f32.mrb[0].mxu0
    %v634 = vpop.f32.mrb[0].mxu0
    %635 = vdwg.mxu0
    %v638 = vrot.slane %v630, 2
    %v639 = vrot.slane %v632, 2
    %v642 = vadd.f32 %v397, %v638
    %v643 = vadd.f32 %v398, %v639
    %v644 = vmul.f32 %v642, 0.5
    %v645 = vmul.f32 %v643, 0.5
    %v646 = vtanh.pop %v644
    %v647 = vtanh.pop %v645
    %v648 = vmul.f32 %v646, 0.5
    %v649 = vmul.f32 %v647, 0.5
    %v650 = vadd.f32 %v648, 0.5
    %v651 = vadd.f32 %v649, 0.5
    %v653 = vrot.slane %v584, 6
    %654 = vrot.lane.b32.xlu0 %v653, 64
    %v655 = vpop.permute.xlu0 %654
    %v657 = vmul.f32 %v650, %v655
    %v658 = vmul.f32 %v650, %v647
    %660 = vrot.lane.b32.xlu0 %v658, 64
    %v661 = vpop.permute.xlu0 %660
    %v663 = vadd.f32 %v657, %v661
    %v664 = vtanh.pop %v663
    %v665 = vmul.f32 %v651, %v664
    %667 = vrot.lane.b32.xlu0 %v665, 64
    %v668 = vpop.permute.xlu0 %667
    %v670 = vsel %vm163, %v668, 0.0
    %v672 = vrot.slane %v578, 6
    %v674 = vsel %vm163, %v668, %v672
    %676 = vrot.lane.b32.xlu0 %v663, 64
    %v677 = vpop.permute.xlu0 %676
    %v680 = vsel %vm163, %v677, %v653
    %vm681 = vcmask 261126
    %682 = vst.msk [vmem:[#allocation2] sm:$0xc0] %vm681, %v670
    %vm683 = vcmask 523526
    %684 = vst.msk [vmem:[#allocation2 + $0x2] sm:$0xc0] %vm683, %v670
    %v687 = vrot.slane %v247, 6
    %v688 = vrot.slane %v249, 6
    %v691 = vsel %vm265, %v251, %v687
    %v692 = vsel %vm266, %v253, %v688
    %v693 = vpack.c.bf16 %v674, %v674
    %v695 = vrot.slane %v693, 3
    %v697 = vsel %vm315, %v695, 0
    %699 = vmatprep.subr.bf16.mxu0 %v300
    %700 = vmatpush1.bf16.msra.mxu0 %v299
    %701 = vmatprep.subr.bf16.mxu0 %v302
    %702 = vmatpush1.bf16.msra.mxu0 %v301
    %703 = vmatprep.subr.bf16.mxu0 %v304
    %704 = vmatpush1.bf16.msra.mxu0 %v303
    %705 = vmatprep.subr.bf16.mxu0 %v306
    %706 = vmatpush1.bf16.msra.mxu0 %v305
    %707 = vmatprep.subr.bf16.mxu0 0
    %708 = vmatpush1.bf16.msra.mxu0 0
    %709 = vmatprep.subr.bf16.mxu0 0
    %710 = vmatpush1.bf16.msra.mxu0 0
    %711 = vmatprep.subr.bf16.mxu0 0
    %712 = vmatpush1.bf16.msra.mxu0 0
    %713 = vmatprep.subr.bf16.mxu0 0
    %714 = vmatpush1.bf16.msra.mxu0 0
    %715 = vmatprep.subr.bf16.mxu0 0
    %716 = vmatpush1.bf16.msra.mxu0 0
    %717 = vmatprep.subr.bf16.mxu0 0
    %718 = vmatpush1.bf16.msra.mxu0 0
    %719 = vmatprep.subr.bf16.mxu0 0
    %720 = vmatpush1.bf16.msra.mxu0 0
    %721 = vmatprep.subr.bf16.mxu0 0
    %722 = vmatpush1.bf16.msra.mxu0 0
    %723 = vmatprep.subr.bf16.mxu0 0
    %724 = vmatpush1.bf16.msra.mxu0 0
    %725 = vmatprep.subr.bf16.mxu0 0
    %726 = vmatpush1.bf16.msra.mxu0 0
    %727 = vmatprep.subr.bf16.mxu0 0
    %728 = vmatpush1.bf16.msra.mxu0 0
    %729 = vmatprep.subr.bf16.mxu0 0
    %730 = vmatpush1.bf16.msra.mxu0 0
    %731 = vmatprep.mubr.bf16.mxu0 0
    %732 = vmatmul.mubr.bf16.gmra.mrb[0].mxu0 %v697
    %v733 = vpop.f32.mrb[0].mxu0
    %v734 = vadd.f32 0.0, %v733
    %v735 = vpop.f32.mrb[0].mxu0
    %v736 = vadd.f32 0.0, %v735
    %v737 = vpop.f32.mrb[0].mxu0
    %v738 = vpop.f32.mrb[0].mxu0
    %739 = vdwg.mxu0
    %v740 = vadd.f32 %v691, %v734
    %v741 = vadd.f32 %v692, %v736
    %v742 = vmul.f32 %v740, 0.5
    %v743 = vmul.f32 %v741, 0.5
    %v744 = vtanh.pop %v742
    %v745 = vtanh.pop %v743
    %v746 = vmul.f32 %v744, 0.5
    %v747 = vmul.f32 %v745, 0.5
    %v748 = vadd.f32 %v746, 0.5
    %v749 = vadd.f32 %v747, 0.5
    %v751 = vrot.slane %v680, 6
    %752 = vrot.lane.b32.xlu0 %v751, 64
    %v753 = vpop.permute.xlu0 %752
    %v755 = vmul.f32 %v748, %v753
    %v756 = vmul.f32 %v748, %v745
    %758 = vrot.lane.b32.xlu0 %v756, 64
    %v759 = vpop.permute.xlu0 %758
    %v761 = vadd.f32 %v755, %v759
    %v762 = vtanh.pop %v761
    %v763 = vmul.f32 %v749, %v762
    %765 = vrot.lane.b32.xlu0 %v763, 64
    %v766 = vpop.permute.xlu0 %765
    %v768 = vsel %vm164, %v766, 0.0
    %v770 = vrot.slane %v674, 6
    %v772 = vsel %vm164, %v766, %v770
    %774 = vrot.lane.b32.xlu0 %v761, 64
    %v775 = vpop.permute.xlu0 %774
    %v778 = vsel %vm164, %v775, %v751
    %779 = vst.msk [vmem:[#allocation2 + $0x8] sm:$0x3] %vm389, %v768
    %780 = vst.msk [vmem:[#allocation2 + $0x6] sm:$0x3] %vm391, %v768
    %v781 = vrot.slane %v247, 2
    %v782 = vrot.slane %v249, 2
    %v785 = vsel %vm265, %v251, %v781
    %v786 = vsel %vm266, %v253, %v782
    %v787 = vpack.c.bf16 %v772, %v772
    %v789 = vsel %vm315, %v787, 0
    %791 = vmatprep.subr.bf16.mxu0 %v300
    %792 = vmatpush1.bf16.msra.mxu0 %v299
    %793 = vmatprep.subr.bf16.mxu0 %v302
    %794 = vmatpush1.bf16.msra.mxu0 %v301
    %795 = vmatprep.subr.bf16.mxu0 %v304
    %796 = vmatpush1.bf16.msra.mxu0 %v303
    %797 = vmatprep.subr.bf16.mxu0 %v306
    %798 = vmatpush1.bf16.msra.mxu0 %v305
    %799 = vmatprep.subr.bf16.mxu0 0
    %800 = vmatpush1.bf16.msra.mxu0 0
    %801 = vmatprep.subr.bf16.mxu0 0
    %802 = vmatpush1.bf16.msra.mxu0 0
    %803 = vmatprep.subr.bf16.mxu0 0
    %804 = vmatpush1.bf16.msra.mxu0 0
    %805 = vmatprep.subr.bf16.mxu0 0
    %806 = vmatpush1.bf16.msra.mxu0 0
    %807 = vmatprep.subr.bf16.mxu0 0
    %808 = vmatpush1.bf16.msra.mxu0 0
    %809 = vmatprep.subr.bf16.mxu0 0
    %810 = vmatpush1.bf16.msra.mxu0 0
    %811 = vmatprep.subr.bf16.mxu0 0
    %812 = vmatpush1.bf16.msra.mxu0 0
    %813 = vmatprep.subr.bf16.mxu0 0
    %814 = vmatpush1.bf16.msra.mxu0 0
    %815 = vmatprep.subr.bf16.mxu0 0
    %816 = vmatpush1.bf16.msra.mxu0 0
    %817 = vmatprep.subr.bf16.mxu0 0
    %818 = vmatpush1.bf16.msra.mxu0 0
    %819 = vmatprep.subr.bf16.mxu0 0
    %820 = vmatpush1.bf16.msra.mxu0 0
    %821 = vmatprep.subr.bf16.mxu0 0
    %822 = vmatpush1.bf16.msra.mxu0 0
    %823 = vmatprep.mubr.bf16.mxu0 0
    %824 = vmatmul.mubr.bf16.gmra.mrb[0].mxu0 %v789
    %v825 = vpop.f32.mrb[0].mxu0
    %v826 = vadd.f32 0.0, %v825
    %v827 = vpop.f32.mrb[0].mxu0
    %v828 = vadd.f32 0.0, %v827
    %v829 = vpop.f32.mrb[0].mxu0
    %v830 = vpop.f32.mrb[0].mxu0
    %831 = vdwg.mxu0
    %v834 = vrot.slane %v826, 6
    %v835 = vrot.slane %v828, 6
    %v838 = vadd.f32 %v785, %v834
    %v839 = vadd.f32 %v786, %v835
    %v840 = vmul.f32 %v838, 0.5
    %v841 = vmul.f32 %v839, 0.5
    %v842 = vtanh.pop %v840
    %v843 = vtanh.pop %v841
    %v844 = vmul.f32 %v842, 0.5
    %v845 = vmul.f32 %v843, 0.5
    %v846 = vadd.f32 %v844, 0.5
    %v847 = vadd.f32 %v845, 0.5
    %v849 = vrot.slane %v778, 6
    %850 = vrot.lane.b32.xlu0 %v849, 64
    %v851 = vpop.permute.xlu0 %850
    %v853 = vmul.f32 %v846, %v851
    %v854 = vmul.f32 %v846, %v843
    %856 = vrot.lane.b32.xlu0 %v854, 64
    %v857 = vpop.permute.xlu0 %856
    %v859 = vadd.f32 %v853, %v857
    %v860 = vtanh.pop %v859
    %v861 = vmul.f32 %v847, %v860
    %863 = vrot.lane.b32.xlu0 %v861, 64
    %v864 = vpop.permute.xlu0 %863
    %v866 = vsel %vm164, %v864, 0.0
    %v868 = vrot.slane %v772, 6
    %v870 = vsel %vm164, %v864, %v868
    %872 = vrot.lane.b32.xlu0 %v859, 64
    %v873 = vpop.permute.xlu0 %872
    %v876 = vsel %vm164, %v873, %v849
    %877 = vst.msk [vmem:[#allocation2 + $0x8] sm:$0xc] %vm489, %v866
    %878 = vst.msk [vmem:[#allocation2 + $0x2] sm:$0xc] %vm491, %v866
    %v879 = vpack.c.bf16 %v870, %v870
    %v881 = vrot.slane %v879, 1
    %v883 = vsel %vm315, %v881, 0
    %885 = vmatprep.subr.bf16.mxu0 %v300
    %886 = vmatpush1.bf16.msra.mxu0 %v299
    %887 = vmatprep.subr.bf16.mxu0 %v302
    %888 = vmatpush1.bf16.msra.mxu0 %v301
    %889 = vmatprep.subr.bf16.mxu0 %v304
    %890 = vmatpush1.bf16.msra.mxu0 %v303
    %891 = vmatprep.subr.bf16.mxu0 %v306
    %892 = vmatpush1.bf16.msra.mxu0 %v305
    %893 = vmatprep.subr.bf16.mxu0 0
    %894 = vmatpush1.bf16.msra.mxu0 0
    %895 = vmatprep.subr.bf16.mxu0 0
    %896 = vmatpush1.bf16.msra.mxu0 0
    %897 = vmatprep.subr.bf16.mxu0 0
    %898 = vmatpush1.bf16.msra.mxu0 0
    %899 = vmatprep.subr.bf16.mxu0 0
    %900 = vmatpush1.bf16.msra.mxu0 0
    %901 = vmatprep.subr.bf16.mxu0 0
    %902 = vmatpush1.bf16.msra.mxu0 0
    %903 = vmatprep.subr.bf16.mxu0 0
    %904 = vmatpush1.bf16.msra.mxu0 0
    %905 = vmatprep.subr.bf16.mxu0 0
    %906 = vmatpush1.bf16.msra.mxu0 0
    %907 = vmatprep.subr.bf16.mxu0 0
    %908 = vmatpush1.bf16.msra.mxu0 0
    %909 = vmatprep.subr.bf16.mxu0 0
    %910 = vmatpush1.bf16.msra.mxu0 0
    %911 = vmatprep.subr.bf16.mxu0 0
    %912 = vmatpush1.bf16.msra.mxu0 0
    %913 = vmatprep.subr.bf16.mxu0 0
    %914 = vmatpush1.bf16.msra.mxu0 0
    %915 = vmatprep.subr.bf16.mxu0 0
    %916 = vmatpush1.bf16.msra.mxu0 0
    %917 = vmatprep.mubr.bf16.mxu0 0
    %918 = vmatmul.mubr.bf16.gmra.mrb[0].mxu0 %v883
    %v919 = vpop.f32.mrb[0].mxu0
    %v920 = vadd.f32 0.0, %v919
    %v921 = vpop.f32.mrb[0].mxu0
    %v922 = vadd.f32 0.0, %v921
    %v923 = vpop.f32.mrb[0].mxu0
    %v924 = vpop.f32.mrb[0].mxu0
    %925 = vdwg.mxu0
    %v928 = vrot.slane %v920, 4
    %v929 = vrot.slane %v922, 4
    %v932 = vadd.f32 %v691, %v928
    %v933 = vadd.f32 %v692, %v929
    %v934 = vmul.f32 %v932, 0.5
    %v935 = vmul.f32 %v933, 0.5
    %v936 = vtanh.pop %v934
    %v937 = vtanh.pop %v935
    %v938 = vmul.f32 %v936, 0.5
    %v939 = vmul.f32 %v937, 0.5
    %v940 = vadd.f32 %v938, 0.5
    %v941 = vadd.f32 %v939, 0.5
    %v943 = vrot.slane %v876, 6
    %944 = vrot.lane.b32.xlu0 %v943, 64
    %v945 = vpop.permute.xlu0 %944
    %v947 = vmul.f32 %v940, %v945
    %v948 = vmul.f32 %v940, %v937
    %950 = vrot.lane.b32.xlu0 %v948, 64
    %v951 = vpop.permute.xlu0 %950
    %v953 = vadd.f32 %v947, %v951
    %v954 = vtanh.pop %v953
    %v955 = vmul.f32 %v941, %v954
    %957 = vrot.lane.b32.xlu0 %v955, 64
    %v958 = vpop.permute.xlu0 %957
    %v960 = vsel %vm164, %v958, 0.0
    %v962 = vrot.slane %v870, 6
    %v964 = vsel %vm164, %v958, %v962
    %966 = vrot.lane.b32.xlu0 %v953, 64
    %v967 = vpop.permute.xlu0 %966
    %v970 = vsel %vm164, %v967, %v943
    %971 = vst.msk [vmem:[#allocation2 + $0x8] sm:$0x30] %vm585, %v960
    %972 = vst.msk [vmem:[#allocation2 - $0x2] sm:$0x30] %vm587, %v960
    %v973 = vpack.c.bf16 %v964, %v964
    %v975 = vrot.slane %v973, 2
    %v977 = vsel %vm315, %v975, 0
    %979 = vmatprep.subr.bf16.mxu0 %v300
    %980 = vmatpush1.bf16.msra.mxu0 %v299
    %981 = vmatprep.subr.bf16.mxu0 %v302
    %982 = vmatpush1.bf16.msra.mxu0 %v301
    %983 = vmatprep.subr.bf16.mxu0 %v304
    %984 = vmatpush1.bf16.msra.mxu0 %v303
    %985 = vmatprep.subr.bf16.mxu0 %v306
    %986 = vmatpush1.bf16.msra.mxu0 %v305
    %987 = vmatprep.subr.bf16.mxu0 0
    %988 = vmatpush1.bf16.msra.mxu0 0
    %989 = vmatprep.subr.bf16.mxu0 0
    %990 = vmatpush1.bf16.msra.mxu0 0
    %991 = vmatprep.subr.bf16.mxu0 0
    %992 = vmatpush1.bf16.msra.mxu0 0
    %993 = vmatprep.subr.bf16.mxu0 0
    %994 = vmatpush1.bf16.msra.mxu0 0
    %995 = vmatprep.subr.bf16.mxu0 0
    %996 = vmatpush1.bf16.msra.mxu0 0
    %997 = vmatprep.subr.bf16.mxu0 0
    %998 = vmatpush1.bf16.msra.mxu0 0
    %999 = vmatprep.subr.bf16.mxu0 0
    %1000 = vmatpush1.bf16.msra.mxu0 0
    %1001 = vmatprep.subr.bf16.mxu0 0
    %1002 = vmatpush1.bf16.msra.mxu0 0
    %1003 = vmatprep.subr.bf16.mxu0 0
    %1004 = vmatpush1.bf16.msra.mxu0 0
    %1005 = vmatprep.subr.bf16.mxu0 0
    %1006 = vmatpush1.bf16.msra.mxu0 0
    %1007 = vmatprep.subr.bf16.mxu0 0
    %1008 = vmatpush1.bf16.msra.mxu0 0
    %1009 = vmatprep.subr.bf16.mxu0 0
    %1010 = vmatpush1.bf16.msra.mxu0 0
    %1011 = vmatprep.mubr.bf16.mxu0 0
    %1012 = vmatmul.mubr.bf16.gmra.mrb[0].mxu0 %v977
    %v1013 = vpop.f32.mrb[0].mxu0
    %v1014 = vadd.f32 0.0, %v1013
    %v1015 = vpop.f32.mrb[0].mxu0
    %v1016 = vadd.f32 0.0, %v1015
    %v1017 = vpop.f32.mrb[0].mxu0
    %v1018 = vpop.f32.mrb[0].mxu0
    %1019 = vdwg.mxu0
    %v1022 = vrot.slane %v1014, 2
    %v1023 = vrot.slane %v1016, 2
    %v1026 = vadd.f32 %v785, %v1022
    %v1027 = vadd.f32 %v786, %v1023
    %v1028 = vmul.f32 %v1026, 0.5
    %v1029 = vmul.f32 %v1027, 0.5
    %v1030 = vtanh.pop %v1028
    %v1031 = vtanh.pop %v1029
    %v1032 = vmul.f32 %v1030, 0.5
    %v1033 = vmul.f32 %v1031, 0.5
    %v1034 = vadd.f32 %v1032, 0.5
    %v1035 = vadd.f32 %v1033, 0.5
    %v1037 = vrot.slane %v970, 6
    %1038 = vrot.lane.b32.xlu0 %v1037, 64
    %v1039 = vpop.permute.xlu0 %1038
    %v1041 = vmul.f32 %v1034, %v1039
    %v1042 = vmul.f32 %v1034, %v1031
    %1044 = vrot.lane.b32.xlu0 %v1042, 64
    %v1045 = vpop.permute.xlu0 %1044
    %v1047 = vadd.f32 %v1041, %v1045
    %v1048 = vtanh.pop %v1047
    %v1049 = vmul.f32 %v1035, %v1048
    %1051 = vrot.lane.b32.xlu0 %v1049, 64
    %v1052 = vpop.permute.xlu0 %1051
    %v1054 = vsel %vm164, %v1052, 0.0
    %1055 = vst.msk [vmem:[#allocation2 + $0x8] sm:$0xc0] %vm681, %v1054
    %1056 = vst.msk [vmem:[#allocation2 - $0x6] sm:$0xc0] %vm683, %v1054
    %v1057 = vld [vmem:[#allocation2] sm:$0xff]
    %v1058 = vld [vmem:[#allocation2 + $0x8] sm:$0xff]
    %v1059 = vpack.c.bf16 %v1058, %v1057
    %v1060 = vld [vmem:[#allocation12] sm:$0xff]
    %v1061 = vld [vmem:[#allocation12 + $0x8] sm:$0xff]
    %v1062 = vld [vmem:[#allocation12 + $0x10] sm:$0xff]
    %v1063 = vld [vmem:[#allocation12 + $0x18] sm:$0xff]
    %v1064 = vld [vmem:[#allocation12 + $0x20] sm:$0xff]
    %v1065 = vld [vmem:[#allocation12 + $0x28] sm:$0xff]
    %v1066 = vld [vmem:[#allocation12 + $0x30] sm:$0xff]
    %v1067 = vld [vmem:[#allocation12 + $0x38] sm:$0xff]
    %v1068 = vld [vmem:[%s7] sm:$0x3]
    %v1070 = vlaneseq
    %v1071 = vshrl.u32 %v1070, 7
    %v1072 = vsub.s32 0, %v1071
    %v1073 = vrot.slane %v1068, %v1072
    %v1074 = vlaneseq
    %v1075 = vshrl.u32 %v1074, 7
    %v1076 = vsub.s32 1, %v1075
    %v1077 = vrot.slane %v1068, %v1076
    %v1088 = vunpack.c.l.b16 %v1060
    %v1089 = vunpack.c.h.b16 %v1060
    %v1090 = vunpack.c.l.b16 %v1061
    %v1091 = vunpack.c.h.b16 %v1061
    %v1092 = vunpack.c.l.b16 %v1062
    %v1093 = vunpack.c.h.b16 %v1062
    %v1094 = vunpack.c.l.b16 %v1063
    %v1095 = vunpack.c.h.b16 %v1063
    %v1096 = vunpack.c.l.b16 %v1064
    %v1097 = vunpack.c.h.b16 %v1064
    %v1098 = vunpack.c.l.b16 %v1065
    %v1099 = vunpack.c.h.b16 %v1065
    %v1100 = vunpack.c.l.b16 %v1066
    %v1101 = vunpack.c.h.b16 %v1066
    %v1102 = vunpack.c.l.b16 %v1067
    %v1103 = vunpack.c.h.b16 %v1067
    %v1104 = vpack.c.b16 %v1090, %v1088
    %v1105 = vpack.c.b16 %v1091, %v1089
    %v1106 = vpack.c.b16 %v1094, %v1092
    %v1107 = vpack.c.b16 %v1095, %v1093
    %v1108 = vpack.c.b16 %v1098, %v1096
    %v1109 = vpack.c.b16 %v1099, %v1097
    %v1110 = vpack.c.b16 %v1102, %v1100
    %v1111 = vpack.c.b16 %v1103, %v1101
    %v1121 = vsel %vm315, %v1059, 0
    %1123 = vmatprep.subr.bf16.mxu0 %v1105
    %1124 = vmatpush1.bf16.msra.mxu0 %v1104
    %1125 = vmatprep.subr.bf16.mxu0 %v1107
    %1126 = vmatpush1.bf16.msra.mxu0 %v1106
    %1127 = vmatprep.subr.bf16.mxu0 %v1109
    %1128 = vmatpush1.bf16.msra.mxu0 %v1108
    %1129 = vmatprep.subr.bf16.mxu0 %v1111
    %1130 = vmatpush1.bf16.msra.mxu0 %v1110
    %1131 = vmatprep.subr.bf16.mxu0 0
    %1132 = vmatpush1.bf16.msra.mxu0 0
    %1133 = vmatprep.subr.bf16.mxu0 0
    %1134 = vmatpush1.bf16.msra.mxu0 0
    %1135 = vmatprep.subr.bf16.mxu0 0
    %1136 = vmatpush1.bf16.msra.mxu0 0
    %1137 = vmatprep.subr.bf16.mxu0 0
    %1138 = vmatpush1.bf16.msra.mxu0 0
    %1139 = vmatprep.subr.bf16.mxu0 0
    %1140 = vmatpush1.bf16.msra.mxu0 0
    %1141 = vmatprep.subr.bf16.mxu0 0
    %1142 = vmatpush1.bf16.msra.mxu0 0
    %1143 = vmatprep.subr.bf16.mxu0 0
    %1144 = vmatpush1.bf16.msra.mxu0 0
    %1145 = vmatprep.subr.bf16.mxu0 0
    %1146 = vmatpush1.bf16.msra.mxu0 0
    %1147 = vmatprep.subr.bf16.mxu0 0
    %1148 = vmatpush1.bf16.msra.mxu0 0
    %1149 = vmatprep.subr.bf16.mxu0 0
    %1150 = vmatpush1.bf16.msra.mxu0 0
    %1151 = vmatprep.subr.bf16.mxu0 0
    %1152 = vmatpush1.bf16.msra.mxu0 0
    %1153 = vmatprep.subr.bf16.mxu0 0
    %1154 = vmatpush1.bf16.msra.mxu0 0
    %1155 = vmatprep.mubr.bf16.mxu0 0
    %1156 = vmatmul.mubr.bf16.gmra.mrb[0].mxu0 %v1121
    %v1157 = vpop.f32.mrb[0].mxu0
    %v1158 = vadd.f32 %v1073, %v1157
    %v1159 = vpop.f32.mrb[0].mxu0
    %v1160 = vadd.f32 %v1077, %v1159
    %v1161 = vpop.f32.mrb[0].mxu0
    %v1162 = vadd.f32 %v1073, %v1161
    %v1163 = vpop.f32.mrb[0].mxu0
    %v1164 = vadd.f32 %v1077, %v1163
    %1165 = vdwg.mxu0
    %v1166 = vld [vmem:[#allocation13] sm:$0xff]
    %v1167 = vld [vmem:[#allocation13 + $0x8] sm:$0xff]
    %v1168 = vld [vmem:[#allocation13 + $0x10] sm:$0xff]
    %v1169 = vld [vmem:[#allocation13 + $0x18] sm:$0xff]
    %v1170 = vld [vmem:[#allocation13 + $0x20] sm:$0xff]
    %v1171 = vld [vmem:[#allocation13 + $0x28] sm:$0xff]
    %v1172 = vld [vmem:[#allocation13 + $0x30] sm:$0xff]
    %v1173 = vld [vmem:[#allocation13 + $0x38] sm:$0xff]
    %v1176 = vrot.slane %v1162, 6
    %v1177 = vrot.slane %v1164, 6
    %v1180 = vsel %vm265, %v1158, %v1176
    %v1181 = vsel %vm266, %v1160, %v1177
    %v1190 = vunpack.c.l.b16 %v1166
    %v1191 = vunpack.c.h.b16 %v1166
    %v1192 = vunpack.c.l.b16 %v1167
    %v1193 = vunpack.c.h.b16 %v1167
    %v1194 = vunpack.c.l.b16 %v1168
    %v1195 = vunpack.c.h.b16 %v1168
    %v1196 = vunpack.c.l.b16 %v1169
    %v1197 = vunpack.c.h.b16 %v1169
    %v1198 = vunpack.c.l.b16 %v1170
    %v1199 = vunpack.c.h.b16 %v1170
    %v1200 = vunpack.c.l.b16 %v1171
    %v1201 = vunpack.c.h.b16 %v1171
    %v1202 = vunpack.c.l.b16 %v1172
    %v1203 = vunpack.c.h.b16 %v1172
    %v1204 = vunpack.c.l.b16 %v1173
    %v1205 = vunpack.c.h.b16 %v1173
    %v1206 = vpack.c.b16 %v1192, %v1190
    %v1207 = vpack.c.b16 %v1193, %v1191
    %v1208 = vpack.c.b16 %v1196, %v1194
    %v1209 = vpack.c.b16 %v1197, %v1195
    %v1210 = vpack.c.b16 %v1200, %v1198
    %v1211 = vpack.c.b16 %v1201, %v1199
    %v1212 = vpack.c.b16 %v1204, %v1202
    %v1213 = vpack.c.b16 %v1205, %v1203
    %1222 = vmatprep.subr.bf16.mxu0 %v1207
    %1223 = vmatpush1.bf16.msra.mxu0 %v1206
    %1224 = vmatprep.subr.bf16.mxu0 %v1209
    %1225 = vmatpush1.bf16.msra.mxu0 %v1208
    %1226 = vmatprep.subr.bf16.mxu0 %v1211
    %1227 = vmatpush1.bf16.msra.mxu0 %v1210
    %1228 = vmatprep.subr.bf16.mxu0 %v1213
    %1229 = vmatpush1.bf16.msra.mxu0 %v1212
    %1230 = vmatprep.subr.bf16.mxu0 0
    %1231 = vmatpush1.bf16.msra.mxu0 0
    %1232 = vmatprep.subr.bf16.mxu0 0
    %1233 = vmatpush1.bf16.msra.mxu0 0
    %1234 = vmatprep.subr.bf16.mxu0 0
    %1235 = vmatpush1.bf16.msra.mxu0 0
    %1236 = vmatprep.subr.bf16.mxu0 0
    %1237 = vmatpush1.bf16.msra.mxu0 0
    %1238 = vmatprep.subr.bf16.mxu0 0
    %1239 = vmatpush1.bf16.msra.mxu0 0
    %1240 = vmatprep.subr.bf16.mxu0 0
    %1241 = vmatpush1.bf16.msra.mxu0 0
    %1242 = vmatprep.subr.bf16.mxu0 0
    %1243 = vmatpush1.bf16.msra.mxu0 0
    %1244 = vmatprep.subr.bf16.mxu0 0
    %1245 = vmatpush1.bf16.msra.mxu0 0
    %1246 = vmatprep.subr.bf16.mxu0 0
    %1247 = vmatpush1.bf16.msra.mxu0 0
    %1248 = vmatprep.subr.bf16.mxu0 0
    %1249 = vmatpush1.bf16.msra.mxu0 0
    %1250 = vmatprep.subr.bf16.mxu0 0
    %1251 = vmatpush1.bf16.msra.mxu0 0
    %1252 = vmatprep.subr.bf16.mxu0 0
    %1253 = vmatpush1.bf16.msra.mxu0 0
    %1254 = vmatprep.mubr.bf16.mxu0 0
    %1255 = vmatmul.mubr.bf16.gmra.mrb[0].mxu0 %v317
    %v1256 = vpop.f32.mrb[0].mxu0
    %v1257 = vadd.f32 0.0, %v1256
    %v1258 = vpop.f32.mrb[0].mxu0
    %v1259 = vadd.f32 0.0, %v1258
    %v1260 = vpop.f32.mrb[0].mxu0
    %v1261 = vpop.f32.mrb[0].mxu0
    %1262 = vdwg.mxu0
    %v1263 = vadd.f32 %v1180, %v1257
    %v1264 = vadd.f32 %v1181, %v1259
    %v1265 = vmul.f32 %v1263, 0.5
    %v1266 = vmul.f32 %v1264, 0.5
    %v1267 = vtanh.pop %v1265
    %v1268 = vtanh.pop %v1266
    %v1269 = vmul.f32 %v1267, 0.5
    %v1270 = vmul.f32 %v1268, 0.5
    %v1271 = vadd.f32 %v1269, 0.5
    %v1272 = vadd.f32 %v1270, 0.5
    %v1273 = vmul.f32 %v1271, 0.0
    %v1274 = vmul.f32 %v1271, %v1268
    %1276 = vrot.lane.b32.xlu0 %v1274, 64
    %v1277 = vpop.permute.xlu0 %1276
    %v1279 = vadd.f32 %v1273, %v1277
    %v1280 = vtanh.pop %v1279
    %v1281 = vmul.f32 %v1272, %v1280
    %1283 = vrot.lane.b32.xlu0 %v1281, 64
    %v1284 = vpop.permute.xlu0 %1283
    %v1286 = vsel %vm163, %v1284, 0.0
    %1288 = vrot.lane.b32.xlu0 %v1279, 64
    %v1289 = vpop.permute.xlu0 %1288
    %v1291 = vsel %vm163, %v1289, 0.0
    %1292 = vst.msk [vmem:[#allocation3] sm:$0x3] %vm389, %v1286
    %1293 = vst.msk [vmem:[#allocation3 + $0xe] sm:$0x3] %vm391, %v1286
    %v1294 = vrot.slane %v1162, 2
    %v1295 = vrot.slane %v1164, 2
    %v1298 = vsel %vm265, %v1158, %v1294
    %v1299 = vsel %vm266, %v1160, %v1295
    %v1300 = vpack.c.bf16 %v1286, %v1286
    %v1302 = vsel %vm315, %v1300, 0
    %1304 = vmatprep.subr.bf16.mxu0 %v1207
    %1305 = vmatpush1.bf16.msra.mxu0 %v1206
    %1306 = vmatprep.subr.bf16.mxu0 %v1209
    %1307 = vmatpush1.bf16.msra.mxu0 %v1208
    %1308 = vmatprep.subr.bf16.mxu0 %v1211
    %1309 = vmatpush1.bf16.msra.mxu0 %v1210
    %1310 = vmatprep.subr.bf16.mxu0 %v1213
    %1311 = vmatpush1.bf16.msra.mxu0 %v1212
    %1312 = vmatprep.subr.bf16.mxu0 0
    %1313 = vmatpush1.bf16.msra.mxu0 0
    %1314 = vmatprep.subr.bf16.mxu0 0
    %1315 = vmatpush1.bf16.msra.mxu0 0
    %1316 = vmatprep.subr.bf16.mxu0 0
    %1317 = vmatpush1.bf16.msra.mxu0 0
    %1318 = vmatprep.subr.bf16.mxu0 0
    %1319 = vmatpush1.bf16.msra.mxu0 0
    %1320 = vmatprep.subr.bf16.mxu0 0
    %1321 = vmatpush1.bf16.msra.mxu0 0
    %1322 = vmatprep.subr.bf16.mxu0 0
    %1323 = vmatpush1.bf16.msra.mxu0 0
    %1324 = vmatprep.subr.bf16.mxu0 0
    %1325 = vmatpush1.bf16.msra.mxu0 0
    %1326 = vmatprep.subr.bf16.mxu0 0
    %1327 = vmatpush1.bf16.msra.mxu0 0
    %1328 = vmatprep.subr.bf16.mxu0 0
    %1329 = vmatpush1.bf16.msra.mxu0 0
    %1330 = vmatprep.subr.bf16.mxu0 0
    %1331 = vmatpush1.bf16.msra.mxu0 0
    %1332 = vmatprep.subr.bf16.mxu0 0
    %1333 = vmatpush1.bf16.msra.mxu0 0
    %1334 = vmatprep.subr.bf16.mxu0 0
    %1335 = vmatpush1.bf16.msra.mxu0 0
    %1336 = vmatprep.mubr.bf16.mxu0 0
    %1337 = vmatmul.mubr.bf16.gmra.mrb[0].mxu0 %v1302
    %v1338 = vpop.f32.mrb[0].mxu0
    %v1339 = vadd.f32 0.0, %v1338
    %v1340 = vpop.f32.mrb[0].mxu0
    %v1341 = vadd.f32 0.0, %v1340
    %v1342 = vpop.f32.mrb[0].mxu0
    %v1343 = vpop.f32.mrb[0].mxu0
    %1344 = vdwg.mxu0
    %v1347 = vrot.slane %v1339, 6
    %v1348 = vrot.slane %v1341, 6
    %v1351 = vadd.f32 %v1298, %v1347
    %v1352 = vadd.f32 %v1299, %v1348
    %v1353 = vmul.f32 %v1351, 0.5
    %v1354 = vmul.f32 %v1352, 0.5
    %v1355 = vtanh.pop %v1353
    %v1356 = vtanh.pop %v1354
    %v1357 = vmul.f32 %v1355, 0.5
    %v1358 = vmul.f32 %v1356, 0.5
    %v1359 = vadd.f32 %v1357, 0.5
    %v1360 = vadd.f32 %v1358, 0.5
    %v1362 = vrot.slane %v1291, 6
    %1363 = vrot.lane.b32.xlu0 %v1362, 64
    %v1364 = vpop.permute.xlu0 %1363
    %v1366 = vmul.f32 %v1359, %v1364
    %v1367 = vmul.f32 %v1359, %v1356
    %1369 = vrot.lane.b32.xlu0 %v1367, 64
    %v1370 = vpop.permute.xlu0 %1369
    %v1372 = vadd.f32 %v1366, %v1370
    %v1373 = vtanh.pop %v1372
    %v1374 = vmul.f32 %v1360, %v1373
    %1376 = vrot.lane.b32.xlu0 %v1374, 64
    %v1377 = vpop.permute.xlu0 %1376
    %v1379 = vsel %vm163, %v1377, 0.0
    %v1381 = vrot.slane %v1286, 6
    %v1383 = vsel %vm163, %v1377, %v1381
    %1385 = vrot.lane.b32.xlu0 %v1372, 64
    %v1386 = vpop.permute.xlu0 %1385
    %v1389 = vsel %vm163, %v1386, %v1362
    %1390 = vst.msk [vmem:[#allocation3] sm:$0xc] %vm489, %v1379
    %1391 = vst.msk [vmem:[#allocation3 + $0xa] sm:$0xc] %vm491, %v1379
    %v1392 = vpack.c.bf16 %v1383, %v1383
    %v1394 = vrot.slane %v1392, 1
    %v1396 = vsel %vm315, %v1394, 0
    %1398 = vmatprep.subr.bf16.mxu0 %v1207
    %1399 = vmatpush1.bf16.msra.mxu0 %v1206
    %1400 = vmatprep.subr.bf16.mxu0 %v1209
    %1401 = vmatpush1.bf16.msra.mxu0 %v1208
    %1402 = vmatprep.subr.bf16.mxu0 %v1211
    %1403 = vmatpush1.bf16.msra.mxu0 %v1210
    %1404 = vmatprep.subr.bf16.mxu0 %v1213
    %1405 = vmatpush1.bf16.msra.mxu0 %v1212
    %1406 = vmatprep.subr.bf16.mxu0 0
    %1407 = vmatpush1.bf16.msra.mxu0 0
    %1408 = vmatprep.subr.bf16.mxu0 0
    %1409 = vmatpush1.bf16.msra.mxu0 0
    %1410 = vmatprep.subr.bf16.mxu0 0
    %1411 = vmatpush1.bf16.msra.mxu0 0
    %1412 = vmatprep.subr.bf16.mxu0 0
    %1413 = vmatpush1.bf16.msra.mxu0 0
    %1414 = vmatprep.subr.bf16.mxu0 0
    %1415 = vmatpush1.bf16.msra.mxu0 0
    %1416 = vmatprep.subr.bf16.mxu0 0
    %1417 = vmatpush1.bf16.msra.mxu0 0
    %1418 = vmatprep.subr.bf16.mxu0 0
    %1419 = vmatpush1.bf16.msra.mxu0 0
    %1420 = vmatprep.subr.bf16.mxu0 0
    %1421 = vmatpush1.bf16.msra.mxu0 0
    %1422 = vmatprep.subr.bf16.mxu0 0
    %1423 = vmatpush1.bf16.msra.mxu0 0
    %1424 = vmatprep.subr.bf16.mxu0 0
    %1425 = vmatpush1.bf16.msra.mxu0 0
    %1426 = vmatprep.subr.bf16.mxu0 0
    %1427 = vmatpush1.bf16.msra.mxu0 0
    %1428 = vmatprep.subr.bf16.mxu0 0
    %1429 = vmatpush1.bf16.msra.mxu0 0
    %1430 = vmatprep.mubr.bf16.mxu0 0
    %1431 = vmatmul.mubr.bf16.gmra.mrb[0].mxu0 %v1396
    %v1432 = vpop.f32.mrb[0].mxu0
    %v1433 = vadd.f32 0.0, %v1432
    %v1434 = vpop.f32.mrb[0].mxu0
    %v1435 = vadd.f32 0.0, %v1434
    %v1436 = vpop.f32.mrb[0].mxu0
    %v1437 = vpop.f32.mrb[0].mxu0
    %1438 = vdwg.mxu0
    %v1441 = vrot.slane %v1433, 4
    %v1442 = vrot.slane %v1435, 4
    %v1445 = vadd.f32 %v1180, %v1441
    %v1446 = vadd.f32 %v1181, %v1442
    %v1447 = vmul.f32 %v1445, 0.5
    %v1448 = vmul.f32 %v1446, 0.5
    %v1449 = vtanh.pop %v1447
    %v1450 = vtanh.pop %v1448
    %v1451 = vmul.f32 %v1449, 0.5
    %v1452 = vmul.f32 %v1450, 0.5
    %v1453 = vadd.f32 %v1451, 0.5
    %v1454 = vadd.f32 %v1452, 0.5
    %v1456 = vrot.slane %v1389, 6
    %1457 = vrot.lane.b32.xlu0 %v1456, 64
    %v1458 = vpop.permute.xlu0 %1457
    %v1460 = vmul.f32 %v1453, %v1458
    %v1461 = vmul.f32 %v1453, %v1450
    %1463 = vrot.lane.b32.xlu0 %v1461, 64
    %v1464 = vpop.permute.xlu0 %1463
    %v1466 = vadd.f32 %v1460, %v1464
    %v1467 = vtanh.pop %v1466
    %v1468 = vmul.f32 %v1454, %v1467
    %1470 = vrot.lane.b32.xlu0 %v1468, 64
    %v1471 = vpop.permute.xlu0 %1470
    %v1473 = vsel %vm163, %v1471, 0.0
    %v1475 = vrot.slane %v1383, 6
    %v1477 = vsel %vm163, %v1471, %v1475
    %1479 = vrot.lane.b32.xlu0 %v1466, 64
    %v1480 = vpop.permute.xlu0 %1479
    %v1483 = vsel %vm163, %v1480, %v1456
    %1484 = vst.msk [vmem:[#allocation3] sm:$0x30] %vm585, %v1473
    %1485 = vst.msk [vmem:[#allocation3 + $0x6] sm:$0x30] %vm587, %v1473
    %v1486 = vpack.c.bf16 %v1477, %v1477
    %v1488 = vrot.slane %v1486, 2
    %v1490 = vsel %vm315, %v1488, 0
    %1492 = vmatprep.subr.bf16.mxu0 %v1207
    %1493 = vmatpush1.bf16.msra.mxu0 %v1206
    %1494 = vmatprep.subr.bf16.mxu0 %v1209
    %1495 = vmatpush1.bf16.msra.mxu0 %v1208
    %1496 = vmatprep.subr.bf16.mxu0 %v1211
    %1497 = vmatpush1.bf16.msra.mxu0 %v1210
    %1498 = vmatprep.subr.bf16.mxu0 %v1213
    %1499 = vmatpush1.bf16.msra.mxu0 %v1212
    %1500 = vmatprep.subr.bf16.mxu0 0
    %1501 = vmatpush1.bf16.msra.mxu0 0
    %1502 = vmatprep.subr.bf16.mxu0 0
    %1503 = vmatpush1.bf16.msra.mxu0 0
    %1504 = vmatprep.subr.bf16.mxu0 0
    %1505 = vmatpush1.bf16.msra.mxu0 0
    %1506 = vmatprep.subr.bf16.mxu0 0
    %1507 = vmatpush1.bf16.msra.mxu0 0
    %1508 = vmatprep.subr.bf16.mxu0 0
    %1509 = vmatpush1.bf16.msra.mxu0 0
    %1510 = vmatprep.subr.bf16.mxu0 0
    %1511 = vmatpush1.bf16.msra.mxu0 0
    %1512 = vmatprep.subr.bf16.mxu0 0
    %1513 = vmatpush1.bf16.msra.mxu0 0
    %1514 = vmatprep.subr.bf16.mxu0 0
    %1515 = vmatpush1.bf16.msra.mxu0 0
    %1516 = vmatprep.subr.bf16.mxu0 0
    %1517 = vmatpush1.bf16.msra.mxu0 0
    %1518 = vmatprep.subr.bf16.mxu0 0
    %1519 = vmatpush1.bf16.msra.mxu0 0
    %1520 = vmatprep.subr.bf16.mxu0 0
    %1521 = vmatpush1.bf16.msra.mxu0 0
    %1522 = vmatprep.subr.bf16.mxu0 0
    %1523 = vmatpush1.bf16.msra.mxu0 0
    %1524 = vmatprep.mubr.bf16.mxu0 0
    %1525 = vmatmul.mubr.bf16.gmra.mrb[0].mxu0 %v1490
    %v1526 = vpop.f32.mrb[0].mxu0
    %v1527 = vadd.f32 0.0, %v1526
    %v1528 = vpop.f32.mrb[0].mxu0
    %v1529 = vadd.f32 0.0, %v1528
    %v1530 = vpop.f32.mrb[0].mxu0
    %v1531 = vpop.f32.mrb[0].mxu0
    %1532 = vdwg.mxu0
    %v1535 = vrot.slane %v1527, 2
    %v1536 = vrot.slane %v1529, 2
    %v1539 = vadd.f32 %v1298, %v1535
    %v1540 = vadd.f32 %v1299, %v1536
    %v1541 = vmul.f32 %v1539, 0.5
    %v1542 = vmul.f32 %v1540, 0.5
    %v1543 = vtanh.pop %v1541
    %v1544 = vtanh.pop %v1542
    %v1545 = vmul.f32 %v1543, 0.5
    %v1546 = vmul.f32 %v1544, 0.5
    %v1547 = vadd.f32 %v1545, 0.5
    %v1548 = vadd.f32 %v1546, 0.5
    %v1550 = vrot.slane %v1483, 6
    %1551 = vrot.lane.b32.xlu0 %v1550, 64
    %v1552 = vpop.permute.xlu0 %1551
    %v1554 = vmul.f32 %v1547, %v1552
    %v1555 = vmul.f32 %v1547, %v1544
    %1557 = vrot.lane.b32.xlu0 %v1555, 64
    %v1558 = vpop.permute.xlu0 %1557
    %v1560 = vadd.f32 %v1554, %v1558
    %v1561 = vtanh.pop %v1560
    %v1562 = vmul.f32 %v1548, %v1561
    %1564 = vrot.lane.b32.xlu0 %v1562, 64
    %v1565 = vpop.permute.xlu0 %1564
    %v1567 = vsel %vm163, %v1565, 0.0
    %v1569 = vrot.slane %v1477, 6
    %v1571 = vsel %vm163, %v1565, %v1569
    %1573 = vrot.lane.b32.xlu0 %v1560, 64
    %v1574 = vpop.permute.xlu0 %1573
    %v1577 = vsel %vm163, %v1574, %v1550
    %1578 = vst.msk [vmem:[#allocation3] sm:$0xc0] %vm681, %v1567
    %1579 = vst.msk [vmem:[#allocation3 + $0x2] sm:$0xc0] %vm683, %v1567
    %v1582 = vrot.slane %v1158, 6
    %v1583 = vrot.slane %v1160, 6
    %v1586 = vsel %vm265, %v1162, %v1582
    %v1587 = vsel %vm266, %v1164, %v1583
    %v1588 = vpack.c.bf16 %v1571, %v1571
    %v1590 = vrot.slane %v1588, 3
    %v1592 = vsel %vm315, %v1590, 0
    %1594 = vmatprep.subr.bf16.mxu0 %v1207
    %1595 = vmatpush1.bf16.msra.mxu0 %v1206
    %1596 = vmatprep.subr.bf16.mxu0 %v1209
    %1597 = vmatpush1.bf16.msra.mxu0 %v1208
    %1598 = vmatprep.subr.bf16.mxu0 %v1211
    %1599 = vmatpush1.bf16.msra.mxu0 %v1210
    %1600 = vmatprep.subr.bf16.mxu0 %v1213
    %1601 = vmatpush1.bf16.msra.mxu0 %v1212
    %1602 = vmatprep.subr.bf16.mxu0 0
    %1603 = vmatpush1.bf16.msra.mxu0 0
    %1604 = vmatprep.subr.bf16.mxu0 0
    %1605 = vmatpush1.bf16.msra.mxu0 0
    %1606 = vmatprep.subr.bf16.mxu0 0
    %1607 = vmatpush1.bf16.msra.mxu0 0
    %1608 = vmatprep.subr.bf16.mxu0 0
    %1609 = vmatpush1.bf16.msra.mxu0 0
    %1610 = vmatprep.subr.bf16.mxu0 0
    %1611 = vmatpush1.bf16.msra.mxu0 0
    %1612 = vmatprep.subr.bf16.mxu0 0
    %1613 = vmatpush1.bf16.msra.mxu0 0
    %1614 = vmatprep.subr.bf16.mxu0 0
    %1615 = vmatpush1.bf16.msra.mxu0 0
    %1616 = vmatprep.subr.bf16.mxu0 0
    %1617 = vmatpush1.bf16.msra.mxu0 0
    %1618 = vmatprep.subr.bf16.mxu0 0
    %1619 = vmatpush1.bf16.msra.mxu0 0
    %1620 = vmatprep.subr.bf16.mxu0 0
    %1621 = vmatpush1.bf16.msra.mxu0 0
    %1622 = vmatprep.subr.bf16.mxu0 0
    %1623 = vmatpush1.bf16.msra.mxu0 0
    %1624 = vmatprep.subr.bf16.mxu0 0
    %1625 = vmatpush1.bf16.msra.mxu0 0
    %1626 = vmatprep.mubr.bf16.mxu0 0
    %1627 = vmatmul.mubr.bf16.gmra.mrb[0].mxu0 %v1592
    %v1628 = vpop.f32.mrb[0].mxu0
    %v1629 = vadd.f32 0.0, %v1628
    %v1630 = vpop.f32.mrb[0].mxu0
    %v1631 = vadd.f32 0.0, %v1630
    %v1632 = vpop.f32.mrb[0].mxu0
    %v1633 = vpop.f32.mrb[0].mxu0
    %1634 = vdwg.mxu0
    %v1635 = vadd.f32 %v1586, %v1629
    %v1636 = vadd.f32 %v1587, %v1631
    %v1637 = vmul.f32 %v1635, 0.5
    %v1638 = vmul.f32 %v1636, 0.5
    %v1639 = vtanh.pop %v1637
    %v1640 = vtanh.pop %v1638
    %v1641 = vmul.f32 %v1639, 0.5
    %v1642 = vmul.f32 %v1640, 0.5
    %v1643 = vadd.f32 %v1641, 0.5
    %v1644 = vadd.f32 %v1642, 0.5
    %v1646 = vrot.slane %v1577, 6
    %1647 = vrot.lane.b32.xlu0 %v1646, 64
    %v1648 = vpop.permute.xlu0 %1647
    %v1650 = vmul.f32 %v1643, %v1648
    %v1651 = vmul.f32 %v1643, %v1640
    %1653 = vrot.lane.b32.xlu0 %v1651, 64
    %v1654 = vpop.permute.xlu0 %1653
    %v1656 = vadd.f32 %v1650, %v1654
    %v1657 = vtanh.pop %v1656
    %v1658 = vmul.f32 %v1644, %v1657
    %1660 = vrot.lane.b32.xlu0 %v1658, 64
    %v1661 = vpop.permute.xlu0 %1660
    %v1663 = vsel %vm164, %v1661, 0.0
    %v1665 = vrot.slane %v1571, 6
    %v1667 = vsel %vm164, %v1661, %v1665
    %1669 = vrot.lane.b32.xlu0 %v1656, 64
    %v1670 = vpop.permute.xlu0 %1669
    %v1673 = vsel %vm164, %v1670, %v1646
    %1674 = vst.msk [vmem:[#allocation3 + $0x8] sm:$0x3] %vm389, %v1663
    %1675 = vst.msk [vmem:[#allocation3 + $0x6] sm:$0x3] %vm391, %v1663
    %v1676 = vrot.slane %v1158, 2
    %v1677 = vrot.slane %v1160, 2
    %v1680 = vsel %vm265, %v1162, %v1676
    %v1681 = vsel %vm266, %v1164, %v1677
    %v1682 = vpack.c.bf16 %v1667, %v1667
    %v1684 = vsel %vm315, %v1682, 0
    %1686 = vmatprep.subr.bf16.mxu0 %v1207
    %1687 = vmatpush1.bf16.msra.mxu0 %v1206
    %1688 = vmatprep.subr.bf16.mxu0 %v1209
    %1689 = vmatpush1.bf16.msra.mxu0 %v1208
    %1690 = vmatprep.subr.bf16.mxu0 %v1211
    %1691 = vmatpush1.bf16.msra.mxu0 %v1210
    %1692 = vmatprep.subr.bf16.mxu0 %v1213
    %1693 = vmatpush1.bf16.msra.mxu0 %v1212
    %1694 = vmatprep.subr.bf16.mxu0 0
    %1695 = vmatpush1.bf16.msra.mxu0 0
    %1696 = vmatprep.subr.bf16.mxu0 0
    %1697 = vmatpush1.bf16.msra.mxu0 0
    %1698 = vmatprep.subr.bf16.mxu0 0
    %1699 = vmatpush1.bf16.msra.mxu0 0
    %1700 = vmatprep.subr.bf16.mxu0 0
    %1701 = vmatpush1.bf16.msra.mxu0 0
    %1702 = vmatprep.subr.bf16.mxu0 0
    %1703 = vmatpush1.bf16.msra.mxu0 0
    %1704 = vmatprep.subr.bf16.mxu0 0
    %1705 = vmatpush1.bf16.msra.mxu0 0
    %1706 = vmatprep.subr.bf16.mxu0 0
    %1707 = vmatpush1.bf16.msra.mxu0 0
    %1708 = vmatprep.subr.bf16.mxu0 0
    %1709 = vmatpush1.bf16.msra.mxu0 0
    %1710 = vmatprep.subr.bf16.mxu0 0
    %1711 = vmatpush1.bf16.msra.mxu0 0
    %1712 = vmatprep.subr.bf16.mxu0 0
    %1713 = vmatpush1.bf16.msra.mxu0 0
    %1714 = vmatprep.subr.bf16.mxu0 0
    %1715 = vmatpush1.bf16.msra.mxu0 0
    %1716 = vmatprep.subr.bf16.mxu0 0
    %1717 = vmatpush1.bf16.msra.mxu0 0
    %1718 = vmatprep.mubr.bf16.mxu0 0
    %1719 = vmatmul.mubr.bf16.gmra.mrb[0].mxu0 %v1684
    %v1720 = vpop.f32.mrb[0].mxu0
    %v1721 = vadd.f32 0.0, %v1720
    %v1722 = vpop.f32.mrb[0].mxu0
    %v1723 = vadd.f32 0.0, %v1722
    %v1724 = vpop.f32.mrb[0].mxu0
    %v1725 = vpop.f32.mrb[0].mxu0
    %1726 = vdwg.mxu0
    %v1729 = vrot.slane %v1721, 6
    %v1730 = vrot.slane %v1723, 6
    %v1733 = vadd.f32 %v1680, %v1729
    %v1734 = vadd.f32 %v1681, %v1730
    %v1735 = vmul.f32 %v1733, 0.5
    %v1736 = vmul.f32 %v1734, 0.5
    %v1737 = vtanh.pop %v1735
    %v1738 = vtanh.pop %v1736
    %v1739 = vmul.f32 %v1737, 0.5
    %v1740 = vmul.f32 %v1738, 0.5
    %v1741 = vadd.f32 %v1739, 0.5
    %v1742 = vadd.f32 %v1740, 0.5
    %v1744 = vrot.slane %v1673, 6
    %1745 = vrot.lane.b32.xlu0 %v1744, 64
    %v1746 = vpop.permute.xlu0 %1745
    %v1748 = vmul.f32 %v1741, %v1746
    %v1749 = vmul.f32 %v1741, %v1738
    %1751 = vrot.lane.b32.xlu0 %v1749, 64
    %v1752 = vpop.permute.xlu0 %1751
    %v1754 = vadd.f32 %v1748, %v1752
    %v1755 = vtanh.pop %v1754
    %v1756 = vmul.f32 %v1742, %v1755
    %1758 = vrot.lane.b32.xlu0 %v1756, 64
    %v1759 = vpop.permute.xlu0 %1758
    %v1761 = vsel %vm164, %v1759, 0.0
    %v1763 = vrot.slane %v1667, 6
    %v1765 = vsel %vm164, %v1759, %v1763
    %1767 = vrot.lane.b32.xlu0 %v1754, 64
    %v1768 = vpop.permute.xlu0 %1767
    %v1771 = vsel %vm164, %v1768, %v1744
    %1772 = vst.msk [vmem:[#allocation3 + $0x8] sm:$0xc] %vm489, %v1761
    %1773 = vst.msk [vmem:[#allocation3 + $0x2] sm:$0xc] %vm491, %v1761
    %v1774 = vpack.c.bf16 %v1765, %v1765
    %v1776 = vrot.slane %v1774, 1
    %v1778 = vsel %vm315, %v1776, 0
    %1780 = vmatprep.subr.bf16.mxu0 %v1207
    %1781 = vmatpush1.bf16.msra.mxu0 %v1206
    %1782 = vmatprep.subr.bf16.mxu0 %v1209
    %1783 = vmatpush1.bf16.msra.mxu0 %v1208
    %1784 = vmatprep.subr.bf16.mxu0 %v1211
    %1785 = vmatpush1.bf16.msra.mxu0 %v1210
    %1786 = vmatprep.subr.bf16.mxu0 %v1213
    %1787 = vmatpush1.bf16.msra.mxu0 %v1212
    %1788 = vmatprep.subr.bf16.mxu0 0
    %1789 = vmatpush1.bf16.msra.mxu0 0
    %1790 = vmatprep.subr.bf16.mxu0 0
    %1791 = vmatpush1.bf16.msra.mxu0 0
    %1792 = vmatprep.subr.bf16.mxu0 0
    %1793 = vmatpush1.bf16.msra.mxu0 0
    %1794 = vmatprep.subr.bf16.mxu0 0
    %1795 = vmatpush1.bf16.msra.mxu0 0
    %1796 = vmatprep.subr.bf16.mxu0 0
    %1797 = vmatpush1.bf16.msra.mxu0 0
    %1798 = vmatprep.subr.bf16.mxu0 0
    %1799 = vmatpush1.bf16.msra.mxu0 0
    %1800 = vmatprep.subr.bf16.mxu0 0
    %1801 = vmatpush1.bf16.msra.mxu0 0
    %1802 = vmatprep.subr.bf16.mxu0 0
    %1803 = vmatpush1.bf16.msra.mxu0 0
    %1804 = vmatprep.subr.bf16.mxu0 0
    %1805 = vmatpush1.bf16.msra.mxu0 0
    %1806 = vmatprep.subr.bf16.mxu0 0
    %1807 = vmatpush1.bf16.msra.mxu0 0
    %1808 = vmatprep.subr.bf16.mxu0 0
    %1809 = vmatpush1.bf16.msra.mxu0 0
    %1810 = vmatprep.subr.bf16.mxu0 0
    %1811 = vmatpush1.bf16.msra.mxu0 0
    %1812 = vmatprep.mubr.bf16.mxu0 0
    %1813 = vmatmul.mubr.bf16.gmra.mrb[0].mxu0 %v1778
    %v1814 = vpop.f32.mrb[0].mxu0
    %v1815 = vadd.f32 0.0, %v1814
    %v1816 = vpop.f32.mrb[0].mxu0
    %v1817 = vadd.f32 0.0, %v1816
    %v1818 = vpop.f32.mrb[0].mxu0
    %v1819 = vpop.f32.mrb[0].mxu0
    %1820 = vdwg.mxu0
    %v1823 = vrot.slane %v1815, 4
    %v1824 = vrot.slane %v1817, 4
    %v1827 = vadd.f32 %v1586, %v1823
    %v1828 = vadd.f32 %v1587, %v1824
    %v1829 = vmul.f32 %v1827, 0.5
    %v1830 = vmul.f32 %v1828, 0.5
    %v1831 = vtanh.pop %v1829
    %v1832 = vtanh.pop %v1830
    %v1833 = vmul.f32 %v1831, 0.5
    %v1834 = vmul.f32 %v1832, 0.5
    %v1835 = vadd.f32 %v1833, 0.5
    %v1836 = vadd.f32 %v1834, 0.5
    %v1838 = vrot.slane %v1771, 6
    %1839 = vrot.lane.b32.xlu0 %v1838, 64
    %v1840 = vpop.permute.xlu0 %1839
    %v1842 = vmul.f32 %v1835, %v1840
    %v1843 = vmul.f32 %v1835, %v1832
    %1845 = vrot.lane.b32.xlu0 %v1843, 64
    %v1846 = vpop.permute.xlu0 %1845
    %v1848 = vadd.f32 %v1842, %v1846
    %v1849 = vtanh.pop %v1848
    %v1850 = vmul.f32 %v1836, %v1849
    %1852 = vrot.lane.b32.xlu0 %v1850, 64
    %v1853 = vpop.permute.xlu0 %1852
    %v1855 = vsel %vm164, %v1853, 0.0
    %v1857 = vrot.slane %v1765, 6
    %v1859 = vsel %vm164, %v1853, %v1857
    %1861 = vrot.lane.b32.xlu0 %v1848, 64
    %v1862 = vpop.permute.xlu0 %1861
    %v1865 = vsel %vm164, %v1862, %v1838
    %1866 = vst.msk [vmem:[#allocation3 + $0x8] sm:$0x30] %vm585, %v1855
    %1867 = vst.msk [vmem:[#allocation3 - $0x2] sm:$0x30] %vm587, %v1855
    %v1868 = vpack.c.bf16 %v1859, %v1859
    %v1870 = vrot.slane %v1868, 2
    %v1872 = vsel %vm315, %v1870, 0
    %1874 = vmatprep.subr.bf16.mxu0 %v1207
    %1875 = vmatpush1.bf16.msra.mxu0 %v1206
    %1876 = vmatprep.subr.bf16.mxu0 %v1209
    %1877 = vmatpush1.bf16.msra.mxu0 %v1208
    %1878 = vmatprep.subr.bf16.mxu0 %v1211
    %1879 = vmatpush1.bf16.msra.mxu0 %v1210
    %1880 = vmatprep.subr.bf16.mxu0 %v1213
    %1881 = vmatpush1.bf16.msra.mxu0 %v1212
    %1882 = vmatprep.subr.bf16.mxu0 0
    %1883 = vmatpush1.bf16.msra.mxu0 0
    %1884 = vmatprep.subr.bf16.mxu0 0
    %1885 = vmatpush1.bf16.msra.mxu0 0
    %1886 = vmatprep.subr.bf16.mxu0 0
    %1887 = vmatpush1.bf16.msra.mxu0 0
    %1888 = vmatprep.subr.bf16.mxu0 0
    %1889 = vmatpush1.bf16.msra.mxu0 0
    %1890 = vmatprep.subr.bf16.mxu0 0
    %1891 = vmatpush1.bf16.msra.mxu0 0
    %1892 = vmatprep.subr.bf16.mxu0 0
    %1893 = vmatpush1.bf16.msra.mxu0 0
    %1894 = vmatprep.subr.bf16.mxu0 0
    %1895 = vmatpush1.bf16.msra.mxu0 0
    %1896 = vmatprep.subr.bf16.mxu0 0
    %1897 = vmatpush1.bf16.msra.mxu0 0
    %1898 = vmatprep.subr.bf16.mxu0 0
    %1899 = vmatpush1.bf16.msra.mxu0 0
    %1900 = vmatprep.subr.bf16.mxu0 0
    %1901 = vmatpush1.bf16.msra.mxu0 0
    %1902 = vmatprep.subr.bf16.mxu0 0
    %1903 = vmatpush1.bf16.msra.mxu0 0
    %1904 = vmatprep.subr.bf16.mxu0 0
    %1905 = vmatpush1.bf16.msra.mxu0 0
    %1906 = vmatprep.mubr.bf16.mxu0 0
    %1907 = vmatmul.mubr.bf16.gmra.mrb[0].mxu0 %v1872
    %v1908 = vpop.f32.mrb[0].mxu0
    %v1909 = vadd.f32 0.0, %v1908
    %v1910 = vpop.f32.mrb[0].mxu0
    %v1911 = vadd.f32 0.0, %v1910
    %v1912 = vpop.f32.mrb[0].mxu0
    %v1913 = vpop.f32.mrb[0].mxu0
    %1914 = vdwg.mxu0
    %v1917 = vrot.slane %v1909, 2
    %v1918 = vrot.slane %v1911, 2
    %v1921 = vadd.f32 %v1680, %v1917
    %v1922 = vadd.f32 %v1681, %v1918
    %v1923 = vmul.f32 %v1921, 0.5
    %v1924 = vmul.f32 %v1922, 0.5
    %v1925 = vtanh.pop %v1923
    %v1926 = vtanh.pop %v1924
    %v1927 = vmul.f32 %v1925, 0.5
    %v1928 = vmul.f32 %v1926, 0.5
    %v1929 = vadd.f32 %v1927, 0.5
    %v1930 = vadd.f32 %v1928, 0.5
    %v1932 = vrot.slane %v1865, 6
    %1933 = vrot.lane.b32.xlu0 %v1932, 64
    %v1934 = vpop.permute.xlu0 %1933
    %v1936 = vmul.f32 %v1929, %v1934
    %v1937 = vmul.f32 %v1929, %v1926
    %1939 = vrot.lane.b32.xlu0 %v1937, 64
    %v1940 = vpop.permute.xlu0 %1939
    %v1942 = vadd.f32 %v1936, %v1940
    %v1943 = vtanh.pop %v1942
    %v1944 = vmul.f32 %v1930, %v1943
    %1946 = vrot.lane.b32.xlu0 %v1944, 64
    %v1947 = vpop.permute.xlu0 %1946
    %v1949 = vsel %vm164, %v1947, 0.0
    %1950 = vst.msk [vmem:[#allocation3 + $0x8] sm:$0xc0] %vm681, %v1949
    %1951 = vst.msk [vmem:[#allocation3 - $0x6] sm:$0xc0] %vm683, %v1949
    %v1952 = vld [vmem:[#allocation3] sm:$0xff]
    %v1953 = vld [vmem:[#allocation3 + $0x8] sm:$0xff]
    %v1954 = vpack.c.bf16 %v1953, %v1952
    %v1955 = vld [vmem:[#allocation15] sm:$0xf]
    %v1956 = vld [vmem:[#allocation15 + $0x4] sm:$0xf]
    %v1957 = vld [vmem:[#allocation15 + $0x8] sm:$0xf]
    %v1958 = vld [vmem:[#allocation15 + $0xc] sm:$0xf]
    %v1959 = vld [vmem:[#allocation15 + $0x10] sm:$0xf]
    %v1960 = vld [vmem:[#allocation15 + $0x14] sm:$0xf]
    %v1961 = vld [vmem:[#allocation15 + $0x18] sm:$0xf]
    %v1962 = vld [vmem:[#allocation15 + $0x1c] sm:$0xf]
    %v1963 = vld [vmem:[%s9] sm:$0x1]
    %v1965 = vlaneseq
    %v1966 = vshrl.u32 %v1965, 7
    %v1967 = vsub.s32 0, %v1966
    %v1968 = vrot.slane %v1963, %v1967
    %v1978 = vunpack.c.l.b16 %v1955
    %v1979 = vunpack.c.l.b16 %v1956
    %v1980 = vunpack.c.l.b16 %v1957
    %v1981 = vunpack.c.l.b16 %v1958
    %v1982 = vunpack.c.l.b16 %v1959
    %v1983 = vunpack.c.l.b16 %v1960
    %v1984 = vunpack.c.l.b16 %v1961
    %v1985 = vunpack.c.l.b16 %v1962
    %v1986 = vpack.c.b16 %v1979, %v1978
    %v1987 = vpack.c.b16 %v1981, %v1980
    %v1988 = vpack.c.b16 %v1983, %v1982
    %v1989 = vpack.c.b16 %v1985, %v1984
    %v1995 = vsel %vm315, %v1954, 0
    %1997 = vmatprep.subr.bf16.mxu0 0
    %1998 = vmatpush1.bf16.msra.mxu0 %v1986
    %1999 = vmatprep.subr.bf16.mxu0 0
    %2000 = vmatpush1.bf16.msra.mxu0 %v1987
    %2001 = vmatprep.subr.bf16.mxu0 0
    %2002 = vmatpush1.bf16.msra.mxu0 %v1988
    %2003 = vmatprep.subr.bf16.mxu0 0
    %2004 = vmatpush1.bf16.msra.mxu0 %v1989
    %2005 = vmatprep.subr.bf16.mxu0 0
    %2006 = vmatpush1.bf16.msra.mxu0 0
    %2007 = vmatprep.subr.bf16.mxu0 0
    %2008 = vmatpush1.bf16.msra.mxu0 0
    %2009 = vmatprep.subr.bf16.mxu0 0
    %2010 = vmatpush1.bf16.msra.mxu0 0
    %2011 = vmatprep.subr.bf16.mxu0 0
    %2012 = vmatpush1.bf16.msra.mxu0 0
    %2013 = vmatprep.subr.bf16.mxu0 0
    %2014 = vmatpush1.bf16.msra.mxu0 0
    %2015 = vmatprep.subr.bf16.mxu0 0
    %2016 = vmatpush1.bf16.msra.mxu0 0
    %2017 = vmatprep.subr.bf16.mxu0 0
    %2018 = vmatpush1.bf16.msra.mxu0 0
    %2019 = vmatprep.subr.bf16.mxu0 0
    %2020 = vmatpush1.bf16.msra.mxu0 0
    %2021 = vmatprep.subr.bf16.mxu0 0
    %2022 = vmatpush1.bf16.msra.mxu0 0
    %2023 = vmatprep.subr.bf16.mxu0 0
    %2024 = vmatpush1.bf16.msra.mxu0 0
    %2025 = vmatprep.subr.bf16.mxu0 0
    %2026 = vmatpush1.bf16.msra.mxu0 0
    %2027 = vmatprep.subr.bf16.mxu0 0
    %2028 = vmatpush1.bf16.msra.mxu0 0
    %2029 = vmatprep.mubr.bf16.mxu0 0
    %2030 = vmatmul.mubr.bf16.gmra.mrb[0].mxu0 %v1995
    %v2031 = vpop.f32.mrb[0].mxu0
    %v2032 = vadd.f32 %v1968, %v2031
    %v2033 = vpop.f32.mrb[0].mxu0
    %v2034 = vpop.f32.mrb[0].mxu0
    %v2035 = vadd.f32 %v1968, %v2034
    %v2036 = vpop.f32.mrb[0].mxu0
    %2037 = vdwg.mxu0
    %2038 = vst [vmem:[#allocation16] sm:$0xff] %v2032
    %2039 = vst [vmem:[#allocation16 + $0x8] sm:$0xff] %v2035
    // Predicated region
    $region70: #{tpu_custom_call.1} parent=1 // pred_check
      _
    $region71: #{tpu_custom_call.1} parent=1 // pred_check_branch
      %2041 = sbr.rel (0) target = $region73
    $region72: #{tpu_custom_call.1} parent=1 // pred_region
      %s2043 = ssub.s32 256, 256
      %2044 = vsyncadd [#allocation6], %s2043
      %s2045 = sshll.u32 [#allocation16], 4
      %s2046 = int_to_ptr.vmem [resolvable:$true] %s2045
      %2051 = dma.vmem_to_hbm [thread:$0]  %s2046, 256, %s10, [#allocation6], 128, 128, 8
    $region73: #{tpu_custom_call.1} parent=1 // pred_fallthru
      _
    // Predicated region
    $region74: #{tpu_custom_call.1} parent=1 // pred_check
      _
    $region75: #{tpu_custom_call.1} parent=1 // pred_check_branch
      %2053 = sbr.rel (0) target = $region77
    $region76: #{tpu_custom_call.1} parent=1 // pred_region
      %2054 = dma.done [#allocation6], 256
    $region77: #{tpu_custom_call.1} parent=1 // pred_fallthru
      _
    %2055 = vsyncpa [#allocation5], 1
    %2056 = vsyncpa [#allocation8], 1
    %2057 = vsyncpa [#allocation11], 1
    %2058 = vsyncpa [#allocation14], 1
    %2059 = vsyncpa [#allocation6], 1

</llo_original>
